<compile_context>
chip_gen: v6e
topology: v6e:2x2x1
jax: 0.10.0
libtpu: 0.0.40
codegen_flags: <defaults>
</compile_context>

<pallas_src>
import jax
import jax.numpy as jnp
import numpy as np
from jax import lax
from jax.experimental import pallas as pl
from jax.experimental.pallas import tpu as pltpu


# ------------------------------ helpers --------------------------------------
def _round_up(x, m):
    return ((x + m - 1) // m) * m


def _pad_gate_cols(w, h, h_pad):
    """(in_dim, 4*h) with PyTorch gate layout [i|f|g|o] -> (in_dim, 4*h_pad).

    Each gate block is zero padded from width h to h_pad (padding appended at
    the END of the weight would scramble the gate layout, so pad per gate)."""
    in_dim = w.shape[0]
    w4 = w.reshape(in_dim, 4, h)
    w4 = jnp.pad(w4, ((0, 0), (0, 0), (0, h_pad - h)))
    return w4.reshape(in_dim, 4 * h_pad)


def _pad_rows(w, rows_pad):
    return jnp.pad(w, ((0, rows_pad - w.shape[0]), (0, 0)))


def _vmem_capacity_bytes():
    default = 128 * 1024 * 1024
    try:
        info = pltpu.get_tpu_info()
    except Exception:
        return default
    for name in ("vmem_capacity_bytes", "vmem_bytes", "vmem_size_bytes"):
        v = getattr(info, name, None)
        try:
            v = int(v)
        except (TypeError, ValueError):
            continue
        if v > 0:
            return v
    return default


def _choose_tiles(B_pad, T, H_pad, C_pad, budget_bytes):
    """Pick (t_blk, b_tile) so 2x bf16 pre-block + single-buffered weights +
    f32 scratch fit inside the per-generation VMEM budget."""
    G = 4 * H_pad

    def vmem_bytes(t_blk, b_tile):
        pre = 2 * t_blk * b_tile * G * 2                          # bf16, double buffered
        wts = (H_pad * G + 2 * H_pad * G + H_pad * C_pad) * 2     # bf16, single buffered
        bias = (8 * G + 8 * C_pad) * 4                            # f32 biases (sublane-padded)
        out = 2 * b_tile * C_pad * 4                              # f32 output, double buffered
        scr = 2 * 2 * b_tile * H_pad * 4                          # f32 h/c scratch
        return pre + wts + bias + out + scr + (2 << 20)           # ~2 MiB slack

    # Batch tile: as large as possible (fill the MXU M dimension, up to 256),
    # but keep >= 2 tiles on the "parallel" batch axis when the batch allows
    # so a second TensorCore (v7x) has work.
    b_tile = min(B_pad, 256)
    if B_pad >= 16:
        b_tile = min(b_tile, _round_up(B_pad // 2, 8))
    t_blk = min(32, T)

    while vmem_bytes(t_blk, b_tile) > budget_bytes and t_blk > 8:
        t_blk = max(8, t_blk // 2)
    while vmem_bytes(t_blk, b_tile) > budget_bytes and b_tile > 8:
        b_tile = max(8, _round_up(b_tile // 2, 8))
    return t_blk, b_tile


# ----------------------------- Pallas kernel ---------------------------------
def _make_kernel(seq_len, t_blk, h_pad, needs_mask):
    def kernel(pre_ref,                 # (T_BLK, B_TILE, 4H) bf16 pre-gates
               w_hh0_ref,               # (H_pad, 4H)  bf16
               w1_ref,                  # (2*H_pad, 4H) bf16 = [W_ih1; W_hh1]
               b1_ref,                  # (1, 4H) f32
               w_fc_ref, b_fc_ref,      # (H_pad, C_pad) bf16, (1, C_pad) f32
               out_ref,                 # (B_TILE, C_pad) f32
               h_ref, c_ref):           # VMEM scratch (2, B_TILE, H_pad) f32
        t_idx = pl.program_id(1)

        @pl.when(t_idx == 0)
        def _init():
            h_ref[...] = jnp.zeros_like(h_ref)
            c_ref[...] = jnp.zeros_like(c_ref)

        def sig(x):
            # sigmoid(x) == 0.5*tanh(0.5*x) + 0.5 : one EUP op instead of two.
            return 0.5 * jnp.tanh(0.5 * x) + 0.5

        def act(gates, c_prev):
            # PyTorch gate layout [i | f | g | o], each block h_pad wide and
            # 128-aligned -> free static lane slices, no XLU relayout.
            i_g = sig(gates[:, 0 * h_pad:1 * h_pad])
            f_g = sig(gates[:, 1 * h_pad:2 * h_pad])
            g_g = jnp.tanh(gates[:, 2 * h_pad:3 * h_pad])
            o_g = sig(gates[:, 3 * h_pad:4 * h_pad])
            c_new = f_g * c_prev + i_g * g_g
            return o_g * jnp.tanh(c_new), c_new

        def step(i, carry):
            h0, c0, h1, c1 = carry
            # Layer 0: x @ W_ih0 + b0 hoisted out of the kernel; only the
            # recurrent matmul remains.  Weight refs are re-read at each dot
            # site (no full-weight value kept live across the unroll); MXU
            # operands are bf16 with f32 accumulation; state stays f32.
            gates0 = pre_ref[i].astype(jnp.float32) + jnp.dot(
                h0.astype(jnp.bfloat16), w_hh0_ref[...],
                preferred_element_type=jnp.float32)
            h0n, c0n = act(gates0, c0)
            # Layer 1: single fused matmul [h0, h1] @ [W_ih1; W_hh1]; bias is
            # added per step via an implicit (1, 4H) sublane broadcast.
            xh = jnp.concatenate(
                [h0n.astype(jnp.bfloat16), h1.astype(jnp.bfloat16)], axis=-1)
            gates1 = jnp.dot(xh, w1_ref[...],
                             preferred_element_type=jnp.float32) + b1_ref[...]
            h1n, c1n = act(gates1, c1)
            if needs_mask:  # static Python flag: only traced if T was padded
                valid = (t_idx * t_blk + i) < seq_len
                h0n = jnp.where(valid, h0n, h0)
                c0n = jnp.where(valid, c0n, c0)
                h1n = jnp.where(valid, h1n, h1)
                c1n = jnp.where(valid, c1n, c1)
            return h0n, c0n, h1n, c1n

        carry = (h_ref[0], c_ref[0], h_ref[1], c_ref[1])
        h0, c0, h1, c1 = lax.fori_loop(0, t_blk, step, carry, unroll=True)
        h_ref[0] = h0
        c_ref[0] = c0
        h_ref[1] = h1
        c_ref[1] = c1

        @pl.when(t_idx == pl.num_programs(1) - 1)
        def _finalize():
            out_ref[...] = (jnp.dot(h1.astype(jnp.bfloat16), w_fc_ref[...],
                                    preferred_element_type=jnp.float32)
                            + b_fc_ref[...])

    return kernel


# ----------------------------- forward wrapper --------------------------------
def text_lstm_forward(token_ids, params):
    """token_ids: int32 (B, T).  Returns logits (B, num_classes) float32."""
    emb = params["embedding"]                     # (V, E)
    B, T = token_ids.shape
    E = emb.shape[1]
    H = params["w_hh0"].shape[0]
    C = params["w_fc"].shape[1]

    # vreg-friendly padded sizes
    H_pad = _round_up(H, 128)
    C_pad = _round_up(C, 128)
    G = 4 * H_pad
    B_pad = _round_up(B, 8)

    # generation-aware VMEM budget and tile selection
    vmem_phys = _vmem_capacity_bytes()
    vmem_budget = int(vmem_phys * 0.8)   # ~51 MiB on v7x, ~102 MiB on v5e/v6e
    t_blk, b_tile = _choose_tiles(B_pad, T, H_pad, C_pad, vmem_budget)
    B_pad = _round_up(B_pad, b_tile)
    T_pad = _round_up(T, t_blk)
    needs_mask = T_pad != T
    vmem_limit = max(32 * 1024 * 1024, min(vmem_budget, 100 * 1024 * 1024))

    # ---- param packing: per-gate zero padding, layer-1 weight fusion, bf16
    #      MXU operands (accumulation stays f32 inside the kernel) ------------
    bf16 = jnp.bfloat16
    w_ih0 = _pad_gate_cols(params["w_ih0"], H, H_pad)                  # (E, G) f32
    b0 = _pad_gate_cols(params["b0"], H, H_pad)                        # (1, G) f32
    w_hh0 = _pad_rows(_pad_gate_cols(params["w_hh0"], H, H_pad),
                      H_pad).astype(bf16)                              # (H_pad, G)
    w_ih1 = _pad_rows(_pad_gate_cols(params["w_ih1"], H, H_pad), H_pad)
    w_hh1 = _pad_rows(_pad_gate_cols(params["w_hh1"], H, H_pad), H_pad)
    w1 = jnp.concatenate([w_ih1, w_hh1], axis=0).astype(bf16)          # (2H_pad, G)
    b1 = _pad_gate_cols(params["b1"], H, H_pad)                        # (1, G) f32
    w_fc = jnp.pad(params["w_fc"],
                   ((0, H_pad - H), (0, C_pad - C))).astype(bf16)      # (H_pad, C_pad)
    b_fc = jnp.pad(params["b_fc"], ((0, 0), (0, C_pad - C)))           # (1, C_pad) f32

    # ---- embedding lookup + layer-0 input projection as one big XLA GEMM.
    # Transpose / pad at token-id width (and embedding width E) BEFORE the
    # GEMM so the (T_pad, B_pad, G) pre-gate tensor is written exactly once,
    # already in kernel layout, and streamed into the kernel as bf16. --------
    ids_tb = jnp.pad(jnp.transpose(token_ids, (1, 0)),
                     ((0, T_pad - T), (0, B_pad - B)))                 # (T_pad, B_pad)
    embedded = jnp.take(emb.astype(bf16), ids_tb, axis=0)              # (T_pad, B_pad, E)
    pre = (jnp.dot(embedded.reshape(T_pad * B_pad, E), w_ih0.astype(bf16),
                   preferred_element_type=jnp.float32) + b0)
    pre = pre.astype(bf16).reshape(T_pad, B_pad, G)

    kernel = _make_kernel(T, t_blk, H_pad, needs_mask)

    const = pl.Buffered(1)   # constant index_map -> single buffer, halve VMEM
    grid = (B_pad // b_tile, T_pad // t_blk)   # batch parallel, time recurrent
    grid_spec = pltpu.PrefetchScalarGridSpec(
        num_scalar_prefetch=0,
        grid=grid,
        in_specs=[
            pl.BlockSpec((t_blk, b_tile, G), lambda b, t: (t, b, 0)),   # pre-gates
            pl.BlockSpec((H_pad, G), lambda b, t: (0, 0),
                         pipeline_mode=const),                          # w_hh0
            pl.BlockSpec((2 * H_pad, G), lambda b, t: (0, 0),
                         pipeline_mode=const),                          # w1 fused
            pl.BlockSpec((1, G), lambda b, t: (0, 0),
                         pipeline_mode=const),                          # b1
            pl.BlockSpec((H_pad, C_pad), lambda b, t: (0, 0),
                         pipeline_mode=const),                          # w_fc
            pl.BlockSpec((1, C_pad), lambda b, t: (0, 0),
                         pipeline_mode=const),                          # b_fc
        ],
        out_specs=pl.BlockSpec((b_tile, C_pad), lambda b, t: (b, 0)),
        scratch_shapes=[
            pltpu.VMEM((2, b_tile, H_pad), jnp.float32),   # h (both layers)
            pltpu.VMEM((2, b_tile, H_pad), jnp.float32),   # c (both layers)
        ],
    )

    out_pad = pl.pallas_call(
        kernel,
        out_shape=jax.ShapeDtypeStruct((B_pad, C_pad), jnp.float32),
        grid_spec=grid_spec,
        compiler_params=pltpu.CompilerParams(
            dimension_semantics=("parallel", "arbitrary"),
            vmem_limit_bytes=int(vmem_limit),
        ),
    )(pre, w_hh0, w1, b1, w_fc, b_fc)

    return out_pad[:B, :C]


# ------------------------- pure-JAX reference --------------------------------
def text_lstm_reference(token_ids, params):
    emb = params["embedding"]
    embedded = jnp.take(emb, token_ids, axis=0)          # (B, T, E)
    B = embedded.shape[0]
    H = params["w_hh0"].shape[0]

    def run_layer(xs, w_ih, w_hh, b):
        def step(carry, x_t):
            h, c = carry
            gates = x_t @ w_ih + h @ w_hh + b
            i_g, f_g, g_g, o_g = jnp.split(gates, 4, axis=-1)
            i_g = jax.nn.sigmoid(i_g)
            f_g = jax.nn.sigmoid(f_g)
            g_g = jnp.tanh(g_g)
            o_g = jax.nn.sigmoid(o_g)
            c_new = f_g * c + i_g * g_g
            h_new = o_g * jnp.tanh(c_new)
            return (h_new, c_new), h_new

        init = (jnp.zeros((B, H), jnp.float32), jnp.zeros((B, H), jnp.float32))
        _, hs = lax.scan(step, init, jnp.transpose(xs, (1, 0, 2)))
        return jnp.transpose(hs, (1, 0, 2))              # (B, T, H)

    h0_seq = run_layer(embedded, params["w_ih0"], params["w_hh0"], params["b0"])
    h1_seq = run_layer(h0_seq, params["w_ih1"], params["w_hh1"], params["b1"])
    return h1_seq[:, -1, :] @ params["w_fc"] + params["b_fc"]


# ----------------------------- param init ------------------------------------
def init_params(key, vocab_size, embedding_dim, hidden_size, num_classes):
    ks = jax.random.split(key, 10)
    H = hidden_size

    def u(k, shape, scale):
        return jax.random.uniform(k, shape, jnp.float32, -scale, scale)

    s = 1.0 / np.sqrt(H)
    return {
        "embedding": jax.random.normal(ks[0], (vocab_size, embedding_dim),
                                       jnp.float32),
        # stored transposed vs. PyTorch: (in_dim, 4H)
        "w_ih0": u(ks[1], (embedding_dim, 4 * H), s),
        "w_hh0": u(ks[2], (H, 4 * H), s),
        "b0":    u(ks[3], (1, 4 * H), s),   # = b_ih + b_hh folded together
        "w_ih1": u(ks[4], (H, 4 * H), s),
        "w_hh1": u(ks[5], (H, 4 * H), s),
        "b1":    u(ks[6], (1, 4 * H), s),
        "w_fc":  u(ks[7], (H, num_classes), 1.0 / np.sqrt(H)),
        "b_fc":  u(ks[8], (1, num_classes), 1.0 / np.sqrt(H)),
    }


# --------------------------------- main ---------------------------------------
if __name__ == "__main__":
    vocab_size, embedding_dim, hidden_size, num_classes = 50, 16, 32, 5
    batch, seq_len = 2, 8

    key = jax.random.PRNGKey(0)
    k_param, k_data = jax.random.split(key)
    params = init_params(k_param, vocab_size, embedding_dim, hidden_size,
                         num_classes)
    token_ids = jax.random.randint(k_data, (batch, seq_len), 0, vocab_size,
                                   dtype=jnp.int32)

    logits = jax.block_until_ready(text_lstm_forward(token_ids, params))
    ref = jax.block_until_ready(text_lstm_reference(token_ids, params))

    # bf16 pre-gates / bf16 MXU operands (f32 accumulation) -> loosened tol
    np.testing.assert_allclose(np.asarray(logits), np.asarray(ref),
                               rtol=3e-2, atol=3e-2)
    assert logits.shape == (batch, num_classes)
    print("KERNEL_OK")
</pallas_src>

<mosaic_0001>
module attributes {stable_mosaic.version = 11 : i64} {
  func.func @kernel(%arg0: i32, %arg1: i32, %arg2: memref<8x8x512xbf16, #tpu.memory_space<vmem>>, %arg3: memref<128x512xbf16, #tpu.memory_space<vmem>>, %arg4: memref<256x512xbf16, #tpu.memory_space<vmem>>, %arg5: memref<1x512xf32, #tpu.memory_space<vmem>>, %arg6: memref<128x128xbf16, #tpu.memory_space<vmem>>, %arg7: memref<1x128xf32, #tpu.memory_space<vmem>>, %arg8: memref<8x128xf32, #tpu.memory_space<vmem>>, %arg9: memref<2x8x128xf32, #tpu.memory_space<vmem>>, %arg10: memref<2x8x128xf32, #tpu.memory_space<vmem>>) attributes {dimension_semantics = [#tpu.dimension_semantics<parallel>, #tpu.dimension_semantics<arbitrary>], iteration_bounds = array<i64: 1, 1>, scalar_prefetch = 0 : i64, scratch_operands = 2 : i64, tpu.core_type = #tpu.core_type<tc>, window_params = [{transform_indices = @transform_0, window_bounds = array<i64: 8, 8, 512>}, {pipeline_mode = #tpu.pipeline_mode<synchronous>, transform_indices = @transform_1, window_bounds = array<i64: 128, 512>}, {pipeline_mode = #tpu.pipeline_mode<synchronous>, transform_indices = @transform_2, window_bounds = array<i64: 256, 512>}, {pipeline_mode = #tpu.pipeline_mode<synchronous>, transform_indices = @transform_3, window_bounds = array<i64: 1, 512>}, {pipeline_mode = #tpu.pipeline_mode<synchronous>, transform_indices = @transform_4, window_bounds = array<i64: 128, 128>}, {pipeline_mode = #tpu.pipeline_mode<synchronous>, transform_indices = @transform_5, window_bounds = array<i64: 1, 128>}, {transform_indices = @transform_6, window_bounds = array<i64: 8, 128>}]} {
    %c0_i32 = arith.constant 0 : i32
    %0 = arith.cmpi eq, %arg1, %c0_i32 : i32
    %1 = arith.extui %0 : i1 to i32
    %c0_i32_0 = arith.constant 0 : i32
    %2 = arith.cmpi ne, %1, %c0_i32_0 : i32
    scf.if %2 {
      %cst_249 = arith.constant 0.000000e+00 : f32
      %650 = vector.broadcast %cst_249 : f32 to vector<2x8x128xf32>
      %c0_250 = arith.constant 0 : index
      %c0_251 = arith.constant 0 : index
      %c0_252 = arith.constant 0 : index
      %651 = vector.load %arg9[%c0_250, %c0_251, %c0_252] : memref<2x8x128xf32, #tpu.memory_space<vmem>>, vector<2x8x128xf32>
      tpu.vector_store %arg9[%c0_250, %c0_251, %c0_252], %650 {strides = array<i32>} : memref<2x8x128xf32, #tpu.memory_space<vmem>>, vector<2x8x128xf32>,
      %cst_253 = arith.constant 0.000000e+00 : f32
      %652 = vector.broadcast %cst_253 : f32 to vector<2x8x128xf32>
      %c0_254 = arith.constant 0 : index
      %c0_255 = arith.constant 0 : index
      %c0_256 = arith.constant 0 : index
      %653 = vector.load %arg10[%c0_254, %c0_255, %c0_256] : memref<2x8x128xf32, #tpu.memory_space<vmem>>, vector<2x8x128xf32>
      tpu.vector_store %arg10[%c0_254, %c0_255, %c0_256], %652 {strides = array<i32>} : memref<2x8x128xf32, #tpu.memory_space<vmem>>, vector<2x8x128xf32>,
    } else {
    }
    %c0 = arith.constant 0 : index
    %c0_1 = arith.constant 0 : index
    %c0_2 = arith.constant 0 : index
    %3 = vector.load %arg9[%c0, %c0_1, %c0_2] : memref<2x8x128xf32, #tpu.memory_space<vmem>>, vector<1x8x128xf32>
    %4 = vector.shape_cast %3 : vector<1x8x128xf32> to vector<8x128xf32>
    %c0_3 = arith.constant 0 : index
    %c0_4 = arith.constant 0 : index
    %c0_5 = arith.constant 0 : index
    %5 = vector.load %arg10[%c0_3, %c0_4, %c0_5] : memref<2x8x128xf32, #tpu.memory_space<vmem>>, vector<1x8x128xf32>
    %6 = vector.shape_cast %5 : vector<1x8x128xf32> to vector<8x128xf32>
    %c1 = arith.constant 1 : index
    %c0_6 = arith.constant 0 : index
    %c0_7 = arith.constant 0 : index
    %7 = vector.load %arg9[%c1, %c0_6, %c0_7] : memref<2x8x128xf32, #tpu.memory_space<vmem>>, vector<1x8x128xf32>
    %8 = vector.shape_cast %7 : vector<1x8x128xf32> to vector<8x128xf32>
    %c1_8 = arith.constant 1 : index
    %c0_9 = arith.constant 0 : index
    %c0_10 = arith.constant 0 : index
    %9 = vector.load %arg10[%c1_8, %c0_9, %c0_10] : memref<2x8x128xf32, #tpu.memory_space<vmem>>, vector<1x8x128xf32>
    %10 = vector.shape_cast %9 : vector<1x8x128xf32> to vector<8x128xf32>
    %c0_i32_11 = arith.constant 0 : i32
    %11 = arith.index_cast %c0_i32_11 : i32 to index
    %c0_12 = arith.constant 0 : index
    %c0_13 = arith.constant 0 : index
    %12 = vector.load %arg2[%11, %c0_12, %c0_13] : memref<8x8x512xbf16, #tpu.memory_space<vmem>>, vector<1x8x512xbf16>
    %13 = vector.shape_cast %12 : vector<1x8x512xbf16> to vector<8x512xbf16>
    %14 = arith.extf %13 : vector<8x512xbf16> to vector<8x512xf32>
    %15 = arith.truncf %4 : vector<8x128xf32> to vector<8x128xbf16>
    %c0_14 = arith.constant 0 : index
    %c0_15 = arith.constant 0 : index
    %16 = vector.load %arg3[%c0_14, %c0_15] : memref<128x512xbf16, #tpu.memory_space<vmem>>, vector<128x512xbf16>
    %cst = arith.constant dense<0.000000e+00> : vector<8x512xf32>
    %17 = tpu.matmul %15, %16, %cst {dimension_numbers = #tpu.dot_dimension_numbers<[1], [0], [0], [1], [0, 0, 1, 1], [], []>} : vector<8x128xbf16>, vector<128x512xbf16>, vector<8x512xf32> -> vector<8x512xf32>
    %18 = arith.addf %14, %17 : vector<8x512xf32>
    %19 = vector.extract_strided_slice %18 {offsets = [0, 0], sizes = [8, 128], strides = [1, 1]} : vector<8x512xf32> to vector<8x128xf32>
    %cst_16 = arith.constant 5.000000e-01 : f32
    %20 = vector.broadcast %cst_16 : f32 to vector<8x128xf32>
    %21 = arith.mulf %20, %19 : vector<8x128xf32>
    %22 = math.tanh %21 : vector<8x128xf32>
    %cst_17 = arith.constant 5.000000e-01 : f32
    %23 = vector.broadcast %cst_17 : f32 to vector<8x128xf32>
    %24 = arith.mulf %23, %22 : vector<8x128xf32>
    %cst_18 = arith.constant 5.000000e-01 : f32
    %25 = vector.broadcast %cst_18 : f32 to vector<8x128xf32>
    %26 = arith.addf %24, %25 : vector<8x128xf32>
    %27 = vector.extract_strided_slice %18 {offsets = [0, 128], sizes = [8, 128], strides = [1, 1]} : vector<8x512xf32> to vector<8x128xf32>
    %cst_19 = arith.constant 5.000000e-01 : f32
    %28 = vector.broadcast %cst_19 : f32 to vector<8x128xf32>
    %29 = arith.mulf %28, %27 : vector<8x128xf32>
    %30 = math.tanh %29 : vector<8x128xf32>
    %cst_20 = arith.constant 5.000000e-01 : f32
    %31 = vector.broadcast %cst_20 : f32 to vector<8x128xf32>
    %32 = arith.mulf %31, %30 : vector<8x128xf32>
    %cst_21 = arith.constant 5.000000e-01 : f32
    %33 = vector.broadcast %cst_21 : f32 to vector<8x128xf32>
    %34 = arith.addf %32, %33 : vector<8x128xf32>
    %35 = vector.extract_strided_slice %18 {offsets = [0, 256], sizes = [8, 128], strides = [1, 1]} : vector<8x512xf32> to vector<8x128xf32>
    %36 = math.tanh %35 : vector<8x128xf32>
    %37 = vector.extract_strided_slice %18 {offsets = [0, 384], sizes = [8, 128], strides = [1, 1]} : vector<8x512xf32> to vector<8x128xf32>
    %cst_22 = arith.constant 5.000000e-01 : f32
    %38 = vector.broadcast %cst_22 : f32 to vector<8x128xf32>
    %39 = arith.mulf %38, %37 : vector<8x128xf32>
    %40 = math.tanh %39 : vector<8x128xf32>
    %cst_23 = arith.constant 5.000000e-01 : f32
    %41 = vector.broadcast %cst_23 : f32 to vector<8x128xf32>
    %42 = arith.mulf %41, %40 : vector<8x128xf32>
    %cst_24 = arith.constant 5.000000e-01 : f32
    %43 = vector.broadcast %cst_24 : f32 to vector<8x128xf32>
    %44 = arith.addf %42, %43 : vector<8x128xf32>
    %45 = arith.mulf %34, %6 : vector<8x128xf32>
    %46 = arith.mulf %26, %36 : vector<8x128xf32>
    %47 = arith.addf %45, %46 : vector<8x128xf32>
    %48 = math.tanh %47 : vector<8x128xf32>
    %49 = arith.mulf %44, %48 : vector<8x128xf32>
    %50 = arith.truncf %49 : vector<8x128xf32> to vector<8x128xbf16>
    %51 = arith.truncf %8 : vector<8x128xf32> to vector<8x128xbf16>
    %52 = tpu.concatenate %50, %51 in 1 : vector<8x128xbf16>, vector<8x128xbf16> -> vector<8x256xbf16>
    %c0_25 = arith.constant 0 : index
    %c0_26 = arith.constant 0 : index
    %53 = vector.load %arg4[%c0_25, %c0_26] : memref<256x512xbf16, #tpu.memory_space<vmem>>, vector<256x512xbf16>
    %cst_27 = arith.constant dense<0.000000e+00> : vector<8x512xf32>
    %54 = tpu.matmul %52, %53, %cst_27 {dimension_numbers = #tpu.dot_dimension_numbers<[1], [0], [0], [1], [0, 0, 1, 1], [], []>} : vector<8x256xbf16>, vector<256x512xbf16>, vector<8x512xf32> -> vector<8x512xf32>
    %c0_28 = arith.constant 0 : index
    %c0_29 = arith.constant 0 : index
    %55 = vector.load %arg5[%c0_28, %c0_29] : memref<1x512xf32, #tpu.memory_space<vmem>>, vector<1x512xf32>
    %56 = vector.broadcast %55 : vector<1x512xf32> to vector<8x512xf32>
    %57 = arith.addf %54, %56 : vector<8x512xf32>
    %58 = vector.extract_strided_slice %57 {offsets = [0, 0], sizes = [8, 128], strides = [1, 1]} : vector<8x512xf32> to vector<8x128xf32>
    %cst_30 = arith.constant 5.000000e-01 : f32
    %59 = vector.broadcast %cst_30 : f32 to vector<8x128xf32>
    %60 = arith.mulf %59, %58 : vector<8x128xf32>
    %61 = math.tanh %60 : vector<8x128xf32>
    %cst_31 = arith.constant 5.000000e-01 : f32
    %62 = vector.broadcast %cst_31 : f32 to vector<8x128xf32>
    %63 = arith.mulf %62, %61 : vector<8x128xf32>
    %cst_32 = arith.constant 5.000000e-01 : f32
    %64 = vector.broadcast %cst_32 : f32 to vector<8x128xf32>
    %65 = arith.addf %63, %64 : vector<8x128xf32>
    %66 = vector.extract_strided_slice %57 {offsets = [0, 128], sizes = [8, 128], strides = [1, 1]} : vector<8x512xf32> to vector<8x128xf32>
    %cst_33 = arith.constant 5.000000e-01 : f32
    %67 = vector.broadcast %cst_33 : f32 to vector<8x128xf32>
    %68 = arith.mulf %67, %66 : vector<8x128xf32>
    %69 = math.tanh %68 : vector<8x128xf32>
    %cst_34 = arith.constant 5.000000e-01 : f32
    %70 = vector.broadcast %cst_34 : f32 to vector<8x128xf32>
    %71 = arith.mulf %70, %69 : vector<8x128xf32>
    %cst_35 = arith.constant 5.000000e-01 : f32
    %72 = vector.broadcast %cst_35 : f32 to vector<8x128xf32>
    %73 = arith.addf %71, %72 : vector<8x128xf32>
    %74 = vector.extract_strided_slice %57 {offsets = [0, 256], sizes = [8, 128], strides = [1, 1]} : vector<8x512xf32> to vector<8x128xf32>
    %75 = math.tanh %74 : vector<8x128xf32>
    %76 = vector.extract_strided_slice %57 {offsets = [0, 384], sizes = [8, 128], strides = [1, 1]} : vector<8x512xf32> to vector<8x128xf32>
    %cst_36 = arith.constant 5.000000e-01 : f32
    %77 = vector.broadcast %cst_36 : f32 to vector<8x128xf32>
    %78 = arith.mulf %77, %76 : vector<8x128xf32>
    %79 = math.tanh %78 : vector<8x128xf32>
    %cst_37 = arith.constant 5.000000e-01 : f32
    %80 = vector.broadcast %cst_37 : f32 to vector<8x128xf32>
    %81 = arith.mulf %80, %79 : vector<8x128xf32>
    %cst_38 = arith.constant 5.000000e-01 : f32
    %82 = vector.broadcast %cst_38 : f32 to vector<8x128xf32>
    %83 = arith.addf %81, %82 : vector<8x128xf32>
    %84 = arith.mulf %73, %10 : vector<8x128xf32>
    %85 = arith.mulf %65, %75 : vector<8x128xf32>
    %86 = arith.addf %84, %85 : vector<8x128xf32>
    %87 = math.tanh %86 : vector<8x128xf32>
    %88 = arith.mulf %83, %87 : vector<8x128xf32>
    %c1_i32 = arith.constant 1 : i32
    %89 = arith.index_cast %c1_i32 : i32 to index
    %c0_39 = arith.constant 0 : index
    %c0_40 = arith.constant 0 : index
    %90 = vector.load %arg2[%89, %c0_39, %c0_40] : memref<8x8x512xbf16, #tpu.memory_space<vmem>>, vector<1x8x512xbf16>
    %91 = vector.shape_cast %90 : vector<1x8x512xbf16> to vector<8x512xbf16>
    %92 = arith.extf %91 : vector<8x512xbf16> to vector<8x512xf32>
    %93 = arith.truncf %49 : vector<8x128xf32> to vector<8x128xbf16>
    %c0_41 = arith.constant 0 : index
    %c0_42 = arith.constant 0 : index
    %94 = vector.load %arg3[%c0_41, %c0_42] : memref<128x512xbf16, #tpu.memory_space<vmem>>, vector<128x512xbf16>
    %cst_43 = arith.constant dense<0.000000e+00> : vector<8x512xf32>
    %95 = tpu.matmul %93, %94, %cst_43 {dimension_numbers = #tpu.dot_dimension_numbers<[1], [0], [0], [1], [0, 0, 1, 1], [], []>} : vector<8x128xbf16>, vector<128x512xbf16>, vector<8x512xf32> -> vector<8x512xf32>
    %96 = arith.addf %92, %95 : vector<8x512xf32>
    %97 = vector.extract_strided_slice %96 {offsets = [0, 0], sizes = [8, 128], strides = [1, 1]} : vector<8x512xf32> to vector<8x128xf32>
    %cst_44 = arith.constant 5.000000e-01 : f32
    %98 = vector.broadcast %cst_44 : f32 to vector<8x128xf32>
    %99 = arith.mulf %98, %97 : vector<8x128xf32>
    %100 = math.tanh %99 : vector<8x128xf32>
    %cst_45 = arith.constant 5.000000e-01 : f32
    %101 = vector.broadcast %cst_45 : f32 to vector<8x128xf32>
    %102 = arith.mulf %101, %100 : vector<8x128xf32>
    %cst_46 = arith.constant 5.000000e-01 : f32
    %103 = vector.broadcast %cst_46 : f32 to vector<8x128xf32>
    %104 = arith.addf %102, %103 : vector<8x128xf32>
    %105 = vector.extract_strided_slice %96 {offsets = [0, 128], sizes = [8, 128], strides = [1, 1]} : vector<8x512xf32> to vector<8x128xf32>
    %cst_47 = arith.constant 5.000000e-01 : f32
    %106 = vector.broadcast %cst_47 : f32 to vector<8x128xf32>
    %107 = arith.mulf %106, %105 : vector<8x128xf32>
    %108 = math.tanh %107 : vector<8x128xf32>
    %cst_48 = arith.constant 5.000000e-01 : f32
    %109 = vector.broadcast %cst_48 : f32 to vector<8x128xf32>
    %110 = arith.mulf %109, %108 : vector<8x128xf32>
    %cst_49 = arith.constant 5.000000e-01 : f32
    %111 = vector.broadcast %cst_49 : f32 to vector<8x128xf32>
    %112 = arith.addf %110, %111 : vector<8x128xf32>
    %113 = vector.extract_strided_slice %96 {offsets = [0, 256], sizes = [8, 128], strides = [1, 1]} : vector<8x512xf32> to vector<8x128xf32>
    %114 = math.tanh %113 : vector<8x128xf32>
    %115 = vector.extract_strided_slice %96 {offsets = [0, 384], sizes = [8, 128], strides = [1, 1]} : vector<8x512xf32> to vector<8x128xf32>
    %cst_50 = arith.constant 5.000000e-01 : f32
    %116 = vector.broadcast %cst_50 : f32 to vector<8x128xf32>
    %117 = arith.mulf %116, %115 : vector<8x128xf32>
    %118 = math.tanh %117 : vector<8x128xf32>
    %cst_51 = arith.constant 5.000000e-01 : f32
    %119 = vector.broadcast %cst_51 : f32 to vector<8x128xf32>
    %120 = arith.mulf %119, %118 : vector<8x128xf32>
    %cst_52 = arith.constant 5.000000e-01 : f32
    %121 = vector.broadcast %cst_52 : f32 to vector<8x128xf32>
    %122 = arith.addf %120, %121 : vector<8x128xf32>
    %123 = arith.mulf %112, %47 : vector<8x128xf32>
    %124 = arith.mulf %104, %114 : vector<8x128xf32>
    %125 = arith.addf %123, %124 : vector<8x128xf32>
    %126 = math.tanh %125 : vector<8x128xf32>
    %127 = arith.mulf %122, %126 : vector<8x128xf32>
    %128 = arith.truncf %127 : vector<8x128xf32> to vector<8x128xbf16>
    %129 = arith.truncf %88 : vector<8x128xf32> to vector<8x128xbf16>
    %130 = tpu.concatenate %128, %129 in 1 : vector<8x128xbf16>, vector<8x128xbf16> -> vector<8x256xbf16>
    %c0_53 = arith.constant 0 : index
    %c0_54 = arith.constant 0 : index
    %131 = vector.load %arg4[%c0_53, %c0_54] : memref<256x512xbf16, #tpu.memory_space<vmem>>, vector<256x512xbf16>
    %cst_55 = arith.constant dense<0.000000e+00> : vector<8x512xf32>
    %132 = tpu.matmul %130, %131, %cst_55 {dimension_numbers = #tpu.dot_dimension_numbers<[1], [0], [0], [1], [0, 0, 1, 1], [], []>} : vector<8x256xbf16>, vector<256x512xbf16>, vector<8x512xf32> -> vector<8x512xf32>
    %c0_56 = arith.constant 0 : index
    %c0_57 = arith.constant 0 : index
    %133 = vector.load %arg5[%c0_56, %c0_57] : memref<1x512xf32, #tpu.memory_space<vmem>>, vector<1x512xf32>
    %134 = vector.broadcast %133 : vector<1x512xf32> to vector<8x512xf32>
    %135 = arith.addf %132, %134 : vector<8x512xf32>
    %136 = vector.extract_strided_slice %135 {offsets = [0, 0], sizes = [8, 128], strides = [1, 1]} : vector<8x512xf32> to vector<8x128xf32>
    %cst_58 = arith.constant 5.000000e-01 : f32
    %137 = vector.broadcast %cst_58 : f32 to vector<8x128xf32>
    %138 = arith.mulf %137, %136 : vector<8x128xf32>
    %139 = math.tanh %138 : vector<8x128xf32>
    %cst_59 = arith.constant 5.000000e-01 : f32
    %140 = vector.broadcast %cst_59 : f32 to vector<8x128xf32>
    %141 = arith.mulf %140, %139 : vector<8x128xf32>
    %cst_60 = arith.constant 5.000000e-01 : f32
    %142 = vector.broadcast %cst_60 : f32 to vector<8x128xf32>
    %143 = arith.addf %141, %142 : vector<8x128xf32>
    %144 = vector.extract_strided_slice %135 {offsets = [0, 128], sizes = [8, 128], strides = [1, 1]} : vector<8x512xf32> to vector<8x128xf32>
    %cst_61 = arith.constant 5.000000e-01 : f32
    %145 = vector.broadcast %cst_61 : f32 to vector<8x128xf32>
    %146 = arith.mulf %145, %144 : vector<8x128xf32>
    %147 = math.tanh %146 : vector<8x128xf32>
    %cst_62 = arith.constant 5.000000e-01 : f32
    %148 = vector.broadcast %cst_62 : f32 to vector<8x128xf32>
    %149 = arith.mulf %148, %147 : vector<8x128xf32>
    %cst_63 = arith.constant 5.000000e-01 : f32
    %150 = vector.broadcast %cst_63 : f32 to vector<8x128xf32>
    %151 = arith.addf %149, %150 : vector<8x128xf32>
    %152 = vector.extract_strided_slice %135 {offsets = [0, 256], sizes = [8, 128], strides = [1, 1]} : vector<8x512xf32> to vector<8x128xf32>
    %153 = math.tanh %152 : vector<8x128xf32>
    %154 = vector.extract_strided_slice %135 {offsets = [0, 384], sizes = [8, 128], strides = [1, 1]} : vector<8x512xf32> to vector<8x128xf32>
    %cst_64 = arith.constant 5.000000e-01 : f32
    %155 = vector.broadcast %cst_64 : f32 to vector<8x128xf32>
    %156 = arith.mulf %155, %154 : vector<8x128xf32>
    %157 = math.tanh %156 : vector<8x128xf32>
    %cst_65 = arith.constant 5.000000e-01 : f32
    %158 = vector.broadcast %cst_65 : f32 to vector<8x128xf32>
    %159 = arith.mulf %158, %157 : vector<8x128xf32>
    %cst_66 = arith.constant 5.000000e-01 : f32
    %160 = vector.broadcast %cst_66 : f32 to vector<8x128xf32>
    %161 = arith.addf %159, %160 : vector<8x128xf32>
    %162 = arith.mulf %151, %86 : vector<8x128xf32>
    %163 = arith.mulf %143, %153 : vector<8x128xf32>
    %164 = arith.addf %162, %163 : vector<8x128xf32>
    %165 = math.tanh %164 : vector<8x128xf32>
    %166 = arith.mulf %161, %165 : vector<8x128xf32>
    %c2_i32 = arith.constant 2 : i32
    %167 = arith.index_cast %c2_i32 : i32 to index
    %c0_67 = arith.constant 0 : index
    %c0_68 = arith.constant 0 : index
    %168 = vector.load %arg2[%167, %c0_67, %c0_68] : memref<8x8x512xbf16, #tpu.memory_space<vmem>>, vector<1x8x512xbf16>
    %169 = vector.shape_cast %168 : vector<1x8x512xbf16> to vector<8x512xbf16>
    %170 = arith.extf %169 : vector<8x512xbf16> to vector<8x512xf32>
    %171 = arith.truncf %127 : vector<8x128xf32> to vector<8x128xbf16>
    %c0_69 = arith.constant 0 : index
    %c0_70 = arith.constant 0 : index
    %172 = vector.load %arg3[%c0_69, %c0_70] : memref<128x512xbf16, #tpu.memory_space<vmem>>, vector<128x512xbf16>
    %cst_71 = arith.constant dense<0.000000e+00> : vector<8x512xf32>
    %173 = tpu.matmul %171, %172, %cst_71 {dimension_numbers = #tpu.dot_dimension_numbers<[1], [0], [0], [1], [0, 0, 1, 1], [], []>} : vector<8x128xbf16>, vector<128x512xbf16>, vector<8x512xf32> -> vector<8x512xf32>
    %174 = arith.addf %170, %173 : vector<8x512xf32>
    %175 = vector.extract_strided_slice %174 {offsets = [0, 0], sizes = [8, 128], strides = [1, 1]} : vector<8x512xf32> to vector<8x128xf32>
    %cst_72 = arith.constant 5.000000e-01 : f32
    %176 = vector.broadcast %cst_72 : f32 to vector<8x128xf32>
    %177 = arith.mulf %176, %175 : vector<8x128xf32>
    %178 = math.tanh %177 : vector<8x128xf32>
    %cst_73 = arith.constant 5.000000e-01 : f32
    %179 = vector.broadcast %cst_73 : f32 to vector<8x128xf32>
    %180 = arith.mulf %179, %178 : vector<8x128xf32>
    %cst_74 = arith.constant 5.000000e-01 : f32
    %181 = vector.broadcast %cst_74 : f32 to vector<8x128xf32>
    %182 = arith.addf %180, %181 : vector<8x128xf32>
    %183 = vector.extract_strided_slice %174 {offsets = [0, 128], sizes = [8, 128], strides = [1, 1]} : vector<8x512xf32> to vector<8x128xf32>
    %cst_75 = arith.constant 5.000000e-01 : f32
    %184 = vector.broadcast %cst_75 : f32 to vector<8x128xf32>
    %185 = arith.mulf %184, %183 : vector<8x128xf32>
    %186 = math.tanh %185 : vector<8x128xf32>
    %cst_76 = arith.constant 5.000000e-01 : f32
    %187 = vector.broadcast %cst_76 : f32 to vector<8x128xf32>
    %188 = arith.mulf %187, %186 : vector<8x128xf32>
    %cst_77 = arith.constant 5.000000e-01 : f32
    %189 = vector.broadcast %cst_77 : f32 to vector<8x128xf32>
    %190 = arith.addf %188, %189 : vector<8x128xf32>
    %191 = vector.extract_strided_slice %174 {offsets = [0, 256], sizes = [8, 128], strides = [1, 1]} : vector<8x512xf32> to vector<8x128xf32>
    %192 = math.tanh %191 : vector<8x128xf32>
    %193 = vector.extract_strided_slice %174 {offsets = [0, 384], sizes = [8, 128], strides = [1, 1]} : vector<8x512xf32> to vector<8x128xf32>
    %cst_78 = arith.constant 5.000000e-01 : f32
    %194 = vector.broadcast %cst_78 : f32 to vector<8x128xf32>
    %195 = arith.mulf %194, %193 : vector<8x128xf32>
    %196 = math.tanh %195 : vector<8x128xf32>
    %cst_79 = arith.constant 5.000000e-01 : f32
    %197 = vector.broadcast %cst_79 : f32 to vector<8x128xf32>
    %198 = arith.mulf %197, %196 : vector<8x128xf32>
    %cst_80 = arith.constant 5.000000e-01 : f32
    %199 = vector.broadcast %cst_80 : f32 to vector<8x128xf32>
    %200 = arith.addf %198, %199 : vector<8x128xf32>
    %201 = arith.mulf %190, %125 : vector<8x128xf32>
    %202 = arith.mulf %182, %192 : vector<8x128xf32>
    %203 = arith.addf %201, %202 : vector<8x128xf32>
    %204 = math.tanh %203 : vector<8x128xf32>
    %205 = arith.mulf %200, %204 : vector<8x128xf32>
    %206 = arith.truncf %205 : vector<8x128xf32> to vector<8x128xbf16>
    %207 = arith.truncf %166 : vector<8x128xf32> to vector<8x128xbf16>
    %208 = tpu.concatenate %206, %207 in 1 : vector<8x128xbf16>, vector<8x128xbf16> -> vector<8x256xbf16>
    %c0_81 = arith.constant 0 : index
    %c0_82 = arith.constant 0 : index
    %209 = vector.load %arg4[%c0_81, %c0_82] : memref<256x512xbf16, #tpu.memory_space<vmem>>, vector<256x512xbf16>
    %cst_83 = arith.constant dense<0.000000e+00> : vector<8x512xf32>
    %210 = tpu.matmul %208, %209, %cst_83 {dimension_numbers = #tpu.dot_dimension_numbers<[1], [0], [0], [1], [0, 0, 1, 1], [], []>} : vector<8x256xbf16>, vector<256x512xbf16>, vector<8x512xf32> -> vector<8x512xf32>
    %c0_84 = arith.constant 0 : index
    %c0_85 = arith.constant 0 : index
    %211 = vector.load %arg5[%c0_84, %c0_85] : memref<1x512xf32, #tpu.memory_space<vmem>>, vector<1x512xf32>
    %212 = vector.broadcast %211 : vector<1x512xf32> to vector<8x512xf32>
    %213 = arith.addf %210, %212 : vector<8x512xf32>
    %214 = vector.extract_strided_slice %213 {offsets = [0, 0], sizes = [8, 128], strides = [1, 1]} : vector<8x512xf32> to vector<8x128xf32>
    %cst_86 = arith.constant 5.000000e-01 : f32
    %215 = vector.broadcast %cst_86 : f32 to vector<8x128xf32>
    %216 = arith.mulf %215, %214 : vector<8x128xf32>
    %217 = math.tanh %216 : vector<8x128xf32>
    %cst_87 = arith.constant 5.000000e-01 : f32
    %218 = vector.broadcast %cst_87 : f32 to vector<8x128xf32>
    %219 = arith.mulf %218, %217 : vector<8x128xf32>
    %cst_88 = arith.constant 5.000000e-01 : f32
    %220 = vector.broadcast %cst_88 : f32 to vector<8x128xf32>
    %221 = arith.addf %219, %220 : vector<8x128xf32>
    %222 = vector.extract_strided_slice %213 {offsets = [0, 128], sizes = [8, 128], strides = [1, 1]} : vector<8x512xf32> to vector<8x128xf32>
    %cst_89 = arith.constant 5.000000e-01 : f32
    %223 = vector.broadcast %cst_89 : f32 to vector<8x128xf32>
    %224 = arith.mulf %223, %222 : vector<8x128xf32>
    %225 = math.tanh %224 : vector<8x128xf32>
    %cst_90 = arith.constant 5.000000e-01 : f32
    %226 = vector.broadcast %cst_90 : f32 to vector<8x128xf32>
    %227 = arith.mulf %226, %225 : vector<8x128xf32>
    %cst_91 = arith.constant 5.000000e-01 : f32
    %228 = vector.broadcast %cst_91 : f32 to vector<8x128xf32>
    %229 = arith.addf %227, %228 : vector<8x128xf32>
    %230 = vector.extract_strided_slice %213 {offsets = [0, 256], sizes = [8, 128], strides = [1, 1]} : vector<8x512xf32> to vector<8x128xf32>
    %231 = math.tanh %230 : vector<8x128xf32>
    %232 = vector.extract_strided_slice %213 {offsets = [0, 384], sizes = [8, 128], strides = [1, 1]} : vector<8x512xf32> to vector<8x128xf32>
    %cst_92 = arith.constant 5.000000e-01 : f32
    %233 = vector.broadcast %cst_92 : f32 to vector<8x128xf32>
    %234 = arith.mulf %233, %232 : vector<8x128xf32>
    %235 = math.tanh %234 : vector<8x128xf32>
    %cst_93 = arith.constant 5.000000e-01 : f32
    %236 = vector.broadcast %cst_93 : f32 to vector<8x128xf32>
    %237 = arith.mulf %236, %235 : vector<8x128xf32>
    %cst_94 = arith.constant 5.000000e-01 : f32
    %238 = vector.broadcast %cst_94 : f32 to vector<8x128xf32>
    %239 = arith.addf %237, %238 : vector<8x128xf32>
    %240 = arith.mulf %229, %164 : vector<8x128xf32>
    %241 = arith.mulf %221, %231 : vector<8x128xf32>
    %242 = arith.addf %240, %241 : vector<8x128xf32>
    %243 = math.tanh %242 : vector<8x128xf32>
    %244 = arith.mulf %239, %243 : vector<8x128xf32>
    %c3_i32 = arith.constant 3 : i32
    %245 = arith.index_cast %c3_i32 : i32 to index
    %c0_95 = arith.constant 0 : index
    %c0_96 = arith.constant 0 : index
    %246 = vector.load %arg2[%245, %c0_95, %c0_96] : memref<8x8x512xbf16, #tpu.memory_space<vmem>>, vector<1x8x512xbf16>
    %247 = vector.shape_cast %246 : vector<1x8x512xbf16> to vector<8x512xbf16>
    %248 = arith.extf %247 : vector<8x512xbf16> to vector<8x512xf32>
    %249 = arith.truncf %205 : vector<8x128xf32> to vector<8x128xbf16>
    %c0_97 = arith.constant 0 : index
    %c0_98 = arith.constant 0 : index
    %250 = vector.load %arg3[%c0_97, %c0_98] : memref<128x512xbf16, #tpu.memory_space<vmem>>, vector<128x512xbf16>
    %cst_99 = arith.constant dense<0.000000e+00> : vector<8x512xf32>
    %251 = tpu.matmul %249, %250, %cst_99 {dimension_numbers = #tpu.dot_dimension_numbers<[1], [0], [0], [1], [0, 0, 1, 1], [], []>} : vector<8x128xbf16>, vector<128x512xbf16>, vector<8x512xf32> -> vector<8x512xf32>
    %252 = arith.addf %248, %251 : vector<8x512xf32>
    %253 = vector.extract_strided_slice %252 {offsets = [0, 0], sizes = [8, 128], strides = [1, 1]} : vector<8x512xf32> to vector<8x128xf32>
    %cst_100 = arith.constant 5.000000e-01 : f32
    %254 = vector.broadcast %cst_100 : f32 to vector<8x128xf32>
    %255 = arith.mulf %254, %253 : vector<8x128xf32>
    %256 = math.tanh %255 : vector<8x128xf32>
    %cst_101 = arith.constant 5.000000e-01 : f32
    %257 = vector.broadcast %cst_101 : f32 to vector<8x128xf32>
    %258 = arith.mulf %257, %256 : vector<8x128xf32>
    %cst_102 = arith.constant 5.000000e-01 : f32
    %259 = vector.broadcast %cst_102 : f32 to vector<8x128xf32>
    %260 = arith.addf %258, %259 : vector<8x128xf32>
    %261 = vector.extract_strided_slice %252 {offsets = [0, 128], sizes = [8, 128], strides = [1, 1]} : vector<8x512xf32> to vector<8x128xf32>
    %cst_103 = arith.constant 5.000000e-01 : f32
    %262 = vector.broadcast %cst_103 : f32 to vector<8x128xf32>
    %263 = arith.mulf %262, %261 : vector<8x128xf32>
    %264 = math.tanh %263 : vector<8x128xf32>
    %cst_104 = arith.constant 5.000000e-01 : f32
    %265 = vector.broadcast %cst_104 : f32 to vector<8x128xf32>
    %266 = arith.mulf %265, %264 : vector<8x128xf32>
    %cst_105 = arith.constant 5.000000e-01 : f32
    %267 = vector.broadcast %cst_105 : f32 to vector<8x128xf32>
    %268 = arith.addf %266, %267 : vector<8x128xf32>
    %269 = vector.extract_strided_slice %252 {offsets = [0, 256], sizes = [8, 128], strides = [1, 1]} : vector<8x512xf32> to vector<8x128xf32>
    %270 = math.tanh %269 : vector<8x128xf32>
    %271 = vector.extract_strided_slice %252 {offsets = [0, 384], sizes = [8, 128], strides = [1, 1]} : vector<8x512xf32> to vector<8x128xf32>
    %cst_106 = arith.constant 5.000000e-01 : f32
    %272 = vector.broadcast %cst_106 : f32 to vector<8x128xf32>
    %273 = arith.mulf %272, %271 : vector<8x128xf32>
    %274 = math.tanh %273 : vector<8x128xf32>
    %cst_107 = arith.constant 5.000000e-01 : f32
    %275 = vector.broadcast %cst_107 : f32 to vector<8x128xf32>
    %276 = arith.mulf %275, %274 : vector<8x128xf32>
    %cst_108 = arith.constant 5.000000e-01 : f32
    %277 = vector.broadcast %cst_108 : f32 to vector<8x128xf32>
    %278 = arith.addf %276, %277 : vector<8x128xf32>
    %279 = arith.mulf %268, %203 : vector<8x128xf32>
    %280 = arith.mulf %260, %270 : vector<8x128xf32>
    %281 = arith.addf %279, %280 : vector<8x128xf32>
    %282 = math.tanh %281 : vector<8x128xf32>
    %283 = arith.mulf %278, %282 : vector<8x128xf32>
    %284 = arith.truncf %283 : vector<8x128xf32> to vector<8x128xbf16>
    %285 = arith.truncf %244 : vector<8x128xf32> to vector<8x128xbf16>
    %286 = tpu.concatenate %284, %285 in 1 : vector<8x128xbf16>, vector<8x128xbf16> -> vector<8x256xbf16>
    %c0_109 = arith.constant 0 : index
    %c0_110 = arith.constant 0 : index
    %287 = vector.load %arg4[%c0_109, %c0_110] : memref<256x512xbf16, #tpu.memory_space<vmem>>, vector<256x512xbf16>
    %cst_111 = arith.constant dense<0.000000e+00> : vector<8x512xf32>
    %288 = tpu.matmul %286, %287, %cst_111 {dimension_numbers = #tpu.dot_dimension_numbers<[1], [0], [0], [1], [0, 0, 1, 1], [], []>} : vector<8x256xbf16>, vector<256x512xbf16>, vector<8x512xf32> -> vector<8x512xf32>
    %c0_112 = arith.constant 0 : index
    %c0_113 = arith.constant 0 : index
    %289 = vector.load %arg5[%c0_112, %c0_113] : memref<1x512xf32, #tpu.memory_space<vmem>>, vector<1x512xf32>
    %290 = vector.broadcast %289 : vector<1x512xf32> to vector<8x512xf32>
    %291 = arith.addf %288, %290 : vector<8x512xf32>
    %292 = vector.extract_strided_slice %291 {offsets = [0, 0], sizes = [8, 128], strides = [1, 1]} : vector<8x512xf32> to vector<8x128xf32>
    %cst_114 = arith.constant 5.000000e-01 : f32
    %293 = vector.broadcast %cst_114 : f32 to vector<8x128xf32>
    %294 = arith.mulf %293, %292 : vector<8x128xf32>
    %295 = math.tanh %294 : vector<8x128xf32>
    %cst_115 = arith.constant 5.000000e-01 : f32
    %296 = vector.broadcast %cst_115 : f32 to vector<8x128xf32>
    %297 = arith.mulf %296, %295 : vector<8x128xf32>
    %cst_116 = arith.constant 5.000000e-01 : f32
    %298 = vector.broadcast %cst_116 : f32 to vector<8x128xf32>
    %299 = arith.addf %297, %298 : vector<8x128xf32>
    %300 = vector.extract_strided_slice %291 {offsets = [0, 128], sizes = [8, 128], strides = [1, 1]} : vector<8x512xf32> to vector<8x128xf32>
    %cst_117 = arith.constant 5.000000e-01 : f32
    %301 = vector.broadcast %cst_117 : f32 to vector<8x128xf32>
    %302 = arith.mulf %301, %300 : vector<8x128xf32>
    %303 = math.tanh %302 : vector<8x128xf32>
    %cst_118 = arith.constant 5.000000e-01 : f32
    %304 = vector.broadcast %cst_118 : f32 to vector<8x128xf32>
    %305 = arith.mulf %304, %303 : vector<8x128xf32>
    %cst_119 = arith.constant 5.000000e-01 : f32
    %306 = vector.broadcast %cst_119 : f32 to vector<8x128xf32>
    %307 = arith.addf %305, %306 : vector<8x128xf32>
    %308 = vector.extract_strided_slice %291 {offsets = [0, 256], sizes = [8, 128], strides = [1, 1]} : vector<8x512xf32> to vector<8x128xf32>
    %309 = math.tanh %308 : vector<8x128xf32>
    %310 = vector.extract_strided_slice %291 {offsets = [0, 384], sizes = [8, 128], strides = [1, 1]} : vector<8x512xf32> to vector<8x128xf32>
    %cst_120 = arith.constant 5.000000e-01 : f32
    %311 = vector.broadcast %cst_120 : f32 to vector<8x128xf32>
    %312 = arith.mulf %311, %310 : vector<8x128xf32>
    %313 = math.tanh %312 : vector<8x128xf32>
    %cst_121 = arith.constant 5.000000e-01 : f32
    %314 = vector.broadcast %cst_121 : f32 to vector<8x128xf32>
    %315 = arith.mulf %314, %313 : vector<8x128xf32>
    %cst_122 = arith.constant 5.000000e-01 : f32
    %316 = vector.broadcast %cst_122 : f32 to vector<8x128xf32>
    %317 = arith.addf %315, %316 : vector<8x128xf32>
    %318 = arith.mulf %307, %242 : vector<8x128xf32>
    %319 = arith.mulf %299, %309 : vector<8x128xf32>
    %320 = arith.addf %318, %319 : vector<8x128xf32>
    %321 = math.tanh %320 : vector<8x128xf32>
    %322 = arith.mulf %317, %321 : vector<8x128xf32>
    %c4_i32 = arith.constant 4 : i32
    %323 = arith.index_cast %c4_i32 : i32 to index
    %c0_123 = arith.constant 0 : index
    %c0_124 = arith.constant 0 : index
    %324 = vector.load %arg2[%323, %c0_123, %c0_124] : memref<8x8x512xbf16, #tpu.memory_space<vmem>>, vector<1x8x512xbf16>
    %325 = vector.shape_cast %324 : vector<1x8x512xbf16> to vector<8x512xbf16>
    %326 = arith.extf %325 : vector<8x512xbf16> to vector<8x512xf32>
    %327 = arith.truncf %283 : vector<8x128xf32> to vector<8x128xbf16>
    %c0_125 = arith.constant 0 : index
    %c0_126 = arith.constant 0 : index
    %328 = vector.load %arg3[%c0_125, %c0_126] : memref<128x512xbf16, #tpu.memory_space<vmem>>, vector<128x512xbf16>
    %cst_127 = arith.constant dense<0.000000e+00> : vector<8x512xf32>
    %329 = tpu.matmul %327, %328, %cst_127 {dimension_numbers = #tpu.dot_dimension_numbers<[1], [0], [0], [1], [0, 0, 1, 1], [], []>} : vector<8x128xbf16>, vector<128x512xbf16>, vector<8x512xf32> -> vector<8x512xf32>
    %330 = arith.addf %326, %329 : vector<8x512xf32>
    %331 = vector.extract_strided_slice %330 {offsets = [0, 0], sizes = [8, 128], strides = [1, 1]} : vector<8x512xf32> to vector<8x128xf32>
    %cst_128 = arith.constant 5.000000e-01 : f32
    %332 = vector.broadcast %cst_128 : f32 to vector<8x128xf32>
    %333 = arith.mulf %332, %331 : vector<8x128xf32>
    %334 = math.tanh %333 : vector<8x128xf32>
    %cst_129 = arith.constant 5.000000e-01 : f32
    %335 = vector.broadcast %cst_129 : f32 to vector<8x128xf32>
    %336 = arith.mulf %335, %334 : vector<8x128xf32>
    %cst_130 = arith.constant 5.000000e-01 : f32
    %337 = vector.broadcast %cst_130 : f32 to vector<8x128xf32>
    %338 = arith.addf %336, %337 : vector<8x128xf32>
    %339 = vector.extract_strided_slice %330 {offsets = [0, 128], sizes = [8, 128], strides = [1, 1]} : vector<8x512xf32> to vector<8x128xf32>
    %cst_131 = arith.constant 5.000000e-01 : f32
    %340 = vector.broadcast %cst_131 : f32 to vector<8x128xf32>
    %341 = arith.mulf %340, %339 : vector<8x128xf32>
    %342 = math.tanh %341 : vector<8x128xf32>
    %cst_132 = arith.constant 5.000000e-01 : f32
    %343 = vector.broadcast %cst_132 : f32 to vector<8x128xf32>
    %344 = arith.mulf %343, %342 : vector<8x128xf32>
    %cst_133 = arith.constant 5.000000e-01 : f32
    %345 = vector.broadcast %cst_133 : f32 to vector<8x128xf32>
    %346 = arith.addf %344, %345 : vector<8x128xf32>
    %347 = vector.extract_strided_slice %330 {offsets = [0, 256], sizes = [8, 128], strides = [1, 1]} : vector<8x512xf32> to vector<8x128xf32>
    %348 = math.tanh %347 : vector<8x128xf32>
    %349 = vector.extract_strided_slice %330 {offsets = [0, 384], sizes = [8, 128], strides = [1, 1]} : vector<8x512xf32> to vector<8x128xf32>
    %cst_134 = arith.constant 5.000000e-01 : f32
    %350 = vector.broadcast %cst_134 : f32 to vector<8x128xf32>
    %351 = arith.mulf %350, %349 : vector<8x128xf32>
    %352 = math.tanh %351 : vector<8x128xf32>
    %cst_135 = arith.constant 5.000000e-01 : f32
    %353 = vector.broadcast %cst_135 : f32 to vector<8x128xf32>
    %354 = arith.mulf %353, %352 : vector<8x128xf32>
    %cst_136 = arith.constant 5.000000e-01 : f32
    %355 = vector.broadcast %cst_136 : f32 to vector<8x128xf32>
    %356 = arith.addf %354, %355 : vector<8x128xf32>
    %357 = arith.mulf %346, %281 : vector<8x128xf32>
    %358 = arith.mulf %338, %348 : vector<8x128xf32>
    %359 = arith.addf %357, %358 : vector<8x128xf32>
    %360 = math.tanh %359 : vector<8x128xf32>
    %361 = arith.mulf %356, %360 : vector<8x128xf32>
    %362 = arith.truncf %361 : vector<8x128xf32> to vector<8x128xbf16>
    %363 = arith.truncf %322 : vector<8x128xf32> to vector<8x128xbf16>
    %364 = tpu.concatenate %362, %363 in 1 : vector<8x128xbf16>, vector<8x128xbf16> -> vector<8x256xbf16>
    %c0_137 = arith.constant 0 : index
    %c0_138 = arith.constant 0 : index
    %365 = vector.load %arg4[%c0_137, %c0_138] : memref<256x512xbf16, #tpu.memory_space<vmem>>, vector<256x512xbf16>
    %cst_139 = arith.constant dense<0.000000e+00> : vector<8x512xf32>
    %366 = tpu.matmul %364, %365, %cst_139 {dimension_numbers = #tpu.dot_dimension_numbers<[1], [0], [0], [1], [0, 0, 1, 1], [], []>} : vector<8x256xbf16>, vector<256x512xbf16>, vector<8x512xf32> -> vector<8x512xf32>
    %c0_140 = arith.constant 0 : index
    %c0_141 = arith.constant 0 : index
    %367 = vector.load %arg5[%c0_140, %c0_141] : memref<1x512xf32, #tpu.memory_space<vmem>>, vector<1x512xf32>
    %368 = vector.broadcast %367 : vector<1x512xf32> to vector<8x512xf32>
    %369 = arith.addf %366, %368 : vector<8x512xf32>
    %370 = vector.extract_strided_slice %369 {offsets = [0, 0], sizes = [8, 128], strides = [1, 1]} : vector<8x512xf32> to vector<8x128xf32>
    %cst_142 = arith.constant 5.000000e-01 : f32
    %371 = vector.broadcast %cst_142 : f32 to vector<8x128xf32>
    %372 = arith.mulf %371, %370 : vector<8x128xf32>
    %373 = math.tanh %372 : vector<8x128xf32>
    %cst_143 = arith.constant 5.000000e-01 : f32
    %374 = vector.broadcast %cst_143 : f32 to vector<8x128xf32>
    %375 = arith.mulf %374, %373 : vector<8x128xf32>
    %cst_144 = arith.constant 5.000000e-01 : f32
    %376 = vector.broadcast %cst_144 : f32 to vector<8x128xf32>
    %377 = arith.addf %375, %376 : vector<8x128xf32>
    %378 = vector.extract_strided_slice %369 {offsets = [0, 128], sizes = [8, 128], strides = [1, 1]} : vector<8x512xf32> to vector<8x128xf32>
    %cst_145 = arith.constant 5.000000e-01 : f32
    %379 = vector.broadcast %cst_145 : f32 to vector<8x128xf32>
    %380 = arith.mulf %379, %378 : vector<8x128xf32>
    %381 = math.tanh %380 : vector<8x128xf32>
    %cst_146 = arith.constant 5.000000e-01 : f32
    %382 = vector.broadcast %cst_146 : f32 to vector<8x128xf32>
    %383 = arith.mulf %382, %381 : vector<8x128xf32>
    %cst_147 = arith.constant 5.000000e-01 : f32
    %384 = vector.broadcast %cst_147 : f32 to vector<8x128xf32>
    %385 = arith.addf %383, %384 : vector<8x128xf32>
    %386 = vector.extract_strided_slice %369 {offsets = [0, 256], sizes = [8, 128], strides = [1, 1]} : vector<8x512xf32> to vector<8x128xf32>
    %387 = math.tanh %386 : vector<8x128xf32>
    %388 = vector.extract_strided_slice %369 {offsets = [0, 384], sizes = [8, 128], strides = [1, 1]} : vector<8x512xf32> to vector<8x128xf32>
    %cst_148 = arith.constant 5.000000e-01 : f32
    %389 = vector.broadcast %cst_148 : f32 to vector<8x128xf32>
    %390 = arith.mulf %389, %388 : vector<8x128xf32>
    %391 = math.tanh %390 : vector<8x128xf32>
    %cst_149 = arith.constant 5.000000e-01 : f32
    %392 = vector.broadcast %cst_149 : f32 to vector<8x128xf32>
    %393 = arith.mulf %392, %391 : vector<8x128xf32>
    %cst_150 = arith.constant 5.000000e-01 : f32
    %394 = vector.broadcast %cst_150 : f32 to vector<8x128xf32>
    %395 = arith.addf %393, %394 : vector<8x128xf32>
    %396 = arith.mulf %385, %320 : vector<8x128xf32>
    %397 = arith.mulf %377, %387 : vector<8x128xf32>
    %398 = arith.addf %396, %397 : vector<8x128xf32>
    %399 = math.tanh %398 : vector<8x128xf32>
    %400 = arith.mulf %395, %399 : vector<8x128xf32>
    %c5_i32 = arith.constant 5 : i32
    %401 = arith.index_cast %c5_i32 : i32 to index
    %c0_151 = arith.constant 0 : index
    %c0_152 = arith.constant 0 : index
    %402 = vector.load %arg2[%401, %c0_151, %c0_152] : memref<8x8x512xbf16, #tpu.memory_space<vmem>>, vector<1x8x512xbf16>
    %403 = vector.shape_cast %402 : vector<1x8x512xbf16> to vector<8x512xbf16>
    %404 = arith.extf %403 : vector<8x512xbf16> to vector<8x512xf32>
    %405 = arith.truncf %361 : vector<8x128xf32> to vector<8x128xbf16>
    %c0_153 = arith.constant 0 : index
    %c0_154 = arith.constant 0 : index
    %406 = vector.load %arg3[%c0_153, %c0_154] : memref<128x512xbf16, #tpu.memory_space<vmem>>, vector<128x512xbf16>
    %cst_155 = arith.constant dense<0.000000e+00> : vector<8x512xf32>
    %407 = tpu.matmul %405, %406, %cst_155 {dimension_numbers = #tpu.dot_dimension_numbers<[1], [0], [0], [1], [0, 0, 1, 1], [], []>} : vector<8x128xbf16>, vector<128x512xbf16>, vector<8x512xf32> -> vector<8x512xf32>
    %408 = arith.addf %404, %407 : vector<8x512xf32>
    %409 = vector.extract_strided_slice %408 {offsets = [0, 0], sizes = [8, 128], strides = [1, 1]} : vector<8x512xf32> to vector<8x128xf32>
    %cst_156 = arith.constant 5.000000e-01 : f32
    %410 = vector.broadcast %cst_156 : f32 to vector<8x128xf32>
    %411 = arith.mulf %410, %409 : vector<8x128xf32>
    %412 = math.tanh %411 : vector<8x128xf32>
    %cst_157 = arith.constant 5.000000e-01 : f32
    %413 = vector.broadcast %cst_157 : f32 to vector<8x128xf32>
    %414 = arith.mulf %413, %412 : vector<8x128xf32>
    %cst_158 = arith.constant 5.000000e-01 : f32
    %415 = vector.broadcast %cst_158 : f32 to vector<8x128xf32>
    %416 = arith.addf %414, %415 : vector<8x128xf32>
    %417 = vector.extract_strided_slice %408 {offsets = [0, 128], sizes = [8, 128], strides = [1, 1]} : vector<8x512xf32> to vector<8x128xf32>
    %cst_159 = arith.constant 5.000000e-01 : f32
    %418 = vector.broadcast %cst_159 : f32 to vector<8x128xf32>
    %419 = arith.mulf %418, %417 : vector<8x128xf32>
    %420 = math.tanh %419 : vector<8x128xf32>
    %cst_160 = arith.constant 5.000000e-01 : f32
    %421 = vector.broadcast %cst_160 : f32 to vector<8x128xf32>
    %422 = arith.mulf %421, %420 : vector<8x128xf32>
    %cst_161 = arith.constant 5.000000e-01 : f32
    %423 = vector.broadcast %cst_161 : f32 to vector<8x128xf32>
    %424 = arith.addf %422, %423 : vector<8x128xf32>
    %425 = vector.extract_strided_slice %408 {offsets = [0, 256], sizes = [8, 128], strides = [1, 1]} : vector<8x512xf32> to vector<8x128xf32>
    %426 = math.tanh %425 : vector<8x128xf32>
    %427 = vector.extract_strided_slice %408 {offsets = [0, 384], sizes = [8, 128], strides = [1, 1]} : vector<8x512xf32> to vector<8x128xf32>
    %cst_162 = arith.constant 5.000000e-01 : f32
    %428 = vector.broadcast %cst_162 : f32 to vector<8x128xf32>
    %429 = arith.mulf %428, %427 : vector<8x128xf32>
    %430 = math.tanh %429 : vector<8x128xf32>
    %cst_163 = arith.constant 5.000000e-01 : f32
    %431 = vector.broadcast %cst_163 : f32 to vector<8x128xf32>
    %432 = arith.mulf %431, %430 : vector<8x128xf32>
    %cst_164 = arith.constant 5.000000e-01 : f32
    %433 = vector.broadcast %cst_164 : f32 to vector<8x128xf32>
    %434 = arith.addf %432, %433 : vector<8x128xf32>
    %435 = arith.mulf %424, %359 : vector<8x128xf32>
    %436 = arith.mulf %416, %426 : vector<8x128xf32>
    %437 = arith.addf %435, %436 : vector<8x128xf32>
    %438 = math.tanh %437 : vector<8x128xf32>
    %439 = arith.mulf %434, %438 : vector<8x128xf32>
    %440 = arith.truncf %439 : vector<8x128xf32> to vector<8x128xbf16>
    %441 = arith.truncf %400 : vector<8x128xf32> to vector<8x128xbf16>
    %442 = tpu.concatenate %440, %441 in 1 : vector<8x128xbf16>, vector<8x128xbf16> -> vector<8x256xbf16>
    %c0_165 = arith.constant 0 : index
    %c0_166 = arith.constant 0 : index
    %443 = vector.load %arg4[%c0_165, %c0_166] : memref<256x512xbf16, #tpu.memory_space<vmem>>, vector<256x512xbf16>
    %cst_167 = arith.constant dense<0.000000e+00> : vector<8x512xf32>
    %444 = tpu.matmul %442, %443, %cst_167 {dimension_numbers = #tpu.dot_dimension_numbers<[1], [0], [0], [1], [0, 0, 1, 1], [], []>} : vector<8x256xbf16>, vector<256x512xbf16>, vector<8x512xf32> -> vector<8x512xf32>
    %c0_168 = arith.constant 0 : index
    %c0_169 = arith.constant 0 : index
    %445 = vector.load %arg5[%c0_168, %c0_169] : memref<1x512xf32, #tpu.memory_space<vmem>>, vector<1x512xf32>
    %446 = vector.broadcast %445 : vector<1x512xf32> to vector<8x512xf32>
    %447 = arith.addf %444, %446 : vector<8x512xf32>
    %448 = vector.extract_strided_slice %447 {offsets = [0, 0], sizes = [8, 128], strides = [1, 1]} : vector<8x512xf32> to vector<8x128xf32>
    %cst_170 = arith.constant 5.000000e-01 : f32
    %449 = vector.broadcast %cst_170 : f32 to vector<8x128xf32>
    %450 = arith.mulf %449, %448 : vector<8x128xf32>
    %451 = math.tanh %450 : vector<8x128xf32>
    %cst_171 = arith.constant 5.000000e-01 : f32
    %452 = vector.broadcast %cst_171 : f32 to vector<8x128xf32>
    %453 = arith.mulf %452, %451 : vector<8x128xf32>
    %cst_172 = arith.constant 5.000000e-01 : f32
    %454 = vector.broadcast %cst_172 : f32 to vector<8x128xf32>
    %455 = arith.addf %453, %454 : vector<8x128xf32>
    %456 = vector.extract_strided_slice %447 {offsets = [0, 128], sizes = [8, 128], strides = [1, 1]} : vector<8x512xf32> to vector<8x128xf32>
    %cst_173 = arith.constant 5.000000e-01 : f32
    %457 = vector.broadcast %cst_173 : f32 to vector<8x128xf32>
    %458 = arith.mulf %457, %456 : vector<8x128xf32>
    %459 = math.tanh %458 : vector<8x128xf32>
    %cst_174 = arith.constant 5.000000e-01 : f32
    %460 = vector.broadcast %cst_174 : f32 to vector<8x128xf32>
    %461 = arith.mulf %460, %459 : vector<8x128xf32>
    %cst_175 = arith.constant 5.000000e-01 : f32
    %462 = vector.broadcast %cst_175 : f32 to vector<8x128xf32>
    %463 = arith.addf %461, %462 : vector<8x128xf32>
    %464 = vector.extract_strided_slice %447 {offsets = [0, 256], sizes = [8, 128], strides = [1, 1]} : vector<8x512xf32> to vector<8x128xf32>
    %465 = math.tanh %464 : vector<8x128xf32>
    %466 = vector.extract_strided_slice %447 {offsets = [0, 384], sizes = [8, 128], strides = [1, 1]} : vector<8x512xf32> to vector<8x128xf32>
    %cst_176 = arith.constant 5.000000e-01 : f32
    %467 = vector.broadcast %cst_176 : f32 to vector<8x128xf32>
    %468 = arith.mulf %467, %466 : vector<8x128xf32>
    %469 = math.tanh %468 : vector<8x128xf32>
    %cst_177 = arith.constant 5.000000e-01 : f32
    %470 = vector.broadcast %cst_177 : f32 to vector<8x128xf32>
    %471 = arith.mulf %470, %469 : vector<8x128xf32>
    %cst_178 = arith.constant 5.000000e-01 : f32
    %472 = vector.broadcast %cst_178 : f32 to vector<8x128xf32>
    %473 = arith.addf %471, %472 : vector<8x128xf32>
    %474 = arith.mulf %463, %398 : vector<8x128xf32>
    %475 = arith.mulf %455, %465 : vector<8x128xf32>
    %476 = arith.addf %474, %475 : vector<8x128xf32>
    %477 = math.tanh %476 : vector<8x128xf32>
    %478 = arith.mulf %473, %477 : vector<8x128xf32>
    %c6_i32 = arith.constant 6 : i32
    %479 = arith.index_cast %c6_i32 : i32 to index
    %c0_179 = arith.constant 0 : index
    %c0_180 = arith.constant 0 : index
    %480 = vector.load %arg2[%479, %c0_179, %c0_180] : memref<8x8x512xbf16, #tpu.memory_space<vmem>>, vector<1x8x512xbf16>
    %481 = vector.shape_cast %480 : vector<1x8x512xbf16> to vector<8x512xbf16>
    %482 = arith.extf %481 : vector<8x512xbf16> to vector<8x512xf32>
    %483 = arith.truncf %439 : vector<8x128xf32> to vector<8x128xbf16>
    %c0_181 = arith.constant 0 : index
    %c0_182 = arith.constant 0 : index
    %484 = vector.load %arg3[%c0_181, %c0_182] : memref<128x512xbf16, #tpu.memory_space<vmem>>, vector<128x512xbf16>
    %cst_183 = arith.constant dense<0.000000e+00> : vector<8x512xf32>
    %485 = tpu.matmul %483, %484, %cst_183 {dimension_numbers = #tpu.dot_dimension_numbers<[1], [0], [0], [1], [0, 0, 1, 1], [], []>} : vector<8x128xbf16>, vector<128x512xbf16>, vector<8x512xf32> -> vector<8x512xf32>
    %486 = arith.addf %482, %485 : vector<8x512xf32>
    %487 = vector.extract_strided_slice %486 {offsets = [0, 0], sizes = [8, 128], strides = [1, 1]} : vector<8x512xf32> to vector<8x128xf32>
    %cst_184 = arith.constant 5.000000e-01 : f32
    %488 = vector.broadcast %cst_184 : f32 to vector<8x128xf32>
    %489 = arith.mulf %488, %487 : vector<8x128xf32>
    %490 = math.tanh %489 : vector<8x128xf32>
    %cst_185 = arith.constant 5.000000e-01 : f32
    %491 = vector.broadcast %cst_185 : f32 to vector<8x128xf32>
    %492 = arith.mulf %491, %490 : vector<8x128xf32>
    %cst_186 = arith.constant 5.000000e-01 : f32
    %493 = vector.broadcast %cst_186 : f32 to vector<8x128xf32>
    %494 = arith.addf %492, %493 : vector<8x128xf32>
    %495 = vector.extract_strided_slice %486 {offsets = [0, 128], sizes = [8, 128], strides = [1, 1]} : vector<8x512xf32> to vector<8x128xf32>
    %cst_187 = arith.constant 5.000000e-01 : f32
    %496 = vector.broadcast %cst_187 : f32 to vector<8x128xf32>
    %497 = arith.mulf %496, %495 : vector<8x128xf32>
    %498 = math.tanh %497 : vector<8x128xf32>
    %cst_188 = arith.constant 5.000000e-01 : f32
    %499 = vector.broadcast %cst_188 : f32 to vector<8x128xf32>
    %500 = arith.mulf %499, %498 : vector<8x128xf32>
    %cst_189 = arith.constant 5.000000e-01 : f32
    %501 = vector.broadcast %cst_189 : f32 to vector<8x128xf32>
    %502 = arith.addf %500, %501 : vector<8x128xf32>
    %503 = vector.extract_strided_slice %486 {offsets = [0, 256], sizes = [8, 128], strides = [1, 1]} : vector<8x512xf32> to vector<8x128xf32>
    %504 = math.tanh %503 : vector<8x128xf32>
    %505 = vector.extract_strided_slice %486 {offsets = [0, 384], sizes = [8, 128], strides = [1, 1]} : vector<8x512xf32> to vector<8x128xf32>
    %cst_190 = arith.constant 5.000000e-01 : f32
    %506 = vector.broadcast %cst_190 : f32 to vector<8x128xf32>
    %507 = arith.mulf %506, %505 : vector<8x128xf32>
    %508 = math.tanh %507 : vector<8x128xf32>
    %cst_191 = arith.constant 5.000000e-01 : f32
    %509 = vector.broadcast %cst_191 : f32 to vector<8x128xf32>
    %510 = arith.mulf %509, %508 : vector<8x128xf32>
    %cst_192 = arith.constant 5.000000e-01 : f32
    %511 = vector.broadcast %cst_192 : f32 to vector<8x128xf32>
    %512 = arith.addf %510, %511 : vector<8x128xf32>
    %513 = arith.mulf %502, %437 : vector<8x128xf32>
    %514 = arith.mulf %494, %504 : vector<8x128xf32>
    %515 = arith.addf %513, %514 : vector<8x128xf32>
    %516 = math.tanh %515 : vector<8x128xf32>
    %517 = arith.mulf %512, %516 : vector<8x128xf32>
    %518 = arith.truncf %517 : vector<8x128xf32> to vector<8x128xbf16>
    %519 = arith.truncf %478 : vector<8x128xf32> to vector<8x128xbf16>
    %520 = tpu.concatenate %518, %519 in 1 : vector<8x128xbf16>, vector<8x128xbf16> -> vector<8x256xbf16>
    %c0_193 = arith.constant 0 : index
    %c0_194 = arith.constant 0 : index
    %521 = vector.load %arg4[%c0_193, %c0_194] : memref<256x512xbf16, #tpu.memory_space<vmem>>, vector<256x512xbf16>
    %cst_195 = arith.constant dense<0.000000e+00> : vector<8x512xf32>
    %522 = tpu.matmul %520, %521, %cst_195 {dimension_numbers = #tpu.dot_dimension_numbers<[1], [0], [0], [1], [0, 0, 1, 1], [], []>} : vector<8x256xbf16>, vector<256x512xbf16>, vector<8x512xf32> -> vector<8x512xf32>
    %c0_196 = arith.constant 0 : index
    %c0_197 = arith.constant 0 : index
    %523 = vector.load %arg5[%c0_196, %c0_197] : memref<1x512xf32, #tpu.memory_space<vmem>>, vector<1x512xf32>
    %524 = vector.broadcast %523 : vector<1x512xf32> to vector<8x512xf32>
    %525 = arith.addf %522, %524 : vector<8x512xf32>
    %526 = vector.extract_strided_slice %525 {offsets = [0, 0], sizes = [8, 128], strides = [1, 1]} : vector<8x512xf32> to vector<8x128xf32>
    %cst_198 = arith.constant 5.000000e-01 : f32
    %527 = vector.broadcast %cst_198 : f32 to vector<8x128xf32>
    %528 = arith.mulf %527, %526 : vector<8x128xf32>
    %529 = math.tanh %528 : vector<8x128xf32>
    %cst_199 = arith.constant 5.000000e-01 : f32
    %530 = vector.broadcast %cst_199 : f32 to vector<8x128xf32>
    %531 = arith.mulf %530, %529 : vector<8x128xf32>
    %cst_200 = arith.constant 5.000000e-01 : f32
    %532 = vector.broadcast %cst_200 : f32 to vector<8x128xf32>
    %533 = arith.addf %531, %532 : vector<8x128xf32>
    %534 = vector.extract_strided_slice %525 {offsets = [0, 128], sizes = [8, 128], strides = [1, 1]} : vector<8x512xf32> to vector<8x128xf32>
    %cst_201 = arith.constant 5.000000e-01 : f32
    %535 = vector.broadcast %cst_201 : f32 to vector<8x128xf32>
    %536 = arith.mulf %535, %534 : vector<8x128xf32>
    %537 = math.tanh %536 : vector<8x128xf32>
    %cst_202 = arith.constant 5.000000e-01 : f32
    %538 = vector.broadcast %cst_202 : f32 to vector<8x128xf32>
    %539 = arith.mulf %538, %537 : vector<8x128xf32>
    %cst_203 = arith.constant 5.000000e-01 : f32
    %540 = vector.broadcast %cst_203 : f32 to vector<8x128xf32>
    %541 = arith.addf %539, %540 : vector<8x128xf32>
    %542 = vector.extract_strided_slice %525 {offsets = [0, 256], sizes = [8, 128], strides = [1, 1]} : vector<8x512xf32> to vector<8x128xf32>
    %543 = math.tanh %542 : vector<8x128xf32>
    %544 = vector.extract_strided_slice %525 {offsets = [0, 384], sizes = [8, 128], strides = [1, 1]} : vector<8x512xf32> to vector<8x128xf32>
    %cst_204 = arith.constant 5.000000e-01 : f32
    %545 = vector.broadcast %cst_204 : f32 to vector<8x128xf32>
    %546 = arith.mulf %545, %544 : vector<8x128xf32>
    %547 = math.tanh %546 : vector<8x128xf32>
    %cst_205 = arith.constant 5.000000e-01 : f32
    %548 = vector.broadcast %cst_205 : f32 to vector<8x128xf32>
    %549 = arith.mulf %548, %547 : vector<8x128xf32>
    %cst_206 = arith.constant 5.000000e-01 : f32
    %550 = vector.broadcast %cst_206 : f32 to vector<8x128xf32>
    %551 = arith.addf %549, %550 : vector<8x128xf32>
    %552 = arith.mulf %541, %476 : vector<8x128xf32>
    %553 = arith.mulf %533, %543 : vector<8x128xf32>
    %554 = arith.addf %552, %553 : vector<8x128xf32>
    %555 = math.tanh %554 : vector<8x128xf32>
    %556 = arith.mulf %551, %555 : vector<8x128xf32>
    %c7_i32 = arith.constant 7 : i32
    %557 = arith.index_cast %c7_i32 : i32 to index
    %c0_207 = arith.constant 0 : index
    %c0_208 = arith.constant 0 : index
    %558 = vector.load %arg2[%557, %c0_207, %c0_208] : memref<8x8x512xbf16, #tpu.memory_space<vmem>>, vector<1x8x512xbf16>
    %559 = vector.shape_cast %558 : vector<1x8x512xbf16> to vector<8x512xbf16>
    %560 = arith.extf %559 : vector<8x512xbf16> to vector<8x512xf32>
    %561 = arith.truncf %517 : vector<8x128xf32> to vector<8x128xbf16>
    %c0_209 = arith.constant 0 : index
    %c0_210 = arith.constant 0 : index
    %562 = vector.load %arg3[%c0_209, %c0_210] : memref<128x512xbf16, #tpu.memory_space<vmem>>, vector<128x512xbf16>
    %cst_211 = arith.constant dense<0.000000e+00> : vector<8x512xf32>
    %563 = tpu.matmul %561, %562, %cst_211 {dimension_numbers = #tpu.dot_dimension_numbers<[1], [0], [0], [1], [0, 0, 1, 1], [], []>} : vector<8x128xbf16>, vector<128x512xbf16>, vector<8x512xf32> -> vector<8x512xf32>
    %564 = arith.addf %560, %563 : vector<8x512xf32>
    %565 = vector.extract_strided_slice %564 {offsets = [0, 0], sizes = [8, 128], strides = [1, 1]} : vector<8x512xf32> to vector<8x128xf32>
    %cst_212 = arith.constant 5.000000e-01 : f32
    %566 = vector.broadcast %cst_212 : f32 to vector<8x128xf32>
    %567 = arith.mulf %566, %565 : vector<8x128xf32>
    %568 = math.tanh %567 : vector<8x128xf32>
    %cst_213 = arith.constant 5.000000e-01 : f32
    %569 = vector.broadcast %cst_213 : f32 to vector<8x128xf32>
    %570 = arith.mulf %569, %568 : vector<8x128xf32>
    %cst_214 = arith.constant 5.000000e-01 : f32
    %571 = vector.broadcast %cst_214 : f32 to vector<8x128xf32>
    %572 = arith.addf %570, %571 : vector<8x128xf32>
    %573 = vector.extract_strided_slice %564 {offsets = [0, 128], sizes = [8, 128], strides = [1, 1]} : vector<8x512xf32> to vector<8x128xf32>
    %cst_215 = arith.constant 5.000000e-01 : f32
    %574 = vector.broadcast %cst_215 : f32 to vector<8x128xf32>
    %575 = arith.mulf %574, %573 : vector<8x128xf32>
    %576 = math.tanh %575 : vector<8x128xf32>
    %cst_216 = arith.constant 5.000000e-01 : f32
    %577 = vector.broadcast %cst_216 : f32 to vector<8x128xf32>
    %578 = arith.mulf %577, %576 : vector<8x128xf32>
    %cst_217 = arith.constant 5.000000e-01 : f32
    %579 = vector.broadcast %cst_217 : f32 to vector<8x128xf32>
    %580 = arith.addf %578, %579 : vector<8x128xf32>
    %581 = vector.extract_strided_slice %564 {offsets = [0, 256], sizes = [8, 128], strides = [1, 1]} : vector<8x512xf32> to vector<8x128xf32>
    %582 = math.tanh %581 : vector<8x128xf32>
    %583 = vector.extract_strided_slice %564 {offsets = [0, 384], sizes = [8, 128], strides = [1, 1]} : vector<8x512xf32> to vector<8x128xf32>
    %cst_218 = arith.constant 5.000000e-01 : f32
    %584 = vector.broadcast %cst_218 : f32 to vector<8x128xf32>
    %585 = arith.mulf %584, %583 : vector<8x128xf32>
    %586 = math.tanh %585 : vector<8x128xf32>
    %cst_219 = arith.constant 5.000000e-01 : f32
    %587 = vector.broadcast %cst_219 : f32 to vector<8x128xf32>
    %588 = arith.mulf %587, %586 : vector<8x128xf32>
    %cst_220 = arith.constant 5.000000e-01 : f32
    %589 = vector.broadcast %cst_220 : f32 to vector<8x128xf32>
    %590 = arith.addf %588, %589 : vector<8x128xf32>
    %591 = arith.mulf %580, %515 : vector<8x128xf32>
    %592 = arith.mulf %572, %582 : vector<8x128xf32>
    %593 = arith.addf %591, %592 : vector<8x128xf32>
    %594 = math.tanh %593 : vector<8x128xf32>
    %595 = arith.mulf %590, %594 : vector<8x128xf32>
    %596 = arith.truncf %595 : vector<8x128xf32> to vector<8x128xbf16>
    %597 = arith.truncf %556 : vector<8x128xf32> to vector<8x128xbf16>
    %598 = tpu.concatenate %596, %597 in 1 : vector<8x128xbf16>, vector<8x128xbf16> -> vector<8x256xbf16>
    %c0_221 = arith.constant 0 : index
    %c0_222 = arith.constant 0 : index
    %599 = vector.load %arg4[%c0_221, %c0_222] : memref<256x512xbf16, #tpu.memory_space<vmem>>, vector<256x512xbf16>
    %cst_223 = arith.constant dense<0.000000e+00> : vector<8x512xf32>
    %600 = tpu.matmul %598, %599, %cst_223 {dimension_numbers = #tpu.dot_dimension_numbers<[1], [0], [0], [1], [0, 0, 1, 1], [], []>} : vector<8x256xbf16>, vector<256x512xbf16>, vector<8x512xf32> -> vector<8x512xf32>
    %c0_224 = arith.constant 0 : index
    %c0_225 = arith.constant 0 : index
    %601 = vector.load %arg5[%c0_224, %c0_225] : memref<1x512xf32, #tpu.memory_space<vmem>>, vector<1x512xf32>
    %602 = vector.broadcast %601 : vector<1x512xf32> to vector<8x512xf32>
    %603 = arith.addf %600, %602 : vector<8x512xf32>
    %604 = vector.extract_strided_slice %603 {offsets = [0, 0], sizes = [8, 128], strides = [1, 1]} : vector<8x512xf32> to vector<8x128xf32>
    %cst_226 = arith.constant 5.000000e-01 : f32
    %605 = vector.broadcast %cst_226 : f32 to vector<8x128xf32>
    %606 = arith.mulf %605, %604 : vector<8x128xf32>
    %607 = math.tanh %606 : vector<8x128xf32>
    %cst_227 = arith.constant 5.000000e-01 : f32
    %608 = vector.broadcast %cst_227 : f32 to vector<8x128xf32>
    %609 = arith.mulf %608, %607 : vector<8x128xf32>
    %cst_228 = arith.constant 5.000000e-01 : f32
    %610 = vector.broadcast %cst_228 : f32 to vector<8x128xf32>
    %611 = arith.addf %609, %610 : vector<8x128xf32>
    %612 = vector.extract_strided_slice %603 {offsets = [0, 128], sizes = [8, 128], strides = [1, 1]} : vector<8x512xf32> to vector<8x128xf32>
    %cst_229 = arith.constant 5.000000e-01 : f32
    %613 = vector.broadcast %cst_229 : f32 to vector<8x128xf32>
    %614 = arith.mulf %613, %612 : vector<8x128xf32>
    %615 = math.tanh %614 : vector<8x128xf32>
    %cst_230 = arith.constant 5.000000e-01 : f32
    %616 = vector.broadcast %cst_230 : f32 to vector<8x128xf32>
    %617 = arith.mulf %616, %615 : vector<8x128xf32>
    %cst_231 = arith.constant 5.000000e-01 : f32
    %618 = vector.broadcast %cst_231 : f32 to vector<8x128xf32>
    %619 = arith.addf %617, %618 : vector<8x128xf32>
    %620 = vector.extract_strided_slice %603 {offsets = [0, 256], sizes = [8, 128], strides = [1, 1]} : vector<8x512xf32> to vector<8x128xf32>
    %621 = math.tanh %620 : vector<8x128xf32>
    %622 = vector.extract_strided_slice %603 {offsets = [0, 384], sizes = [8, 128], strides = [1, 1]} : vector<8x512xf32> to vector<8x128xf32>
    %cst_232 = arith.constant 5.000000e-01 : f32
    %623 = vector.broadcast %cst_232 : f32 to vector<8x128xf32>
    %624 = arith.mulf %623, %622 : vector<8x128xf32>
    %625 = math.tanh %624 : vector<8x128xf32>
    %cst_233 = arith.constant 5.000000e-01 : f32
    %626 = vector.broadcast %cst_233 : f32 to vector<8x128xf32>
    %627 = arith.mulf %626, %625 : vector<8x128xf32>
    %cst_234 = arith.constant 5.000000e-01 : f32
    %628 = vector.broadcast %cst_234 : f32 to vector<8x128xf32>
    %629 = arith.addf %627, %628 : vector<8x128xf32>
    %630 = arith.mulf %619, %554 : vector<8x128xf32>
    %631 = arith.mulf %611, %621 : vector<8x128xf32>
    %632 = arith.addf %630, %631 : vector<8x128xf32>
    %633 = math.tanh %632 : vector<8x128xf32>
    %634 = arith.mulf %629, %633 : vector<8x128xf32>
    %c8_i32 = arith.constant 8 : i32
    %c0_235 = arith.constant 0 : index
    %c0_236 = arith.constant 0 : index
    %c0_237 = arith.constant 0 : index
    %635 = vector.load %arg9[%c0_235, %c0_236, %c0_237] : memref<2x8x128xf32, #tpu.memory_space<vmem>>, vector<1x8x128xf32>
    %636 = vector.shape_cast %635 : vector<1x8x128xf32> to vector<8x128xf32>
    %637 = vector.shape_cast %595 : vector<8x128xf32> to vector<1x8x128xf32>
    tpu.vector_store %arg9[%c0_235, %c0_236, %c0_237], %637 {strides = array<i32>} : memref<2x8x128xf32, #tpu.memory_space<vmem>>, vector<1x8x128xf32>,
    %c0_238 = arith.constant 0 : index
    %c0_239 = arith.constant 0 : index
    %c0_240 = arith.constant 0 : index
    %638 = vector.load %arg10[%c0_238, %c0_239, %c0_240] : memref<2x8x128xf32, #tpu.memory_space<vmem>>, vector<1x8x128xf32>
    %639 = vector.shape_cast %638 : vector<1x8x128xf32> to vector<8x128xf32>
    %640 = vector.shape_cast %593 : vector<8x128xf32> to vector<1x8x128xf32>
    tpu.vector_store %arg10[%c0_238, %c0_239, %c0_240], %640 {strides = array<i32>} : memref<2x8x128xf32, #tpu.memory_space<vmem>>, vector<1x8x128xf32>,
    %c1_241 = arith.constant 1 : index
    %c0_242 = arith.constant 0 : index
    %c0_243 = arith.constant 0 : index
    %641 = vector.load %arg9[%c1_241, %c0_242, %c0_243] : memref<2x8x128xf32, #tpu.memory_space<vmem>>, vector<1x8x128xf32>
    %642 = vector.shape_cast %641 : vector<1x8x128xf32> to vector<8x128xf32>
    %643 = vector.shape_cast %634 : vector<8x128xf32> to vector<1x8x128xf32>
    tpu.vector_store %arg9[%c1_241, %c0_242, %c0_243], %643 {strides = array<i32>} : memref<2x8x128xf32, #tpu.memory_space<vmem>>, vector<1x8x128xf32>,
    %c1_244 = arith.constant 1 : index
    %c0_245 = arith.constant 0 : index
    %c0_246 = arith.constant 0 : index
    %644 = vector.load %arg10[%c1_244, %c0_245, %c0_246] : memref<2x8x128xf32, #tpu.memory_space<vmem>>, vector<1x8x128xf32>
    %645 = vector.shape_cast %644 : vector<1x8x128xf32> to vector<8x128xf32>
    %646 = vector.shape_cast %632 : vector<8x128xf32> to vector<1x8x128xf32>
    tpu.vector_store %arg10[%c1_244, %c0_245, %c0_246], %646 {strides = array<i32>} : memref<2x8x128xf32, #tpu.memory_space<vmem>>, vector<1x8x128xf32>,
    %c0_i32_247 = arith.constant 0 : i32
    %647 = arith.cmpi eq, %arg1, %c0_i32_247 : i32
    %648 = arith.extui %647 : i1 to i32
    %c0_i32_248 = arith.constant 0 : i32
    %649 = arith.cmpi ne, %648, %c0_i32_248 : i32
    scf.if %649 {
      %650 = arith.truncf %634 : vector<8x128xf32> to vector<8x128xbf16>
      %c0_249 = arith.constant 0 : index
      %c0_250 = arith.constant 0 : index
      %651 = vector.load %arg6[%c0_249, %c0_250] : memref<128x128xbf16, #tpu.memory_space<vmem>>, vector<128x128xbf16>
      %cst_251 = arith.constant dense<0.000000e+00> : vector<8x128xf32>
      %652 = tpu.matmul %650, %651, %cst_251 {dimension_numbers = #tpu.dot_dimension_numbers<[1], [0], [0], [1], [0, 0, 1, 1], [], []>} : vector<8x128xbf16>, vector<128x128xbf16>, vector<8x128xf32> -> vector<8x128xf32>
      %c0_252 = arith.constant 0 : index
      %c0_253 = arith.constant 0 : index
      %653 = vector.load %arg7[%c0_252, %c0_253] : memref<1x128xf32, #tpu.memory_space<vmem>>, vector<1x128xf32>
      %654 = vector.broadcast %653 : vector<1x128xf32> to vector<8x128xf32>
      %655 = arith.addf %652, %654 : vector<8x128xf32>
      %c0_254 = arith.constant 0 : index
      %c0_255 = arith.constant 0 : index
      %656 = vector.load %arg8[%c0_254, %c0_255] : memref<8x128xf32, #tpu.memory_space<vmem>>, vector<8x128xf32>
      tpu.vector_store %arg8[%c0_254, %c0_255], %655 {strides = array<i32>} : memref<8x128xf32, #tpu.memory_space<vmem>>, vector<8x128xf32>,
    } else {
    }
    return
  }
  func.func @transform_0(%arg0: i32, %arg1: i32) -> (i32, i32, i32) {
    %c0_i32 = arith.constant 0 : i32
    %c0_i32_0 = arith.constant 0 : i32
    return %arg1, %arg0, %c0_i32 : i32, i32, i32
  }
  func.func @transform_1(%arg0: i32, %arg1: i32) -> (i32, i32) {
    %c0_i32 = arith.constant 0 : i32
    %c0_i32_0 = arith.constant 0 : i32
    %c0_i32_1 = arith.constant 0 : i32
    return %c0_i32, %c0_i32_0 : i32, i32
  }
  func.func @transform_2(%arg0: i32, %arg1: i32) -> (i32, i32) {
    %c0_i32 = arith.constant 0 : i32
    %c0_i32_0 = arith.constant 0 : i32
    %c0_i32_1 = arith.constant 0 : i32
    return %c0_i32, %c0_i32_0 : i32, i32
  }
  func.func @transform_3(%arg0: i32, %arg1: i32) -> (i32, i32) {
    %c0_i32 = arith.constant 0 : i32
    %c0_i32_0 = arith.constant 0 : i32
    %c0_i32_1 = arith.constant 0 : i32
    return %c0_i32, %c0_i32_0 : i32, i32
  }
  func.func @transform_4(%arg0: i32, %arg1: i32) -> (i32, i32) {
    %c0_i32 = arith.constant 0 : i32
    %c0_i32_0 = arith.constant 0 : i32
    %c0_i32_1 = arith.constant 0 : i32
    return %c0_i32, %c0_i32_0 : i32, i32
  }
  func.func @transform_5(%arg0: i32, %arg1: i32) -> (i32, i32) {
    %c0_i32 = arith.constant 0 : i32
    %c0_i32_0 = arith.constant 0 : i32
    %c0_i32_1 = arith.constant 0 : i32
    return %c0_i32, %c0_i32_0 : i32, i32
  }
  func.func @transform_6(%arg0: i32, %arg1: i32) -> (i32, i32) {
    %c0_i32 = arith.constant 0 : i32
    %c0_i32_0 = arith.constant 0 : i32
    return %arg0, %c0_i32 : i32, i32
  }
}

</mosaic_0001>

<llo_original>
// kernel: tpu_custom_call.1
$region0: #{tpu_custom_call.1}
  #allocation0 [shape = 'u32[]', space=smem, size = 0x4, offset = 0x4, fixed_abs, tag = 'smem constant byte address 0x4 - core index']
  #allocation1 [shape = 'u32[144,128]{1,0:T(1,128)}', space=vmem, size = 0x12000, scoped, tag = 'internal scratch']
  #allocation2 [shape = 'f32[2,8,128]{2,1,0:T(8,128)}', space=vmem, size = 0x2000, scoped, tag = 'scratch operand']
  #allocation3 [shape = 'f32[2,8,128]{2,1,0:T(8,128)}', space=vmem, size = 0x2000, scoped, tag = 'scratch operand']
  %s0 = inlined_call_operand.hbm [shape: bf16[8,8,512], index: 0, kind: input, shape index: {}]
  %s1 = inlined_call_operand.hbm [shape: bf16[128,512], index: 1, kind: input, shape index: {}]
  %s2 = inlined_call_operand.hbm [shape: bf16[256,512], index: 2, kind: input, shape index: {}]
  %s3 = inlined_call_operand.vmem [shape: f32[1,512], index: 3, kind: input, shape index: {}]
  %s4 = inlined_call_operand.hbm [shape: bf16[128,128], index: 4, kind: input, shape index: {}]
  %s5 = inlined_call_operand.vmem [shape: f32[1,128], index: 5, kind: input, shape index: {}]
  %s6 = inlined_call_operand.hbm [shape: f32[8,128], index: 6, kind: output, shape index: {}]
  %s7 = sld [smem:[#allocation0]]
  $region58: #{tpu_custom_call.1} parent=0
    _
  %s9 = ssub.s32 1, %s7
  %s10 = scalar_select 0, %s9, %s7
  $region1: #{tpu_custom_call.1} parent=0
    #allocation4 [shape = 'u8[65536]{0}', space=vmem, size = 0x10000, scoped, tag = 'input window, operand 0, single buffered']
    #allocation5 [shape = 's32[1]{0}', space=sflag, size = 0x4, scoped, tag = 'scoped memory for tpu_custom_call.1']
    #allocation6 [shape = 's32[1]{0}', space=sflag, size = 0x4, scoped, tag = 'scoped memory for tpu_custom_call.1']
    #allocation7 [shape = 'u8[131072]{0}', space=vmem, size = 0x20000, scoped, tag = 'input window, operand 1, single buffered']
    #allocation8 [shape = 's32[1]{0}', space=sflag, size = 0x4, scoped, tag = 'scoped memory for tpu_custom_call.1']
    #allocation9 [shape = 'u8[262144]{0}', space=vmem, size = 0x40000, scoped, tag = 'input window, operand 2, single buffered']
    #allocation10 [shape = 'u8[32768]{0}', space=vmem, size = 0x8000, scoped, tag = 'input window, operand 4, single buffered']
    #allocation11 [shape = 's32[1]{0}', space=sflag, size = 0x4, scoped, tag = 'scoped memory for tpu_custom_call.1']
    #allocation12 [shape = 'u8[4096]{0}', space=vmem, size = 0x1000, scoped, tag = 'output window, operand 0, single buffered']
    %11 = vsyncpa [#allocation5], 0
    %12 = vsyncpa [#allocation8], 0
    %13 = vsyncpa [#allocation11], 0
    %14 = vsyncpa [#allocation6], 0
    // Predicated region
    $region2: #{tpu_custom_call.1} parent=1 // pred_check
      _
    $region3: #{tpu_custom_call.1} parent=1 // pred_check_branch
      %16 = sbr.rel (0) target = $region5
    $region4: #{tpu_custom_call.1} parent=1 // pred_region
      %s18 = ssub.s32 2048, 2048
      %19 = vsyncadd [#allocation5], %s18
      %s20 = sshll.u32 [#allocation4], 4
      %s21 = int_to_ptr.vmem [resolvable:$true] %s20
      %26 = dma.hbm_to_vmem [thread:$0]  %s0, 2048, %s21, [#allocation5], 256, 256, 16
    $region5: #{tpu_custom_call.1} parent=1 // pred_fallthru
      _
    // Predicated region
    $region6: #{tpu_custom_call.1} parent=1 // pred_check
      _
    $region7: #{tpu_custom_call.1} parent=1 // pred_check_branch
      %28 = sbr.rel (0) target = $region9
    $region8: #{tpu_custom_call.1} parent=1 // pred_region
      %s30 = ssub.s32 4096, 4096
      %31 = vsyncadd [#allocation8], %s30
      %s32 = sshll.u32 [#allocation7], 4
      %s33 = int_to_ptr.vmem [resolvable:$true] %s32
      %38 = dma.hbm_to_vmem [thread:$0]  %s1, 4096, %s33, [#allocation8], 256, 256, 16
    $region9: #{tpu_custom_call.1} parent=1 // pred_fallthru
      _
    // Predicated region
    $region10: #{tpu_custom_call.1} parent=1 // pred_check
      _
    $region11: #{tpu_custom_call.1} parent=1 // pred_check_branch
      %40 = sbr.rel (0) target = $region13
    $region12: #{tpu_custom_call.1} parent=1 // pred_region
      %s42 = ssub.s32 8192, 8192
      %43 = vsyncadd [#allocation8], %s42
      %s44 = sshll.u32 [#allocation9], 4
      %s45 = int_to_ptr.vmem [resolvable:$true] %s44
      %50 = dma.hbm_to_vmem [thread:$0]  %s2, 8192, %s45, [#allocation8], 256, 256, 16
    $region13: #{tpu_custom_call.1} parent=1 // pred_fallthru
      _
    // Predicated region
    $region14: #{tpu_custom_call.1} parent=1 // pred_check
      _
    $region15: #{tpu_custom_call.1} parent=1 // pred_check_branch
      %52 = sbr.rel (0) target = $region17
    $region16: #{tpu_custom_call.1} parent=1 // pred_region
      _
    $region17: #{tpu_custom_call.1} parent=1 // pred_fallthru
      _
    // Predicated region
    $region18: #{tpu_custom_call.1} parent=1 // pred_check
      _
    $region19: #{tpu_custom_call.1} parent=1 // pred_check_branch
      %54 = sbr.rel (0) target = $region21
    $region20: #{tpu_custom_call.1} parent=1 // pred_region
      %s56 = ssub.s32 1024, 1024
      %57 = vsyncadd [#allocation11], %s56
      %s58 = sshll.u32 [#allocation10], 4
      %s59 = int_to_ptr.vmem [resolvable:$true] %s58
      %64 = dma.hbm_to_vmem [thread:$0]  %s4, 1024, %s59, [#allocation11], 64, 64, 4
    $region21: #{tpu_custom_call.1} parent=1 // pred_fallthru
      _
    // Predicated region
    $region22: #{tpu_custom_call.1} parent=1 // pred_check
      _
    $region23: #{tpu_custom_call.1} parent=1 // pred_check_branch
      %66 = sbr.rel (0) target = $region25
    $region24: #{tpu_custom_call.1} parent=1 // pred_region
      _
    $region25: #{tpu_custom_call.1} parent=1 // pred_fallthru
      _
    // Predicated region
    $region26: #{tpu_custom_call.1} parent=1 // pred_check
      _
    $region27: #{tpu_custom_call.1} parent=1 // pred_check_branch
      %68 = sbr.rel (0) target = $region29
    $region28: #{tpu_custom_call.1} parent=1 // pred_region
      %69 = dma.done [#allocation5], 2048
    $region29: #{tpu_custom_call.1} parent=1 // pred_fallthru
      _
    // Predicated region
    $region30: #{tpu_custom_call.1} parent=1 // pred_check
      _
    $region31: #{tpu_custom_call.1} parent=1 // pred_check_branch
      %71 = sbr.rel (0) target = $region33
    $region32: #{tpu_custom_call.1} parent=1 // pred_region
      %72 = dma.done [#allocation8], 4096
    $region33: #{tpu_custom_call.1} parent=1 // pred_fallthru
      _
    // Predicated region
    $region34: #{tpu_custom_call.1} parent=1 // pred_check
      _
    $region35: #{tpu_custom_call.1} parent=1 // pred_check_branch
      %74 = sbr.rel (0) target = $region37
    $region36: #{tpu_custom_call.1} parent=1 // pred_region
      %75 = dma.done [#allocation8], 8192
    $region37: #{tpu_custom_call.1} parent=1 // pred_fallthru
      _
    // Predicated region
    $region38: #{tpu_custom_call.1} parent=1 // pred_check
      _
    $region39: #{tpu_custom_call.1} parent=1 // pred_check_branch
      %77 = sbr.rel (0) target = $region41
    $region40: #{tpu_custom_call.1} parent=1 // pred_region
      %78 = dma.done [#allocation11], 1024
    $region41: #{tpu_custom_call.1} parent=1 // pred_fallthru
      _
    %p80 = scmp.eq.s32.totalorder 0, 0
    // Predicated region
    $region42: #{tpu_custom_call.1} parent=1 // pred_check
      %p81 = pneg %p80
    $region43: #{tpu_custom_call.1} parent=1 // pred_check_branch
      %83 = sbr.rel (%p81) target = $region45
    $region44: #{tpu_custom_call.1} parent=1 // pred_region
      %84 = vst [vmem:[#allocation2] sm:$0xff] 0.0
      %85 = vst [vmem:[#allocation2 + $0x8] sm:$0xff] 0.0
      %86 = vst [vmem:[#allocation3] sm:$0xff] 0.0
      %87 = vst [vmem:[#allocation3 + $0x8] sm:$0xff] 0.0
    $region45: #{tpu_custom_call.1} parent=1 // pred_fallthru
      _
    %v88 = vld [vmem:[#allocation2] sm:$0xff]
    %v89 = vld [vmem:[#allocation3] sm:$0xff]
    %s90 = scalar_lea.vmem [#allocation2], 8
    %v91 = vld [vmem:[%s90] sm:$0xff]
    %s92 = scalar_lea.vmem [#allocation3], 8
    %v93 = vld [vmem:[%s92] sm:$0xff]
    %v94 = vld [vmem:[#allocation4] sm:$0xff]
    %v95 = vld [vmem:[#allocation4 + $0x8] sm:$0xff]
    %v96 = vunpack.c.l.bf16 %v94
    %v97 = vunpack.c.h.bf16 %v94
    %v98 = vunpack.c.l.bf16 %v95
    %v99 = vunpack.c.h.bf16 %v95
    %v100 = vpack.c.bf16 %v88, %v88
    %v101 = vld [vmem:[#allocation7] sm:$0xff]
    %v102 = vld [vmem:[#allocation7 + $0x8] sm:$0xff]
    %v103 = vld [vmem:[#allocation7 + $0x10] sm:$0xff]
    %v104 = vld [vmem:[#allocation7 + $0x18] sm:$0xff]
    %v105 = vld [vmem:[#allocation7 + $0x20] sm:$0xff]
    %v106 = vld [vmem:[#allocation7 + $0x28] sm:$0xff]
    %v107 = vld [vmem:[#allocation7 + $0x30] sm:$0xff]
    %v108 = vld [vmem:[#allocation7 + $0x38] sm:$0xff]
    %v109 = vld [vmem:[#allocation7 + $0x40] sm:$0xff]
    %v110 = vld [vmem:[#allocation7 + $0x48] sm:$0xff]
    %v111 = vld [vmem:[#allocation7 + $0x50] sm:$0xff]
    %v112 = vld [vmem:[#allocation7 + $0x58] sm:$0xff]
    %v113 = vld [vmem:[#allocation7 + $0x60] sm:$0xff]
    %v114 = vld [vmem:[#allocation7 + $0x68] sm:$0xff]
    %v115 = vld [vmem:[#allocation7 + $0x70] sm:$0xff]
    %v116 = vld [vmem:[#allocation7 + $0x78] sm:$0xff]
    %v117 = vld [vmem:[#allocation7 + $0x80] sm:$0xff]
    %v118 = vld [vmem:[#allocation7 + $0x88] sm:$0xff]
    %v119 = vld [vmem:[#allocation7 + $0x90] sm:$0xff]
    %v120 = vld [vmem:[#allocation7 + $0x98] sm:$0xff]
    %v121 = vld [vmem:[#allocation7 + $0xa0] sm:$0xff]
    %v122 = vld [vmem:[#allocation7 + $0xa8] sm:$0xff]
    %v123 = vld [vmem:[#allocation7 + $0xb0] sm:$0xff]
    %v124 = vld [vmem:[#allocation7 + $0xb8] sm:$0xff]
    %v125 = vld [vmem:[#allocation7 + $0xc0] sm:$0xff]
    %v126 = vld [vmem:[#allocation7 + $0xc8] sm:$0xff]
    %v127 = vld [vmem:[#allocation7 + $0xd0] sm:$0xff]
    %v128 = vld [vmem:[#allocation7 + $0xd8] sm:$0xff]
    %v129 = vld [vmem:[#allocation7 + $0xe0] sm:$0xff]
    %v130 = vld [vmem:[#allocation7 + $0xe8] sm:$0xff]
    %v131 = vld [vmem:[#allocation7 + $0xf0] sm:$0xff]
    %v132 = vld [vmem:[#allocation7 + $0xf8] sm:$0xff]
    %v165 = vunpack.c.l.b16 %v101
    %v166 = vunpack.c.h.b16 %v101
    %v167 = vunpack.c.l.b16 %v102
    %v168 = vunpack.c.h.b16 %v102
    %v169 = vunpack.c.l.b16 %v103
    %v170 = vunpack.c.h.b16 %v103
    %v171 = vunpack.c.l.b16 %v104
    %v172 = vunpack.c.h.b16 %v104
    %v173 = vunpack.c.l.b16 %v105
    %v174 = vunpack.c.h.b16 %v105
    %v175 = vunpack.c.l.b16 %v106
    %v176 = vunpack.c.h.b16 %v106
    %v177 = vunpack.c.l.b16 %v107
    %v178 = vunpack.c.h.b16 %v107
    %v179 = vunpack.c.l.b16 %v108
    %v180 = vunpack.c.h.b16 %v108
    %v181 = vunpack.c.l.b16 %v109
    %v182 = vunpack.c.h.b16 %v109
    %v183 = vunpack.c.l.b16 %v110
    %v184 = vunpack.c.h.b16 %v110
    %v185 = vunpack.c.l.b16 %v111
    %v186 = vunpack.c.h.b16 %v111
    %v187 = vunpack.c.l.b16 %v112
    %v188 = vunpack.c.h.b16 %v112
    %v189 = vunpack.c.l.b16 %v113
    %v190 = vunpack.c.h.b16 %v113
    %v191 = vunpack.c.l.b16 %v114
    %v192 = vunpack.c.h.b16 %v114
    %v193 = vunpack.c.l.b16 %v115
    %v194 = vunpack.c.h.b16 %v115
    %v195 = vunpack.c.l.b16 %v116
    %v196 = vunpack.c.h.b16 %v116
    %v197 = vunpack.c.l.b16 %v117
    %v198 = vunpack.c.h.b16 %v117
    %v199 = vunpack.c.l.b16 %v118
    %v200 = vunpack.c.h.b16 %v118
    %v201 = vunpack.c.l.b16 %v119
    %v202 = vunpack.c.h.b16 %v119
    %v203 = vunpack.c.l.b16 %v120
    %v204 = vunpack.c.h.b16 %v120
    %v205 = vunpack.c.l.b16 %v121
    %v206 = vunpack.c.h.b16 %v121
    %v207 = vunpack.c.l.b16 %v122
    %v208 = vunpack.c.h.b16 %v122
    %v209 = vunpack.c.l.b16 %v123
    %v210 = vunpack.c.h.b16 %v123
    %v211 = vunpack.c.l.b16 %v124
    %v212 = vunpack.c.h.b16 %v124
    %v213 = vunpack.c.l.b16 %v125
    %v214 = vunpack.c.h.b16 %v125
    %v215 = vunpack.c.l.b16 %v126
    %v216 = vunpack.c.h.b16 %v126
    %v217 = vunpack.c.l.b16 %v127
    %v218 = vunpack.c.h.b16 %v127
    %v219 = vunpack.c.l.b16 %v128
    %v220 = vunpack.c.h.b16 %v128
    %v221 = vunpack.c.l.b16 %v129
    %v222 = vunpack.c.h.b16 %v129
    %v223 = vunpack.c.l.b16 %v130
    %v224 = vunpack.c.h.b16 %v130
    %v225 = vunpack.c.l.b16 %v131
    %v226 = vunpack.c.h.b16 %v131
    %v227 = vunpack.c.l.b16 %v132
    %v228 = vunpack.c.h.b16 %v132
    %v229 = vpack.c.b16 %v169, %v165
    %v230 = vpack.c.b16 %v170, %v166
    %v231 = vpack.c.b16 %v171, %v167
    %v232 = vpack.c.b16 %v172, %v168
    %v233 = vpack.c.b16 %v177, %v173
    %v234 = vpack.c.b16 %v178, %v174
    %v235 = vpack.c.b16 %v179, %v175
    %v236 = vpack.c.b16 %v180, %v176
    %v237 = vpack.c.b16 %v185, %v181
    %v238 = vpack.c.b16 %v186, %v182
    %v239 = vpack.c.b16 %v187, %v183
    %v240 = vpack.c.b16 %v188, %v184
    %v241 = vpack.c.b16 %v193, %v189
    %v242 = vpack.c.b16 %v194, %v190
    %v243 = vpack.c.b16 %v195, %v191
    %v244 = vpack.c.b16 %v196, %v192
    %v245 = vpack.c.b16 %v201, %v197
    %v246 = vpack.c.b16 %v202, %v198
    %v247 = vpack.c.b16 %v203, %v199
    %v248 = vpack.c.b16 %v204, %v200
    %v249 = vpack.c.b16 %v209, %v205
    %v250 = vpack.c.b16 %v210, %v206
    %v251 = vpack.c.b16 %v211, %v207
    %v252 = vpack.c.b16 %v212, %v208
    %v253 = vpack.c.b16 %v217, %v213
    %v254 = vpack.c.b16 %v218, %v214
    %v255 = vpack.c.b16 %v219, %v215
    %v256 = vpack.c.b16 %v220, %v216
    %v257 = vpack.c.b16 %v225, %v221
    %v258 = vpack.c.b16 %v226, %v222
    %v259 = vpack.c.b16 %v227, %v223
    %v260 = vpack.c.b16 %v228, %v224
    %293 = vmatprep.subr.bf16.mxu0 %v258
    %294 = vmatpush1.bf16.msra.mxu0 %v257
    %295 = vmatprep.subr.bf16.mxu0 %v254
    %296 = vmatpush1.bf16.msra.mxu0 %v253
    %297 = vmatprep.subr.bf16.mxu0 %v250
    %298 = vmatpush1.bf16.msra.mxu0 %v249
    %299 = vmatprep.subr.bf16.mxu0 %v246
    %300 = vmatpush1.bf16.msra.mxu0 %v245
    %301 = vmatprep.subr.bf16.mxu0 %v242
    %302 = vmatpush1.bf16.msra.mxu0 %v241
    %303 = vmatprep.subr.bf16.mxu0 %v238
    %304 = vmatpush1.bf16.msra.mxu0 %v237
    %305 = vmatprep.subr.bf16.mxu0 %v234
    %306 = vmatpush1.bf16.msra.mxu0 %v233
    %307 = vmatprep.subr.bf16.mxu0 %v230
    %308 = vmatpush1.bf16.msra.mxu0 %v229
    %309 = vmatprep.subr.bf16.mxu0 0
    %310 = vmatpush2.bf16.msra.mxu0 0
    %311 = vmatprep.subr.bf16.mxu0 0
    %312 = vmatpush2.bf16.msra.mxu0 0
    %313 = vmatprep.subr.bf16.mxu0 0
    %314 = vmatpush2.bf16.msra.mxu0 0
    %315 = vmatprep.subr.bf16.mxu0 0
    %316 = vmatpush2.bf16.msra.mxu0 0
    %317 = vmatprep.subr.bf16.mxu0 0
    %318 = vmatpush2.bf16.msra.mxu0 0
    %319 = vmatprep.subr.bf16.mxu0 0
    %320 = vmatpush2.bf16.msra.mxu0 0
    %321 = vmatprep.subr.bf16.mxu0 0
    %322 = vmatpush2.bf16.msra.mxu0 0
    %323 = vmatprep.subr.bf16.mxu0 0
    %324 = vmatpush2.bf16.msra.mxu0 0
    %325 = vmatprep.mubr.bf16.mxu0 0
    %326 = vmatmul.mubr.bf16.gmra.mxu0 %v100
    %v327 = vpop.f32.mrf.mxu0
    %v328 = vadd.f32 0.0, %v327
    %v329 = vpop.f32.mrf.mxu0
    %v330 = vadd.f32 0.0, %v329
    %v331 = vpop.f32.mrf.mxu0
    %v332 = vpop.f32.mrf.mxu0
    %333 = vdwg.mxu0
    %334 = vmatprep.subr.bf16.mxu0 %v260
    %335 = vmatpush1.bf16.msra.mxu0 %v259
    %336 = vmatprep.subr.bf16.mxu0 %v256
    %337 = vmatpush1.bf16.msra.mxu0 %v255
    %338 = vmatprep.subr.bf16.mxu0 %v252
    %339 = vmatpush1.bf16.msra.mxu0 %v251
    %340 = vmatprep.subr.bf16.mxu0 %v248
    %341 = vmatpush1.bf16.msra.mxu0 %v247
    %342 = vmatprep.subr.bf16.mxu0 %v244
    %343 = vmatpush1.bf16.msra.mxu0 %v243
    %344 = vmatprep.subr.bf16.mxu0 %v240
    %345 = vmatpush1.bf16.msra.mxu0 %v239
    %346 = vmatprep.subr.bf16.mxu0 %v236
    %347 = vmatpush1.bf16.msra.mxu0 %v235
    %348 = vmatprep.subr.bf16.mxu0 %v232
    %349 = vmatpush1.bf16.msra.mxu0 %v231
    %350 = vmatprep.subr.bf16.mxu0 0
    %351 = vmatpush2.bf16.msra.mxu0 0
    %352 = vmatprep.subr.bf16.mxu0 0
    %353 = vmatpush2.bf16.msra.mxu0 0
    %354 = vmatprep.subr.bf16.mxu0 0
    %355 = vmatpush2.bf16.msra.mxu0 0
    %356 = vmatprep.subr.bf16.mxu0 0
    %357 = vmatpush2.bf16.msra.mxu0 0
    %358 = vmatprep.subr.bf16.mxu0 0
    %359 = vmatpush2.bf16.msra.mxu0 0
    %360 = vmatprep.subr.bf16.mxu0 0
    %361 = vmatpush2.bf16.msra.mxu0 0
    %362 = vmatprep.subr.bf16.mxu0 0
    %363 = vmatpush2.bf16.msra.mxu0 0
    %364 = vmatprep.subr.bf16.mxu0 0
    %365 = vmatpush2.bf16.msra.mxu0 0
    %366 = vmatprep.mubr.bf16.mxu0 0
    %367 = vmatmul.mubr.bf16.gmra.mxu0 %v100
    %v368 = vpop.f32.mrf.mxu0
    %v369 = vadd.f32 0.0, %v368
    %v370 = vpop.f32.mrf.mxu0
    %v371 = vadd.f32 0.0, %v370
    %v372 = vpop.f32.mrf.mxu0
    %v373 = vpop.f32.mrf.mxu0
    %374 = vdwg.mxu0
    %v375 = vadd.f32 %v96, %v328
    %v376 = vadd.f32 %v97, %v330
    %v377 = vadd.f32 %v98, %v369
    %v378 = vadd.f32 %v99, %v371
    %v379 = vmul.f32 %v375, 0.5
    %v380 = vtanh.pop %v379
    %v381 = vmul.f32 %v380, 0.5
    %v382 = vadd.f32 %v381, 0.5
    %v383 = vmul.f32 %v376, 0.5
    %v384 = vtanh.pop %v383
    %v385 = vmul.f32 %v384, 0.5
    %v386 = vadd.f32 %v385, 0.5
    %v387 = vtanh.pop %v377
    %v388 = vmul.f32 %v378, 0.5
    %v389 = vtanh.pop %v388
    %v390 = vmul.f32 %v389, 0.5
    %v391 = vadd.f32 %v390, 0.5
    %v392 = vmul.f32 %v386, %v89
    %v393 = vmul.f32 %v382, %v387
    %v394 = vadd.f32 %v392, %v393
    %v395 = vtanh.pop %v394
    %v396 = vmul.f32 %v391, %v395
    %v397 = vpack.c.bf16 %v396, %v396
    %v398 = vpack.c.bf16 %v91, %v91
    %v399 = vld [vmem:[#allocation9] sm:$0xff]
    %v400 = vld [vmem:[#allocation9 + $0x8] sm:$0xff]
    %v401 = vld [vmem:[#allocation9 + $0x10] sm:$0xff]
    %v402 = vld [vmem:[#allocation9 + $0x18] sm:$0xff]
    %v403 = vld [vmem:[#allocation9 + $0x20] sm:$0xff]
    %v404 = vld [vmem:[#allocation9 + $0x28] sm:$0xff]
    %v405 = vld [vmem:[#allocation9 + $0x30] sm:$0xff]
    %v406 = vld [vmem:[#allocation9 + $0x38] sm:$0xff]
    %v407 = vld [vmem:[#allocation9 + $0x40] sm:$0xff]
    %v408 = vld [vmem:[#allocation9 + $0x48] sm:$0xff]
    %v409 = vld [vmem:[#allocation9 + $0x50] sm:$0xff]
    %v410 = vld [vmem:[#allocation9 + $0x58] sm:$0xff]
    %v411 = vld [vmem:[#allocation9 + $0x60] sm:$0xff]
    %v412 = vld [vmem:[#allocation9 + $0x68] sm:$0xff]
    %v413 = vld [vmem:[#allocation9 + $0x70] sm:$0xff]
    %v414 = vld [vmem:[#allocation9 + $0x78] sm:$0xff]
    %v415 = vld [vmem:[#allocation9 + $0x80] sm:$0xff]
    %v416 = vld [vmem:[#allocation9 + $0x88] sm:$0xff]
    %v417 = vld [vmem:[#allocation9 + $0x90] sm:$0xff]
    %v418 = vld [vmem:[#allocation9 + $0x98] sm:$0xff]
    %v419 = vld [vmem:[#allocation9 + $0xa0] sm:$0xff]
    %v420 = vld [vmem:[#allocation9 + $0xa8] sm:$0xff]
    %v421 = vld [vmem:[#allocation9 + $0xb0] sm:$0xff]
    %v422 = vld [vmem:[#allocation9 + $0xb8] sm:$0xff]
    %v423 = vld [vmem:[#allocation9 + $0xc0] sm:$0xff]
    %v424 = vld [vmem:[#allocation9 + $0xc8] sm:$0xff]
    %v425 = vld [vmem:[#allocation9 + $0xd0] sm:$0xff]
    %v426 = vld [vmem:[#allocation9 + $0xd8] sm:$0xff]
    %v427 = vld [vmem:[#allocation9 + $0xe0] sm:$0xff]
    %v428 = vld [vmem:[#allocation9 + $0xe8] sm:$0xff]
    %v429 = vld [vmem:[#allocation9 + $0xf0] sm:$0xff]
    %v430 = vld [vmem:[#allocation9 + $0xf8] sm:$0xff]
    %v431 = vld [vmem:[#allocation9 + $0x100] sm:$0xff]
    %v432 = vld [vmem:[#allocation9 + $0x108] sm:$0xff]
    %v433 = vld [vmem:[#allocation9 + $0x110] sm:$0xff]
    %v434 = vld [vmem:[#allocation9 + $0x118] sm:$0xff]
    %v435 = vld [vmem:[#allocation9 + $0x120] sm:$0xff]
    %v436 = vld [vmem:[#allocation9 + $0x128] sm:$0xff]
    %v437 = vld [vmem:[#allocation9 + $0x130] sm:$0xff]
    %v438 = vld [vmem:[#allocation9 + $0x138] sm:$0xff]
    %v439 = vld [vmem:[#allocation9 + $0x140] sm:$0xff]
    %v440 = vld [vmem:[#allocation9 + $0x148] sm:$0xff]
    %v441 = vld [vmem:[#allocation9 + $0x150] sm:$0xff]
    %v442 = vld [vmem:[#allocation9 + $0x158] sm:$0xff]
    %v443 = vld [vmem:[#allocation9 + $0x160] sm:$0xff]
    %v444 = vld [vmem:[#allocation9 + $0x168] sm:$0xff]
    %v445 = vld [vmem:[#allocation9 + $0x170] sm:$0xff]
    %v446 = vld [vmem:[#allocation9 + $0x178] sm:$0xff]
    %v447 = vld [vmem:[#allocation9 + $0x180] sm:$0xff]
    %v448 = vld [vmem:[#allocation9 + $0x188] sm:$0xff]
    %v449 = vld [vmem:[#allocation9 + $0x190] sm:$0xff]
    %v450 = vld [vmem:[#allocation9 + $0x198] sm:$0xff]
    %v451 = vld [vmem:[#allocation9 + $0x1a0] sm:$0xff]
    %v452 = vld [vmem:[#allocation9 + $0x1a8] sm:$0xff]
    %v453 = vld [vmem:[#allocation9 + $0x1b0] sm:$0xff]
    %v454 = vld [vmem:[#allocation9 + $0x1b8] sm:$0xff]
    %v455 = vld [vmem:[#allocation9 + $0x1c0] sm:$0xff]
    %v456 = vld [vmem:[#allocation9 + $0x1c8] sm:$0xff]
    %v457 = vld [vmem:[#allocation9 + $0x1d0] sm:$0xff]
    %v458 = vld [vmem:[#allocation9 + $0x1d8] sm:$0xff]
    %v459 = vld [vmem:[#allocation9 + $0x1e0] sm:$0xff]
    %v460 = vld [vmem:[#allocation9 + $0x1e8] sm:$0xff]
    %v461 = vld [vmem:[#allocation9 + $0x1f0] sm:$0xff]
    %v462 = vld [vmem:[#allocation9 + $0x1f8] sm:$0xff]
    %v463 = vld [vmem:[%s3] sm:$0xf]
    %v465 = vlaneseq
    %v466 = vshrl.u32 %v465, 7
    %v467 = vsub.s32 0, %v466
    %v468 = vrot.slane %v463, %v467
    %v469 = vlaneseq
    %v470 = vshrl.u32 %v469, 7
    %v471 = vsub.s32 1, %v470
    %v472 = vrot.slane %v463, %v471
    %v473 = vlaneseq
    %v474 = vshrl.u32 %v473, 7
    %v475 = vsub.s32 2, %v474
    %v476 = vrot.slane %v463, %v475
    %v477 = vlaneseq
    %v478 = vshrl.u32 %v477, 7
    %v479 = vsub.s32 3, %v478
    %v480 = vrot.slane %v463, %v479
    %v549 = vunpack.c.l.b16 %v399
    %v550 = vunpack.c.h.b16 %v399
    %v551 = vunpack.c.l.b16 %v400
    %v552 = vunpack.c.h.b16 %v400
    %v553 = vunpack.c.l.b16 %v401
    %v554 = vunpack.c.h.b16 %v401
    %v555 = vunpack.c.l.b16 %v402
    %v556 = vunpack.c.h.b16 %v402
    %v557 = vunpack.c.l.b16 %v403
    %v558 = vunpack.c.h.b16 %v403
    %v559 = vunpack.c.l.b16 %v404
    %v560 = vunpack.c.h.b16 %v404
    %v561 = vunpack.c.l.b16 %v405
    %v562 = vunpack.c.h.b16 %v405
    %v563 = vunpack.c.l.b16 %v406
    %v564 = vunpack.c.h.b16 %v406
    %v565 = vunpack.c.l.b16 %v407
    %v566 = vunpack.c.h.b16 %v407
    %v567 = vunpack.c.l.b16 %v408
    %v568 = vunpack.c.h.b16 %v408
    %v569 = vunpack.c.l.b16 %v409
    %v570 = vunpack.c.h.b16 %v409
    %v571 = vunpack.c.l.b16 %v410
    %v572 = vunpack.c.h.b16 %v410
    %v573 = vunpack.c.l.b16 %v411
    %v574 = vunpack.c.h.b16 %v411
    %v575 = vunpack.c.l.b16 %v412
    %v576 = vunpack.c.h.b16 %v412
    %v577 = vunpack.c.l.b16 %v413
    %v578 = vunpack.c.h.b16 %v413
    %v579 = vunpack.c.l.b16 %v414
    %v580 = vunpack.c.h.b16 %v414
    %v581 = vunpack.c.l.b16 %v415
    %v582 = vunpack.c.h.b16 %v415
    %v583 = vunpack.c.l.b16 %v416
    %v584 = vunpack.c.h.b16 %v416
    %v585 = vunpack.c.l.b16 %v417
    %v586 = vunpack.c.h.b16 %v417
    %v587 = vunpack.c.l.b16 %v418
    %v588 = vunpack.c.h.b16 %v418
    %v589 = vunpack.c.l.b16 %v419
    %v590 = vunpack.c.h.b16 %v419
    %v591 = vunpack.c.l.b16 %v420
    %v592 = vunpack.c.h.b16 %v420
    %v593 = vunpack.c.l.b16 %v421
    %v594 = vunpack.c.h.b16 %v421
    %v595 = vunpack.c.l.b16 %v422
    %v596 = vunpack.c.h.b16 %v422
    %v597 = vunpack.c.l.b16 %v423
    %v598 = vunpack.c.h.b16 %v423
    %v599 = vunpack.c.l.b16 %v424
    %v600 = vunpack.c.h.b16 %v424
    %v601 = vunpack.c.l.b16 %v425
    %v602 = vunpack.c.h.b16 %v425
    %v603 = vunpack.c.l.b16 %v426
    %v604 = vunpack.c.h.b16 %v426
    %v605 = vunpack.c.l.b16 %v427
    %v606 = vunpack.c.h.b16 %v427
    %v607 = vunpack.c.l.b16 %v428
    %v608 = vunpack.c.h.b16 %v428
    %v609 = vunpack.c.l.b16 %v429
    %v610 = vunpack.c.h.b16 %v429
    %v611 = vunpack.c.l.b16 %v430
    %v612 = vunpack.c.h.b16 %v430
    %v613 = vunpack.c.l.b16 %v431
    %v614 = vunpack.c.h.b16 %v431
    %v615 = vunpack.c.l.b16 %v432
    %v616 = vunpack.c.h.b16 %v432
    %v617 = vunpack.c.l.b16 %v433
    %v618 = vunpack.c.h.b16 %v433
    %v619 = vunpack.c.l.b16 %v434
    %v620 = vunpack.c.h.b16 %v434
    %v621 = vunpack.c.l.b16 %v435
    %v622 = vunpack.c.h.b16 %v435
    %v623 = vunpack.c.l.b16 %v436
    %v624 = vunpack.c.h.b16 %v436
    %v625 = vunpack.c.l.b16 %v437
    %v626 = vunpack.c.h.b16 %v437
    %v627 = vunpack.c.l.b16 %v438
    %v628 = vunpack.c.h.b16 %v438
    %v629 = vunpack.c.l.b16 %v439
    %v630 = vunpack.c.h.b16 %v439
    %v631 = vunpack.c.l.b16 %v440
    %v632 = vunpack.c.h.b16 %v440
    %v633 = vunpack.c.l.b16 %v441
    %v634 = vunpack.c.h.b16 %v441
    %v635 = vunpack.c.l.b16 %v442
    %v636 = vunpack.c.h.b16 %v442
    %v637 = vunpack.c.l.b16 %v443
    %v638 = vunpack.c.h.b16 %v443
    %v639 = vunpack.c.l.b16 %v444
    %v640 = vunpack.c.h.b16 %v444
    %v641 = vunpack.c.l.b16 %v445
    %v642 = vunpack.c.h.b16 %v445
    %v643 = vunpack.c.l.b16 %v446
    %v644 = vunpack.c.h.b16 %v446
    %v645 = vunpack.c.l.b16 %v447
    %v646 = vunpack.c.h.b16 %v447
    %v647 = vunpack.c.l.b16 %v448
    %v648 = vunpack.c.h.b16 %v448
    %v649 = vunpack.c.l.b16 %v449
    %v650 = vunpack.c.h.b16 %v449
    %v651 = vunpack.c.l.b16 %v450
    %v652 = vunpack.c.h.b16 %v450
    %v653 = vunpack.c.l.b16 %v451
    %v654 = vunpack.c.h.b16 %v451
    %v655 = vunpack.c.l.b16 %v452
    %v656 = vunpack.c.h.b16 %v452
    %v657 = vunpack.c.l.b16 %v453
    %v658 = vunpack.c.h.b16 %v453
    %v659 = vunpack.c.l.b16 %v454
    %v660 = vunpack.c.h.b16 %v454
    %v661 = vunpack.c.l.b16 %v455
    %v662 = vunpack.c.h.b16 %v455
    %v663 = vunpack.c.l.b16 %v456
    %v664 = vunpack.c.h.b16 %v456
    %v665 = vunpack.c.l.b16 %v457
    %v666 = vunpack.c.h.b16 %v457
    %v667 = vunpack.c.l.b16 %v458
    %v668 = vunpack.c.h.b16 %v458
    %v669 = vunpack.c.l.b16 %v459
    %v670 = vunpack.c.h.b16 %v459
    %v671 = vunpack.c.l.b16 %v460
    %v672 = vunpack.c.h.b16 %v460
    %v673 = vunpack.c.l.b16 %v461
    %v674 = vunpack.c.h.b16 %v461
    %v675 = vunpack.c.l.b16 %v462
    %v676 = vunpack.c.h.b16 %v462
    %v677 = vpack.c.b16 %v553, %v549
    %v678 = vpack.c.b16 %v554, %v550
    %v679 = vpack.c.b16 %v555, %v551
    %v680 = vpack.c.b16 %v556, %v552
    %v681 = vpack.c.b16 %v561, %v557
    %v682 = vpack.c.b16 %v562, %v558
    %v683 = vpack.c.b16 %v563, %v559
    %v684 = vpack.c.b16 %v564, %v560
    %v685 = vpack.c.b16 %v569, %v565
    %v686 = vpack.c.b16 %v570, %v566
    %v687 = vpack.c.b16 %v571, %v567
    %v688 = vpack.c.b16 %v572, %v568
    %v689 = vpack.c.b16 %v577, %v573
    %v690 = vpack.c.b16 %v578, %v574
    %v691 = vpack.c.b16 %v579, %v575
    %v692 = vpack.c.b16 %v580, %v576
    %v693 = vpack.c.b16 %v585, %v581
    %v694 = vpack.c.b16 %v586, %v582
    %v695 = vpack.c.b16 %v587, %v583
    %v696 = vpack.c.b16 %v588, %v584
    %v697 = vpack.c.b16 %v593, %v589
    %v698 = vpack.c.b16 %v594, %v590
    %v699 = vpack.c.b16 %v595, %v591
    %v700 = vpack.c.b16 %v596, %v592
    %v701 = vpack.c.b16 %v601, %v597
    %v702 = vpack.c.b16 %v602, %v598
    %v703 = vpack.c.b16 %v603, %v599
    %v704 = vpack.c.b16 %v604, %v600
    %v705 = vpack.c.b16 %v609, %v605
    %v706 = vpack.c.b16 %v610, %v606
    %v707 = vpack.c.b16 %v611, %v607
    %v708 = vpack.c.b16 %v612, %v608
    %v709 = vpack.c.b16 %v617, %v613
    %v710 = vpack.c.b16 %v618, %v614
    %v711 = vpack.c.b16 %v619, %v615
    %v712 = vpack.c.b16 %v620, %v616
    %v713 = vpack.c.b16 %v625, %v621
    %v714 = vpack.c.b16 %v626, %v622
    %v715 = vpack.c.b16 %v627, %v623
    %v716 = vpack.c.b16 %v628, %v624
    %v717 = vpack.c.b16 %v633, %v629
    %v718 = vpack.c.b16 %v634, %v630
    %v719 = vpack.c.b16 %v635, %v631
    %v720 = vpack.c.b16 %v636, %v632
    %v721 = vpack.c.b16 %v641, %v637
    %v722 = vpack.c.b16 %v642, %v638
    %v723 = vpack.c.b16 %v643, %v639
    %v724 = vpack.c.b16 %v644, %v640
    %v725 = vpack.c.b16 %v649, %v645
    %v726 = vpack.c.b16 %v650, %v646
    %v727 = vpack.c.b16 %v651, %v647
    %v728 = vpack.c.b16 %v652, %v648
    %v729 = vpack.c.b16 %v657, %v653
    %v730 = vpack.c.b16 %v658, %v654
    %v731 = vpack.c.b16 %v659, %v655
    %v732 = vpack.c.b16 %v660, %v656
    %v733 = vpack.c.b16 %v665, %v661
    %v734 = vpack.c.b16 %v666, %v662
    %v735 = vpack.c.b16 %v667, %v663
    %v736 = vpack.c.b16 %v668, %v664
    %v737 = vpack.c.b16 %v673, %v669
    %v738 = vpack.c.b16 %v674, %v670
    %v739 = vpack.c.b16 %v675, %v671
    %v740 = vpack.c.b16 %v676, %v672
    %805 = vmatprep.subr.bf16.mxu0 %v706
    %806 = vmatpush1.bf16.msra.mxu0 %v705
    %807 = vmatprep.subr.bf16.mxu0 %v702
    %808 = vmatpush1.bf16.msra.mxu0 %v701
    %809 = vmatprep.subr.bf16.mxu0 %v698
    %810 = vmatpush1.bf16.msra.mxu0 %v697
    %811 = vmatprep.subr.bf16.mxu0 %v694
    %812 = vmatpush1.bf16.msra.mxu0 %v693
    %813 = vmatprep.subr.bf16.mxu0 %v690
    %814 = vmatpush1.bf16.msra.mxu0 %v689
    %815 = vmatprep.subr.bf16.mxu0 %v686
    %816 = vmatpush1.bf16.msra.mxu0 %v685
    %817 = vmatprep.subr.bf16.mxu0 %v682
    %818 = vmatpush1.bf16.msra.mxu0 %v681
    %819 = vmatprep.subr.bf16.mxu0 %v678
    %820 = vmatpush1.bf16.msra.mxu0 %v677
    %821 = vmatprep.subr.bf16.mxu0 %v738
    %822 = vmatpush2.bf16.msra.mxu0 %v737
    %823 = vmatprep.subr.bf16.mxu0 %v734
    %824 = vmatpush2.bf16.msra.mxu0 %v733
    %825 = vmatprep.subr.bf16.mxu0 %v730
    %826 = vmatpush2.bf16.msra.mxu0 %v729
    %827 = vmatprep.subr.bf16.mxu0 %v726
    %828 = vmatpush2.bf16.msra.mxu0 %v725
    %829 = vmatprep.subr.bf16.mxu0 %v722
    %830 = vmatpush2.bf16.msra.mxu0 %v721
    %831 = vmatprep.subr.bf16.mxu0 %v718
    %832 = vmatpush2.bf16.msra.mxu0 %v717
    %833 = vmatprep.subr.bf16.mxu0 %v714
    %834 = vmatpush2.bf16.msra.mxu0 %v713
    %835 = vmatprep.subr.bf16.mxu0 %v710
    %836 = vmatpush2.bf16.msra.mxu0 %v709
    %837 = vmatprep.mubr.bf16.mxu0 %v398
    %838 = vmatmul.mubr.bf16.gmra.mxu0 %v397
    %v839 = vpop.f32.mrf.mxu0
    %v840 = vadd.f32 %v468, %v839
    %v841 = vpop.f32.mrf.mxu0
    %v842 = vadd.f32 %v472, %v841
    %v843 = vpop.f32.mrf.mxu0
    %v844 = vpop.f32.mrf.mxu0
    %845 = vdwg.mxu0
    %846 = vmatprep.subr.bf16.mxu0 %v708
    %847 = vmatpush1.bf16.msra.mxu0 %v707
    %848 = vmatprep.subr.bf16.mxu0 %v704
    %849 = vmatpush1.bf16.msra.mxu0 %v703
    %850 = vmatprep.subr.bf16.mxu0 %v700
    %851 = vmatpush1.bf16.msra.mxu0 %v699
    %852 = vmatprep.subr.bf16.mxu0 %v696
    %853 = vmatpush1.bf16.msra.mxu0 %v695
    %854 = vmatprep.subr.bf16.mxu0 %v692
    %855 = vmatpush1.bf16.msra.mxu0 %v691
    %856 = vmatprep.subr.bf16.mxu0 %v688
    %857 = vmatpush1.bf16.msra.mxu0 %v687
    %858 = vmatprep.subr.bf16.mxu0 %v684
    %859 = vmatpush1.bf16.msra.mxu0 %v683
    %860 = vmatprep.subr.bf16.mxu0 %v680
    %861 = vmatpush1.bf16.msra.mxu0 %v679
    %862 = vmatprep.subr.bf16.mxu0 %v740
    %863 = vmatpush2.bf16.msra.mxu0 %v739
    %864 = vmatprep.subr.bf16.mxu0 %v736
    %865 = vmatpush2.bf16.msra.mxu0 %v735
    %866 = vmatprep.subr.bf16.mxu0 %v732
    %867 = vmatpush2.bf16.msra.mxu0 %v731
    %868 = vmatprep.subr.bf16.mxu0 %v728
    %869 = vmatpush2.bf16.msra.mxu0 %v727
    %870 = vmatprep.subr.bf16.mxu0 %v724
    %871 = vmatpush2.bf16.msra.mxu0 %v723
    %872 = vmatprep.subr.bf16.mxu0 %v720
    %873 = vmatpush2.bf16.msra.mxu0 %v719
    %874 = vmatprep.subr.bf16.mxu0 %v716
    %875 = vmatpush2.bf16.msra.mxu0 %v715
    %876 = vmatprep.subr.bf16.mxu0 %v712
    %877 = vmatpush2.bf16.msra.mxu0 %v711
    %878 = vmatprep.mubr.bf16.mxu0 %v398
    %879 = vmatmul.mubr.bf16.gmra.mxu0 %v397
    %v880 = vpop.f32.mrf.mxu0
    %v881 = vadd.f32 %v476, %v880
    %v882 = vpop.f32.mrf.mxu0
    %v883 = vadd.f32 %v480, %v882
    %v884 = vpop.f32.mrf.mxu0
    %v885 = vpop.f32.mrf.mxu0
    %886 = vdwg.mxu0
    %v887 = vmul.f32 %v840, 0.5
    %v888 = vtanh.pop %v887
    %v889 = vmul.f32 %v888, 0.5
    %v890 = vadd.f32 %v889, 0.5
    %v891 = vmul.f32 %v842, 0.5
    %v892 = vtanh.pop %v891
    %v893 = vmul.f32 %v892, 0.5
    %v894 = vadd.f32 %v893, 0.5
    %v895 = vtanh.pop %v881
    %v896 = vmul.f32 %v883, 0.5
    %v897 = vtanh.pop %v896
    %v898 = vmul.f32 %v897, 0.5
    %v899 = vadd.f32 %v898, 0.5
    %v900 = vmul.f32 %v894, %v93
    %v901 = vmul.f32 %v890, %v895
    %v902 = vadd.f32 %v900, %v901
    %v903 = vtanh.pop %v902
    %v904 = vmul.f32 %v899, %v903
    %s905 = scalar_lea.vmem [#allocation4], 16
    %v906 = vld [vmem:[%s905] sm:$0xff]
    %v907 = vld [vmem:[%s905 + $0x8] sm:$0xff]
    %v908 = vunpack.c.l.bf16 %v906
    %v909 = vunpack.c.h.bf16 %v906
    %v910 = vunpack.c.l.bf16 %v907
    %v911 = vunpack.c.h.bf16 %v907
    %912 = vmatprep.subr.bf16.mxu0 %v258
    %913 = vmatpush1.bf16.msra.mxu0 %v257
    %914 = vmatprep.subr.bf16.mxu0 %v254
    %915 = vmatpush1.bf16.msra.mxu0 %v253
    %916 = vmatprep.subr.bf16.mxu0 %v250
    %917 = vmatpush1.bf16.msra.mxu0 %v249
    %918 = vmatprep.subr.bf16.mxu0 %v246
    %919 = vmatpush1.bf16.msra.mxu0 %v245
    %920 = vmatprep.subr.bf16.mxu0 %v242
    %921 = vmatpush1.bf16.msra.mxu0 %v241
    %922 = vmatprep.subr.bf16.mxu0 %v238
    %923 = vmatpush1.bf16.msra.mxu0 %v237
    %924 = vmatprep.subr.bf16.mxu0 %v234
    %925 = vmatpush1.bf16.msra.mxu0 %v233
    %926 = vmatprep.subr.bf16.mxu0 %v230
    %927 = vmatpush1.bf16.msra.mxu0 %v229
    %928 = vmatprep.subr.bf16.mxu0 0
    %929 = vmatpush2.bf16.msra.mxu0 0
    %930 = vmatprep.subr.bf16.mxu0 0
    %931 = vmatpush2.bf16.msra.mxu0 0
    %932 = vmatprep.subr.bf16.mxu0 0
    %933 = vmatpush2.bf16.msra.mxu0 0
    %934 = vmatprep.subr.bf16.mxu0 0
    %935 = vmatpush2.bf16.msra.mxu0 0
    %936 = vmatprep.subr.bf16.mxu0 0
    %937 = vmatpush2.bf16.msra.mxu0 0
    %938 = vmatprep.subr.bf16.mxu0 0
    %939 = vmatpush2.bf16.msra.mxu0 0
    %940 = vmatprep.subr.bf16.mxu0 0
    %941 = vmatpush2.bf16.msra.mxu0 0
    %942 = vmatprep.subr.bf16.mxu0 0
    %943 = vmatpush2.bf16.msra.mxu0 0
    %944 = vmatprep.mubr.bf16.mxu0 0
    %945 = vmatmul.mubr.bf16.gmra.mxu0 %v397
    %v946 = vpop.f32.mrf.mxu0
    %v947 = vadd.f32 0.0, %v946
    %v948 = vpop.f32.mrf.mxu0
    %v949 = vadd.f32 0.0, %v948
    %v950 = vpop.f32.mrf.mxu0
    %v951 = vpop.f32.mrf.mxu0
    %952 = vdwg.mxu0
    %953 = vmatprep.subr.bf16.mxu0 %v260
    %954 = vmatpush1.bf16.msra.mxu0 %v259
    %955 = vmatprep.subr.bf16.mxu0 %v256
    %956 = vmatpush1.bf16.msra.mxu0 %v255
    %957 = vmatprep.subr.bf16.mxu0 %v252
    %958 = vmatpush1.bf16.msra.mxu0 %v251
    %959 = vmatprep.subr.bf16.mxu0 %v248
    %960 = vmatpush1.bf16.msra.mxu0 %v247
    %961 = vmatprep.subr.bf16.mxu0 %v244
    %962 = vmatpush1.bf16.msra.mxu0 %v243
    %963 = vmatprep.subr.bf16.mxu0 %v240
    %964 = vmatpush1.bf16.msra.mxu0 %v239
    %965 = vmatprep.subr.bf16.mxu0 %v236
    %966 = vmatpush1.bf16.msra.mxu0 %v235
    %967 = vmatprep.subr.bf16.mxu0 %v232
    %968 = vmatpush1.bf16.msra.mxu0 %v231
    %969 = vmatprep.subr.bf16.mxu0 0
    %970 = vmatpush2.bf16.msra.mxu0 0
    %971 = vmatprep.subr.bf16.mxu0 0
    %972 = vmatpush2.bf16.msra.mxu0 0
    %973 = vmatprep.subr.bf16.mxu0 0
    %974 = vmatpush2.bf16.msra.mxu0 0
    %975 = vmatprep.subr.bf16.mxu0 0
    %976 = vmatpush2.bf16.msra.mxu0 0
    %977 = vmatprep.subr.bf16.mxu0 0
    %978 = vmatpush2.bf16.msra.mxu0 0
    %979 = vmatprep.subr.bf16.mxu0 0
    %980 = vmatpush2.bf16.msra.mxu0 0
    %981 = vmatprep.subr.bf16.mxu0 0
    %982 = vmatpush2.bf16.msra.mxu0 0
    %983 = vmatprep.subr.bf16.mxu0 0
    %984 = vmatpush2.bf16.msra.mxu0 0
    %985 = vmatprep.mubr.bf16.mxu0 0
    %986 = vmatmul.mubr.bf16.gmra.mxu0 %v397
    %v987 = vpop.f32.mrf.mxu0
    %v988 = vadd.f32 0.0, %v987
    %v989 = vpop.f32.mrf.mxu0
    %v990 = vadd.f32 0.0, %v989
    %v991 = vpop.f32.mrf.mxu0
    %v992 = vpop.f32.mrf.mxu0
    %993 = vdwg.mxu0
    %v994 = vadd.f32 %v908, %v947
    %v995 = vadd.f32 %v909, %v949
    %v996 = vadd.f32 %v910, %v988
    %v997 = vadd.f32 %v911, %v990
    %v998 = vmul.f32 %v994, 0.5
    %v999 = vtanh.pop %v998
    %v1000 = vmul.f32 %v999, 0.5
    %v1001 = vadd.f32 %v1000, 0.5
    %v1002 = vmul.f32 %v995, 0.5
    %v1003 = vtanh.pop %v1002
    %v1004 = vmul.f32 %v1003, 0.5
    %v1005 = vadd.f32 %v1004, 0.5
    %v1006 = vtanh.pop %v996
    %v1007 = vmul.f32 %v997, 0.5
    %v1008 = vtanh.pop %v1007
    %v1009 = vmul.f32 %v1008, 0.5
    %v1010 = vadd.f32 %v1009, 0.5
    %v1011 = vmul.f32 %v1005, %v394
    %v1012 = vmul.f32 %v1001, %v1006
    %v1013 = vadd.f32 %v1011, %v1012
    %v1014 = vtanh.pop %v1013
    %v1015 = vmul.f32 %v1010, %v1014
    %v1016 = vpack.c.bf16 %v1015, %v1015
    %v1017 = vpack.c.bf16 %v904, %v904
    %1018 = vmatprep.subr.bf16.mxu0 %v706
    %1019 = vmatpush1.bf16.msra.mxu0 %v705
    %1020 = vmatprep.subr.bf16.mxu0 %v702
    %1021 = vmatpush1.bf16.msra.mxu0 %v701
    %1022 = vmatprep.subr.bf16.mxu0 %v698
    %1023 = vmatpush1.bf16.msra.mxu0 %v697
    %1024 = vmatprep.subr.bf16.mxu0 %v694
    %1025 = vmatpush1.bf16.msra.mxu0 %v693
    %1026 = vmatprep.subr.bf16.mxu0 %v690
    %1027 = vmatpush1.bf16.msra.mxu0 %v689
    %1028 = vmatprep.subr.bf16.mxu0 %v686
    %1029 = vmatpush1.bf16.msra.mxu0 %v685
    %1030 = vmatprep.subr.bf16.mxu0 %v682
    %1031 = vmatpush1.bf16.msra.mxu0 %v681
    %1032 = vmatprep.subr.bf16.mxu0 %v678
    %1033 = vmatpush1.bf16.msra.mxu0 %v677
    %1034 = vmatprep.subr.bf16.mxu0 %v738
    %1035 = vmatpush2.bf16.msra.mxu0 %v737
    %1036 = vmatprep.subr.bf16.mxu0 %v734
    %1037 = vmatpush2.bf16.msra.mxu0 %v733
    %1038 = vmatprep.subr.bf16.mxu0 %v730
    %1039 = vmatpush2.bf16.msra.mxu0 %v729
    %1040 = vmatprep.subr.bf16.mxu0 %v726
    %1041 = vmatpush2.bf16.msra.mxu0 %v725
    %1042 = vmatprep.subr.bf16.mxu0 %v722
    %1043 = vmatpush2.bf16.msra.mxu0 %v721
    %1044 = vmatprep.subr.bf16.mxu0 %v718
    %1045 = vmatpush2.bf16.msra.mxu0 %v717
    %1046 = vmatprep.subr.bf16.mxu0 %v714
    %1047 = vmatpush2.bf16.msra.mxu0 %v713
    %1048 = vmatprep.subr.bf16.mxu0 %v710
    %1049 = vmatpush2.bf16.msra.mxu0 %v709
    %1050 = vmatprep.mubr.bf16.mxu0 %v1017
    %1051 = vmatmul.mubr.bf16.gmra.mxu0 %v1016
    %v1052 = vpop.f32.mrf.mxu0
    %v1053 = vadd.f32 %v468, %v1052
    %v1054 = vpop.f32.mrf.mxu0
    %v1055 = vadd.f32 %v472, %v1054
    %v1056 = vpop.f32.mrf.mxu0
    %v1057 = vpop.f32.mrf.mxu0
    %1058 = vdwg.mxu0
    %1059 = vmatprep.subr.bf16.mxu0 %v708
    %1060 = vmatpush1.bf16.msra.mxu0 %v707
    %1061 = vmatprep.subr.bf16.mxu0 %v704
    %1062 = vmatpush1.bf16.msra.mxu0 %v703
    %1063 = vmatprep.subr.bf16.mxu0 %v700
    %1064 = vmatpush1.bf16.msra.mxu0 %v699
    %1065 = vmatprep.subr.bf16.mxu0 %v696
    %1066 = vmatpush1.bf16.msra.mxu0 %v695
    %1067 = vmatprep.subr.bf16.mxu0 %v692
    %1068 = vmatpush1.bf16.msra.mxu0 %v691
    %1069 = vmatprep.subr.bf16.mxu0 %v688
    %1070 = vmatpush1.bf16.msra.mxu0 %v687
    %1071 = vmatprep.subr.bf16.mxu0 %v684
    %1072 = vmatpush1.bf16.msra.mxu0 %v683
    %1073 = vmatprep.subr.bf16.mxu0 %v680
    %1074 = vmatpush1.bf16.msra.mxu0 %v679
    %1075 = vmatprep.subr.bf16.mxu0 %v740
    %1076 = vmatpush2.bf16.msra.mxu0 %v739
    %1077 = vmatprep.subr.bf16.mxu0 %v736
    %1078 = vmatpush2.bf16.msra.mxu0 %v735
    %1079 = vmatprep.subr.bf16.mxu0 %v732
    %1080 = vmatpush2.bf16.msra.mxu0 %v731
    %1081 = vmatprep.subr.bf16.mxu0 %v728
    %1082 = vmatpush2.bf16.msra.mxu0 %v727
    %1083 = vmatprep.subr.bf16.mxu0 %v724
    %1084 = vmatpush2.bf16.msra.mxu0 %v723
    %1085 = vmatprep.subr.bf16.mxu0 %v720
    %1086 = vmatpush2.bf16.msra.mxu0 %v719
    %1087 = vmatprep.subr.bf16.mxu0 %v716
    %1088 = vmatpush2.bf16.msra.mxu0 %v715
    %1089 = vmatprep.subr.bf16.mxu0 %v712
    %1090 = vmatpush2.bf16.msra.mxu0 %v711
    %1091 = vmatprep.mubr.bf16.mxu0 %v1017
    %1092 = vmatmul.mubr.bf16.gmra.mxu0 %v1016
    %v1093 = vpop.f32.mrf.mxu0
    %v1094 = vadd.f32 %v476, %v1093
    %v1095 = vpop.f32.mrf.mxu0
    %v1096 = vadd.f32 %v480, %v1095
    %v1097 = vpop.f32.mrf.mxu0
    %v1098 = vpop.f32.mrf.mxu0
    %1099 = vdwg.mxu0
    %v1100 = vmul.f32 %v1053, 0.5
    %v1101 = vtanh.pop %v1100
    %v1102 = vmul.f32 %v1101, 0.5
    %v1103 = vadd.f32 %v1102, 0.5
    %v1104 = vmul.f32 %v1055, 0.5
    %v1105 = vtanh.pop %v1104
    %v1106 = vmul.f32 %v1105, 0.5
    %v1107 = vadd.f32 %v1106, 0.5
    %v1108 = vtanh.pop %v1094
    %v1109 = vmul.f32 %v1096, 0.5
    %v1110 = vtanh.pop %v1109
    %v1111 = vmul.f32 %v1110, 0.5
    %v1112 = vadd.f32 %v1111, 0.5
    %v1113 = vmul.f32 %v1107, %v902
    %v1114 = vmul.f32 %v1103, %v1108
    %v1115 = vadd.f32 %v1113, %v1114
    %v1116 = vtanh.pop %v1115
    %v1117 = vmul.f32 %v1112, %v1116
    %s1118 = scalar_lea.vmem [#allocation4], 32
    %v1119 = vld [vmem:[%s1118] sm:$0xff]
    %v1120 = vld [vmem:[%s1118 + $0x8] sm:$0xff]
    %v1121 = vunpack.c.l.bf16 %v1119
    %v1122 = vunpack.c.h.bf16 %v1119
    %v1123 = vunpack.c.l.bf16 %v1120
    %v1124 = vunpack.c.h.bf16 %v1120
    %1125 = vmatprep.subr.bf16.mxu0 %v258
    %1126 = vmatpush1.bf16.msra.mxu0 %v257
    %1127 = vmatprep.subr.bf16.mxu0 %v254
    %1128 = vmatpush1.bf16.msra.mxu0 %v253
    %1129 = vmatprep.subr.bf16.mxu0 %v250
    %1130 = vmatpush1.bf16.msra.mxu0 %v249
    %1131 = vmatprep.subr.bf16.mxu0 %v246
    %1132 = vmatpush1.bf16.msra.mxu0 %v245
    %1133 = vmatprep.subr.bf16.mxu0 %v242
    %1134 = vmatpush1.bf16.msra.mxu0 %v241
    %1135 = vmatprep.subr.bf16.mxu0 %v238
    %1136 = vmatpush1.bf16.msra.mxu0 %v237
    %1137 = vmatprep.subr.bf16.mxu0 %v234
    %1138 = vmatpush1.bf16.msra.mxu0 %v233
    %1139 = vmatprep.subr.bf16.mxu0 %v230
    %1140 = vmatpush1.bf16.msra.mxu0 %v229
    %1141 = vmatprep.subr.bf16.mxu0 0
    %1142 = vmatpush2.bf16.msra.mxu0 0
    %1143 = vmatprep.subr.bf16.mxu0 0
    %1144 = vmatpush2.bf16.msra.mxu0 0
    %1145 = vmatprep.subr.bf16.mxu0 0
    %1146 = vmatpush2.bf16.msra.mxu0 0
    %1147 = vmatprep.subr.bf16.mxu0 0
    %1148 = vmatpush2.bf16.msra.mxu0 0
    %1149 = vmatprep.subr.bf16.mxu0 0
    %1150 = vmatpush2.bf16.msra.mxu0 0
    %1151 = vmatprep.subr.bf16.mxu0 0
    %1152 = vmatpush2.bf16.msra.mxu0 0
    %1153 = vmatprep.subr.bf16.mxu0 0
    %1154 = vmatpush2.bf16.msra.mxu0 0
    %1155 = vmatprep.subr.bf16.mxu0 0
    %1156 = vmatpush2.bf16.msra.mxu0 0
    %1157 = vmatprep.mubr.bf16.mxu0 0
    %1158 = vmatmul.mubr.bf16.gmra.mxu0 %v1016
    %v1159 = vpop.f32.mrf.mxu0
    %v1160 = vadd.f32 0.0, %v1159
    %v1161 = vpop.f32.mrf.mxu0
    %v1162 = vadd.f32 0.0, %v1161
    %v1163 = vpop.f32.mrf.mxu0
    %v1164 = vpop.f32.mrf.mxu0
    %1165 = vdwg.mxu0
    %1166 = vmatprep.subr.bf16.mxu0 %v260
    %1167 = vmatpush1.bf16.msra.mxu0 %v259
    %1168 = vmatprep.subr.bf16.mxu0 %v256
    %1169 = vmatpush1.bf16.msra.mxu0 %v255
    %1170 = vmatprep.subr.bf16.mxu0 %v252
    %1171 = vmatpush1.bf16.msra.mxu0 %v251
    %1172 = vmatprep.subr.bf16.mxu0 %v248
    %1173 = vmatpush1.bf16.msra.mxu0 %v247
    %1174 = vmatprep.subr.bf16.mxu0 %v244
    %1175 = vmatpush1.bf16.msra.mxu0 %v243
    %1176 = vmatprep.subr.bf16.mxu0 %v240
    %1177 = vmatpush1.bf16.msra.mxu0 %v239
    %1178 = vmatprep.subr.bf16.mxu0 %v236
    %1179 = vmatpush1.bf16.msra.mxu0 %v235
    %1180 = vmatprep.subr.bf16.mxu0 %v232
    %1181 = vmatpush1.bf16.msra.mxu0 %v231
    %1182 = vmatprep.subr.bf16.mxu0 0
    %1183 = vmatpush2.bf16.msra.mxu0 0
    %1184 = vmatprep.subr.bf16.mxu0 0
    %1185 = vmatpush2.bf16.msra.mxu0 0
    %1186 = vmatprep.subr.bf16.mxu0 0
    %1187 = vmatpush2.bf16.msra.mxu0 0
    %1188 = vmatprep.subr.bf16.mxu0 0
    %1189 = vmatpush2.bf16.msra.mxu0 0
    %1190 = vmatprep.subr.bf16.mxu0 0
    %1191 = vmatpush2.bf16.msra.mxu0 0
    %1192 = vmatprep.subr.bf16.mxu0 0
    %1193 = vmatpush2.bf16.msra.mxu0 0
    %1194 = vmatprep.subr.bf16.mxu0 0
    %1195 = vmatpush2.bf16.msra.mxu0 0
    %1196 = vmatprep.subr.bf16.mxu0 0
    %1197 = vmatpush2.bf16.msra.mxu0 0
    %1198 = vmatprep.mubr.bf16.mxu0 0
    %1199 = vmatmul.mubr.bf16.gmra.mxu0 %v1016
    %v1200 = vpop.f32.mrf.mxu0
    %v1201 = vadd.f32 0.0, %v1200
    %v1202 = vpop.f32.mrf.mxu0
    %v1203 = vadd.f32 0.0, %v1202
    %v1204 = vpop.f32.mrf.mxu0
    %v1205 = vpop.f32.mrf.mxu0
    %1206 = vdwg.mxu0
    %v1207 = vadd.f32 %v1121, %v1160
    %v1208 = vadd.f32 %v1122, %v1162
    %v1209 = vadd.f32 %v1123, %v1201
    %v1210 = vadd.f32 %v1124, %v1203
    %v1211 = vmul.f32 %v1207, 0.5
    %v1212 = vtanh.pop %v1211
    %v1213 = vmul.f32 %v1212, 0.5
    %v1214 = vadd.f32 %v1213, 0.5
    %v1215 = vmul.f32 %v1208, 0.5
    %v1216 = vtanh.pop %v1215
    %v1217 = vmul.f32 %v1216, 0.5
    %v1218 = vadd.f32 %v1217, 0.5
    %v1219 = vtanh.pop %v1209
    %v1220 = vmul.f32 %v1210, 0.5
    %v1221 = vtanh.pop %v1220
    %v1222 = vmul.f32 %v1221, 0.5
    %v1223 = vadd.f32 %v1222, 0.5
    %v1224 = vmul.f32 %v1218, %v1013
    %v1225 = vmul.f32 %v1214, %v1219
    %v1226 = vadd.f32 %v1224, %v1225
    %v1227 = vtanh.pop %v1226
    %v1228 = vmul.f32 %v1223, %v1227
    %v1229 = vpack.c.bf16 %v1228, %v1228
    %v1230 = vpack.c.bf16 %v1117, %v1117
    %1231 = vmatprep.subr.bf16.mxu0 %v706
    %1232 = vmatpush1.bf16.msra.mxu0 %v705
    %1233 = vmatprep.subr.bf16.mxu0 %v702
    %1234 = vmatpush1.bf16.msra.mxu0 %v701
    %1235 = vmatprep.subr.bf16.mxu0 %v698
    %1236 = vmatpush1.bf16.msra.mxu0 %v697
    %1237 = vmatprep.subr.bf16.mxu0 %v694
    %1238 = vmatpush1.bf16.msra.mxu0 %v693
    %1239 = vmatprep.subr.bf16.mxu0 %v690
    %1240 = vmatpush1.bf16.msra.mxu0 %v689
    %1241 = vmatprep.subr.bf16.mxu0 %v686
    %1242 = vmatpush1.bf16.msra.mxu0 %v685
    %1243 = vmatprep.subr.bf16.mxu0 %v682
    %1244 = vmatpush1.bf16.msra.mxu0 %v681
    %1245 = vmatprep.subr.bf16.mxu0 %v678
    %1246 = vmatpush1.bf16.msra.mxu0 %v677
    %1247 = vmatprep.subr.bf16.mxu0 %v738
    %1248 = vmatpush2.bf16.msra.mxu0 %v737
    %1249 = vmatprep.subr.bf16.mxu0 %v734
    %1250 = vmatpush2.bf16.msra.mxu0 %v733
    %1251 = vmatprep.subr.bf16.mxu0 %v730
    %1252 = vmatpush2.bf16.msra.mxu0 %v729
    %1253 = vmatprep.subr.bf16.mxu0 %v726
    %1254 = vmatpush2.bf16.msra.mxu0 %v725
    %1255 = vmatprep.subr.bf16.mxu0 %v722
    %1256 = vmatpush2.bf16.msra.mxu0 %v721
    %1257 = vmatprep.subr.bf16.mxu0 %v718
    %1258 = vmatpush2.bf16.msra.mxu0 %v717
    %1259 = vmatprep.subr.bf16.mxu0 %v714
    %1260 = vmatpush2.bf16.msra.mxu0 %v713
    %1261 = vmatprep.subr.bf16.mxu0 %v710
    %1262 = vmatpush2.bf16.msra.mxu0 %v709
    %1263 = vmatprep.mubr.bf16.mxu0 %v1230
    %1264 = vmatmul.mubr.bf16.gmra.mxu0 %v1229
    %v1265 = vpop.f32.mrf.mxu0
    %v1266 = vadd.f32 %v468, %v1265
    %v1267 = vpop.f32.mrf.mxu0
    %v1268 = vadd.f32 %v472, %v1267
    %v1269 = vpop.f32.mrf.mxu0
    %v1270 = vpop.f32.mrf.mxu0
    %1271 = vdwg.mxu0
    %1272 = vmatprep.subr.bf16.mxu0 %v708
    %1273 = vmatpush1.bf16.msra.mxu0 %v707
    %1274 = vmatprep.subr.bf16.mxu0 %v704
    %1275 = vmatpush1.bf16.msra.mxu0 %v703
    %1276 = vmatprep.subr.bf16.mxu0 %v700
    %1277 = vmatpush1.bf16.msra.mxu0 %v699
    %1278 = vmatprep.subr.bf16.mxu0 %v696
    %1279 = vmatpush1.bf16.msra.mxu0 %v695
    %1280 = vmatprep.subr.bf16.mxu0 %v692
    %1281 = vmatpush1.bf16.msra.mxu0 %v691
    %1282 = vmatprep.subr.bf16.mxu0 %v688
    %1283 = vmatpush1.bf16.msra.mxu0 %v687
    %1284 = vmatprep.subr.bf16.mxu0 %v684
    %1285 = vmatpush1.bf16.msra.mxu0 %v683
    %1286 = vmatprep.subr.bf16.mxu0 %v680
    %1287 = vmatpush1.bf16.msra.mxu0 %v679
    %1288 = vmatprep.subr.bf16.mxu0 %v740
    %1289 = vmatpush2.bf16.msra.mxu0 %v739
    %1290 = vmatprep.subr.bf16.mxu0 %v736
    %1291 = vmatpush2.bf16.msra.mxu0 %v735
    %1292 = vmatprep.subr.bf16.mxu0 %v732
    %1293 = vmatpush2.bf16.msra.mxu0 %v731
    %1294 = vmatprep.subr.bf16.mxu0 %v728
    %1295 = vmatpush2.bf16.msra.mxu0 %v727
    %1296 = vmatprep.subr.bf16.mxu0 %v724
    %1297 = vmatpush2.bf16.msra.mxu0 %v723
    %1298 = vmatprep.subr.bf16.mxu0 %v720
    %1299 = vmatpush2.bf16.msra.mxu0 %v719
    %1300 = vmatprep.subr.bf16.mxu0 %v716
    %1301 = vmatpush2.bf16.msra.mxu0 %v715
    %1302 = vmatprep.subr.bf16.mxu0 %v712
    %1303 = vmatpush2.bf16.msra.mxu0 %v711
    %1304 = vmatprep.mubr.bf16.mxu0 %v1230
    %1305 = vmatmul.mubr.bf16.gmra.mxu0 %v1229
    %v1306 = vpop.f32.mrf.mxu0
    %v1307 = vadd.f32 %v476, %v1306
    %v1308 = vpop.f32.mrf.mxu0
    %v1309 = vadd.f32 %v480, %v1308
    %v1310 = vpop.f32.mrf.mxu0
    %v1311 = vpop.f32.mrf.mxu0
    %1312 = vdwg.mxu0
    %v1313 = vmul.f32 %v1266, 0.5
    %v1314 = vtanh.pop %v1313
    %v1315 = vmul.f32 %v1314, 0.5
    %v1316 = vadd.f32 %v1315, 0.5
    %v1317 = vmul.f32 %v1268, 0.5
    %v1318 = vtanh.pop %v1317
    %v1319 = vmul.f32 %v1318, 0.5
    %v1320 = vadd.f32 %v1319, 0.5
    %v1321 = vtanh.pop %v1307
    %v1322 = vmul.f32 %v1309, 0.5
    %v1323 = vtanh.pop %v1322
    %v1324 = vmul.f32 %v1323, 0.5
    %v1325 = vadd.f32 %v1324, 0.5
    %v1326 = vmul.f32 %v1320, %v1115
    %v1327 = vmul.f32 %v1316, %v1321
    %v1328 = vadd.f32 %v1326, %v1327
    %v1329 = vtanh.pop %v1328
    %v1330 = vmul.f32 %v1325, %v1329
    %s1331 = scalar_lea.vmem [#allocation4], 48
    %v1332 = vld [vmem:[%s1331] sm:$0xff]
    %v1333 = vld [vmem:[%s1331 + $0x8] sm:$0xff]
    %v1334 = vunpack.c.l.bf16 %v1332
    %v1335 = vunpack.c.h.bf16 %v1332
    %v1336 = vunpack.c.l.bf16 %v1333
    %v1337 = vunpack.c.h.bf16 %v1333
    %1338 = vmatprep.subr.bf16.mxu0 %v258
    %1339 = vmatpush1.bf16.msra.mxu0 %v257
    %1340 = vmatprep.subr.bf16.mxu0 %v254
    %1341 = vmatpush1.bf16.msra.mxu0 %v253
    %1342 = vmatprep.subr.bf16.mxu0 %v250
    %1343 = vmatpush1.bf16.msra.mxu0 %v249
    %1344 = vmatprep.subr.bf16.mxu0 %v246
    %1345 = vmatpush1.bf16.msra.mxu0 %v245
    %1346 = vmatprep.subr.bf16.mxu0 %v242
    %1347 = vmatpush1.bf16.msra.mxu0 %v241
    %1348 = vmatprep.subr.bf16.mxu0 %v238
    %1349 = vmatpush1.bf16.msra.mxu0 %v237
    %1350 = vmatprep.subr.bf16.mxu0 %v234
    %1351 = vmatpush1.bf16.msra.mxu0 %v233
    %1352 = vmatprep.subr.bf16.mxu0 %v230
    %1353 = vmatpush1.bf16.msra.mxu0 %v229
    %1354 = vmatprep.subr.bf16.mxu0 0
    %1355 = vmatpush2.bf16.msra.mxu0 0
    %1356 = vmatprep.subr.bf16.mxu0 0
    %1357 = vmatpush2.bf16.msra.mxu0 0
    %1358 = vmatprep.subr.bf16.mxu0 0
    %1359 = vmatpush2.bf16.msra.mxu0 0
    %1360 = vmatprep.subr.bf16.mxu0 0
    %1361 = vmatpush2.bf16.msra.mxu0 0
    %1362 = vmatprep.subr.bf16.mxu0 0
    %1363 = vmatpush2.bf16.msra.mxu0 0
    %1364 = vmatprep.subr.bf16.mxu0 0
    %1365 = vmatpush2.bf16.msra.mxu0 0
    %1366 = vmatprep.subr.bf16.mxu0 0
    %1367 = vmatpush2.bf16.msra.mxu0 0
    %1368 = vmatprep.subr.bf16.mxu0 0
    %1369 = vmatpush2.bf16.msra.mxu0 0
    %1370 = vmatprep.mubr.bf16.mxu0 0
    %1371 = vmatmul.mubr.bf16.gmra.mxu0 %v1229
    %v1372 = vpop.f32.mrf.mxu0
    %v1373 = vadd.f32 0.0, %v1372
    %v1374 = vpop.f32.mrf.mxu0
    %v1375 = vadd.f32 0.0, %v1374
    %v1376 = vpop.f32.mrf.mxu0
    %v1377 = vpop.f32.mrf.mxu0
    %1378 = vdwg.mxu0
    %1379 = vmatprep.subr.bf16.mxu0 %v260
    %1380 = vmatpush1.bf16.msra.mxu0 %v259
    %1381 = vmatprep.subr.bf16.mxu0 %v256
    %1382 = vmatpush1.bf16.msra.mxu0 %v255
    %1383 = vmatprep.subr.bf16.mxu0 %v252
    %1384 = vmatpush1.bf16.msra.mxu0 %v251
    %1385 = vmatprep.subr.bf16.mxu0 %v248
    %1386 = vmatpush1.bf16.msra.mxu0 %v247
    %1387 = vmatprep.subr.bf16.mxu0 %v244
    %1388 = vmatpush1.bf16.msra.mxu0 %v243
    %1389 = vmatprep.subr.bf16.mxu0 %v240
    %1390 = vmatpush1.bf16.msra.mxu0 %v239
    %1391 = vmatprep.subr.bf16.mxu0 %v236
    %1392 = vmatpush1.bf16.msra.mxu0 %v235
    %1393 = vmatprep.subr.bf16.mxu0 %v232
    %1394 = vmatpush1.bf16.msra.mxu0 %v231
    %1395 = vmatprep.subr.bf16.mxu0 0
    %1396 = vmatpush2.bf16.msra.mxu0 0
    %1397 = vmatprep.subr.bf16.mxu0 0
    %1398 = vmatpush2.bf16.msra.mxu0 0
    %1399 = vmatprep.subr.bf16.mxu0 0
    %1400 = vmatpush2.bf16.msra.mxu0 0
    %1401 = vmatprep.subr.bf16.mxu0 0
    %1402 = vmatpush2.bf16.msra.mxu0 0
    %1403 = vmatprep.subr.bf16.mxu0 0
    %1404 = vmatpush2.bf16.msra.mxu0 0
    %1405 = vmatprep.subr.bf16.mxu0 0
    %1406 = vmatpush2.bf16.msra.mxu0 0
    %1407 = vmatprep.subr.bf16.mxu0 0
    %1408 = vmatpush2.bf16.msra.mxu0 0
    %1409 = vmatprep.subr.bf16.mxu0 0
    %1410 = vmatpush2.bf16.msra.mxu0 0
    %1411 = vmatprep.mubr.bf16.mxu0 0
    %1412 = vmatmul.mubr.bf16.gmra.mxu0 %v1229
    %v1413 = vpop.f32.mrf.mxu0
    %v1414 = vadd.f32 0.0, %v1413
    %v1415 = vpop.f32.mrf.mxu0
    %v1416 = vadd.f32 0.0, %v1415
    %v1417 = vpop.f32.mrf.mxu0
    %v1418 = vpop.f32.mrf.mxu0
    %1419 = vdwg.mxu0
    %v1420 = vadd.f32 %v1334, %v1373
    %v1421 = vadd.f32 %v1335, %v1375
    %v1422 = vadd.f32 %v1336, %v1414
    %v1423 = vadd.f32 %v1337, %v1416
    %v1424 = vmul.f32 %v1420, 0.5
    %v1425 = vtanh.pop %v1424
    %v1426 = vmul.f32 %v1425, 0.5
    %v1427 = vadd.f32 %v1426, 0.5
    %v1428 = vmul.f32 %v1421, 0.5
    %v1429 = vtanh.pop %v1428
    %v1430 = vmul.f32 %v1429, 0.5
    %v1431 = vadd.f32 %v1430, 0.5
    %v1432 = vtanh.pop %v1422
    %v1433 = vmul.f32 %v1423, 0.5
    %v1434 = vtanh.pop %v1433
    %v1435 = vmul.f32 %v1434, 0.5
    %v1436 = vadd.f32 %v1435, 0.5
    %v1437 = vmul.f32 %v1431, %v1226
    %v1438 = vmul.f32 %v1427, %v1432
    %v1439 = vadd.f32 %v1437, %v1438
    %v1440 = vtanh.pop %v1439
    %v1441 = vmul.f32 %v1436, %v1440
    %v1442 = vpack.c.bf16 %v1441, %v1441
    %v1443 = vpack.c.bf16 %v1330, %v1330
    %1444 = vmatprep.subr.bf16.mxu0 %v706
    %1445 = vmatpush1.bf16.msra.mxu0 %v705
    %1446 = vmatprep.subr.bf16.mxu0 %v702
    %1447 = vmatpush1.bf16.msra.mxu0 %v701
    %1448 = vmatprep.subr.bf16.mxu0 %v698
    %1449 = vmatpush1.bf16.msra.mxu0 %v697
    %1450 = vmatprep.subr.bf16.mxu0 %v694
    %1451 = vmatpush1.bf16.msra.mxu0 %v693
    %1452 = vmatprep.subr.bf16.mxu0 %v690
    %1453 = vmatpush1.bf16.msra.mxu0 %v689
    %1454 = vmatprep.subr.bf16.mxu0 %v686
    %1455 = vmatpush1.bf16.msra.mxu0 %v685
    %1456 = vmatprep.subr.bf16.mxu0 %v682
    %1457 = vmatpush1.bf16.msra.mxu0 %v681
    %1458 = vmatprep.subr.bf16.mxu0 %v678
    %1459 = vmatpush1.bf16.msra.mxu0 %v677
    %1460 = vmatprep.subr.bf16.mxu0 %v738
    %1461 = vmatpush2.bf16.msra.mxu0 %v737
    %1462 = vmatprep.subr.bf16.mxu0 %v734
    %1463 = vmatpush2.bf16.msra.mxu0 %v733
    %1464 = vmatprep.subr.bf16.mxu0 %v730
    %1465 = vmatpush2.bf16.msra.mxu0 %v729
    %1466 = vmatprep.subr.bf16.mxu0 %v726
    %1467 = vmatpush2.bf16.msra.mxu0 %v725
    %1468 = vmatprep.subr.bf16.mxu0 %v722
    %1469 = vmatpush2.bf16.msra.mxu0 %v721
    %1470 = vmatprep.subr.bf16.mxu0 %v718
    %1471 = vmatpush2.bf16.msra.mxu0 %v717
    %1472 = vmatprep.subr.bf16.mxu0 %v714
    %1473 = vmatpush2.bf16.msra.mxu0 %v713
    %1474 = vmatprep.subr.bf16.mxu0 %v710
    %1475 = vmatpush2.bf16.msra.mxu0 %v709
    %1476 = vmatprep.mubr.bf16.mxu0 %v1443
    %1477 = vmatmul.mubr.bf16.gmra.mxu0 %v1442
    %v1478 = vpop.f32.mrf.mxu0
    %v1479 = vadd.f32 %v468, %v1478
    %v1480 = vpop.f32.mrf.mxu0
    %v1481 = vadd.f32 %v472, %v1480
    %v1482 = vpop.f32.mrf.mxu0
    %v1483 = vpop.f32.mrf.mxu0
    %1484 = vdwg.mxu0
    %1485 = vmatprep.subr.bf16.mxu0 %v708
    %1486 = vmatpush1.bf16.msra.mxu0 %v707
    %1487 = vmatprep.subr.bf16.mxu0 %v704
    %1488 = vmatpush1.bf16.msra.mxu0 %v703
    %1489 = vmatprep.subr.bf16.mxu0 %v700
    %1490 = vmatpush1.bf16.msra.mxu0 %v699
    %1491 = vmatprep.subr.bf16.mxu0 %v696
    %1492 = vmatpush1.bf16.msra.mxu0 %v695
    %1493 = vmatprep.subr.bf16.mxu0 %v692
    %1494 = vmatpush1.bf16.msra.mxu0 %v691
    %1495 = vmatprep.subr.bf16.mxu0 %v688
    %1496 = vmatpush1.bf16.msra.mxu0 %v687
    %1497 = vmatprep.subr.bf16.mxu0 %v684
    %1498 = vmatpush1.bf16.msra.mxu0 %v683
    %1499 = vmatprep.subr.bf16.mxu0 %v680
    %1500 = vmatpush1.bf16.msra.mxu0 %v679
    %1501 = vmatprep.subr.bf16.mxu0 %v740
    %1502 = vmatpush2.bf16.msra.mxu0 %v739
    %1503 = vmatprep.subr.bf16.mxu0 %v736
    %1504 = vmatpush2.bf16.msra.mxu0 %v735
    %1505 = vmatprep.subr.bf16.mxu0 %v732
    %1506 = vmatpush2.bf16.msra.mxu0 %v731
    %1507 = vmatprep.subr.bf16.mxu0 %v728
    %1508 = vmatpush2.bf16.msra.mxu0 %v727
    %1509 = vmatprep.subr.bf16.mxu0 %v724
    %1510 = vmatpush2.bf16.msra.mxu0 %v723
    %1511 = vmatprep.subr.bf16.mxu0 %v720
    %1512 = vmatpush2.bf16.msra.mxu0 %v719
    %1513 = vmatprep.subr.bf16.mxu0 %v716
    %1514 = vmatpush2.bf16.msra.mxu0 %v715
    %1515 = vmatprep.subr.bf16.mxu0 %v712
    %1516 = vmatpush2.bf16.msra.mxu0 %v711
    %1517 = vmatprep.mubr.bf16.mxu0 %v1443
    %1518 = vmatmul.mubr.bf16.gmra.mxu0 %v1442
    %v1519 = vpop.f32.mrf.mxu0
    %v1520 = vadd.f32 %v476, %v1519
    %v1521 = vpop.f32.mrf.mxu0
    %v1522 = vadd.f32 %v480, %v1521
    %v1523 = vpop.f32.mrf.mxu0
    %v1524 = vpop.f32.mrf.mxu0
    %1525 = vdwg.mxu0
    %v1526 = vmul.f32 %v1479, 0.5
    %v1527 = vtanh.pop %v1526
    %v1528 = vmul.f32 %v1527, 0.5
    %v1529 = vadd.f32 %v1528, 0.5
    %v1530 = vmul.f32 %v1481, 0.5
    %v1531 = vtanh.pop %v1530
    %v1532 = vmul.f32 %v1531, 0.5
    %v1533 = vadd.f32 %v1532, 0.5
    %v1534 = vtanh.pop %v1520
    %v1535 = vmul.f32 %v1522, 0.5
    %v1536 = vtanh.pop %v1535
    %v1537 = vmul.f32 %v1536, 0.5
    %v1538 = vadd.f32 %v1537, 0.5
    %v1539 = vmul.f32 %v1533, %v1328
    %v1540 = vmul.f32 %v1529, %v1534
    %v1541 = vadd.f32 %v1539, %v1540
    %v1542 = vtanh.pop %v1541
    %v1543 = vmul.f32 %v1538, %v1542
    %s1544 = scalar_lea.vmem [#allocation4], 64
    %v1545 = vld [vmem:[%s1544] sm:$0xff]
    %v1546 = vld [vmem:[%s1544 + $0x8] sm:$0xff]
    %v1547 = vunpack.c.l.bf16 %v1545
    %v1548 = vunpack.c.h.bf16 %v1545
    %v1549 = vunpack.c.l.bf16 %v1546
    %v1550 = vunpack.c.h.bf16 %v1546
    %1551 = vmatprep.subr.bf16.mxu0 %v258
    %1552 = vmatpush1.bf16.msra.mxu0 %v257
    %1553 = vmatprep.subr.bf16.mxu0 %v254
    %1554 = vmatpush1.bf16.msra.mxu0 %v253
    %1555 = vmatprep.subr.bf16.mxu0 %v250
    %1556 = vmatpush1.bf16.msra.mxu0 %v249
    %1557 = vmatprep.subr.bf16.mxu0 %v246
    %1558 = vmatpush1.bf16.msra.mxu0 %v245
    %1559 = vmatprep.subr.bf16.mxu0 %v242
    %1560 = vmatpush1.bf16.msra.mxu0 %v241
    %1561 = vmatprep.subr.bf16.mxu0 %v238
    %1562 = vmatpush1.bf16.msra.mxu0 %v237
    %1563 = vmatprep.subr.bf16.mxu0 %v234
    %1564 = vmatpush1.bf16.msra.mxu0 %v233
    %1565 = vmatprep.subr.bf16.mxu0 %v230
    %1566 = vmatpush1.bf16.msra.mxu0 %v229
    %1567 = vmatprep.subr.bf16.mxu0 0
    %1568 = vmatpush2.bf16.msra.mxu0 0
    %1569 = vmatprep.subr.bf16.mxu0 0
    %1570 = vmatpush2.bf16.msra.mxu0 0
    %1571 = vmatprep.subr.bf16.mxu0 0
    %1572 = vmatpush2.bf16.msra.mxu0 0
    %1573 = vmatprep.subr.bf16.mxu0 0
    %1574 = vmatpush2.bf16.msra.mxu0 0
    %1575 = vmatprep.subr.bf16.mxu0 0
    %1576 = vmatpush2.bf16.msra.mxu0 0
    %1577 = vmatprep.subr.bf16.mxu0 0
    %1578 = vmatpush2.bf16.msra.mxu0 0
    %1579 = vmatprep.subr.bf16.mxu0 0
    %1580 = vmatpush2.bf16.msra.mxu0 0
    %1581 = vmatprep.subr.bf16.mxu0 0
    %1582 = vmatpush2.bf16.msra.mxu0 0
    %1583 = vmatprep.mubr.bf16.mxu0 0
    %1584 = vmatmul.mubr.bf16.gmra.mxu0 %v1442
    %v1585 = vpop.f32.mrf.mxu0
    %v1586 = vadd.f32 0.0, %v1585
    %v1587 = vpop.f32.mrf.mxu0
    %v1588 = vadd.f32 0.0, %v1587
    %v1589 = vpop.f32.mrf.mxu0
    %v1590 = vpop.f32.mrf.mxu0
    %1591 = vdwg.mxu0
    %1592 = vmatprep.subr.bf16.mxu0 %v260
    %1593 = vmatpush1.bf16.msra.mxu0 %v259
    %1594 = vmatprep.subr.bf16.mxu0 %v256
    %1595 = vmatpush1.bf16.msra.mxu0 %v255
    %1596 = vmatprep.subr.bf16.mxu0 %v252
    %1597 = vmatpush1.bf16.msra.mxu0 %v251
    %1598 = vmatprep.subr.bf16.mxu0 %v248
    %1599 = vmatpush1.bf16.msra.mxu0 %v247
    %1600 = vmatprep.subr.bf16.mxu0 %v244
    %1601 = vmatpush1.bf16.msra.mxu0 %v243
    %1602 = vmatprep.subr.bf16.mxu0 %v240
    %1603 = vmatpush1.bf16.msra.mxu0 %v239
    %1604 = vmatprep.subr.bf16.mxu0 %v236
    %1605 = vmatpush1.bf16.msra.mxu0 %v235
    %1606 = vmatprep.subr.bf16.mxu0 %v232
    %1607 = vmatpush1.bf16.msra.mxu0 %v231
    %1608 = vmatprep.subr.bf16.mxu0 0
    %1609 = vmatpush2.bf16.msra.mxu0 0
    %1610 = vmatprep.subr.bf16.mxu0 0
    %1611 = vmatpush2.bf16.msra.mxu0 0
    %1612 = vmatprep.subr.bf16.mxu0 0
    %1613 = vmatpush2.bf16.msra.mxu0 0
    %1614 = vmatprep.subr.bf16.mxu0 0
    %1615 = vmatpush2.bf16.msra.mxu0 0
    %1616 = vmatprep.subr.bf16.mxu0 0
    %1617 = vmatpush2.bf16.msra.mxu0 0
    %1618 = vmatprep.subr.bf16.mxu0 0
    %1619 = vmatpush2.bf16.msra.mxu0 0
    %1620 = vmatprep.subr.bf16.mxu0 0
    %1621 = vmatpush2.bf16.msra.mxu0 0
    %1622 = vmatprep.subr.bf16.mxu0 0
    %1623 = vmatpush2.bf16.msra.mxu0 0
    %1624 = vmatprep.mubr.bf16.mxu0 0
    %1625 = vmatmul.mubr.bf16.gmra.mxu0 %v1442
    %v1626 = vpop.f32.mrf.mxu0
    %v1627 = vadd.f32 0.0, %v1626
    %v1628 = vpop.f32.mrf.mxu0
    %v1629 = vadd.f32 0.0, %v1628
    %v1630 = vpop.f32.mrf.mxu0
    %v1631 = vpop.f32.mrf.mxu0
    %1632 = vdwg.mxu0
    %v1633 = vadd.f32 %v1547, %v1586
    %v1634 = vadd.f32 %v1548, %v1588
    %v1635 = vadd.f32 %v1549, %v1627
    %v1636 = vadd.f32 %v1550, %v1629
    %v1637 = vmul.f32 %v1633, 0.5
    %v1638 = vtanh.pop %v1637
    %v1639 = vmul.f32 %v1638, 0.5
    %v1640 = vadd.f32 %v1639, 0.5
    %v1641 = vmul.f32 %v1634, 0.5
    %v1642 = vtanh.pop %v1641
    %v1643 = vmul.f32 %v1642, 0.5
    %v1644 = vadd.f32 %v1643, 0.5
    %v1645 = vtanh.pop %v1635
    %v1646 = vmul.f32 %v1636, 0.5
    %v1647 = vtanh.pop %v1646
    %v1648 = vmul.f32 %v1647, 0.5
    %v1649 = vadd.f32 %v1648, 0.5
    %v1650 = vmul.f32 %v1644, %v1439
    %v1651 = vmul.f32 %v1640, %v1645
    %v1652 = vadd.f32 %v1650, %v1651
    %v1653 = vtanh.pop %v1652
    %v1654 = vmul.f32 %v1649, %v1653
    %v1655 = vpack.c.bf16 %v1654, %v1654
    %v1656 = vpack.c.bf16 %v1543, %v1543
    %1657 = vmatprep.subr.bf16.mxu0 %v706
    %1658 = vmatpush1.bf16.msra.mxu0 %v705
    %1659 = vmatprep.subr.bf16.mxu0 %v702
    %1660 = vmatpush1.bf16.msra.mxu0 %v701
    %1661 = vmatprep.subr.bf16.mxu0 %v698
    %1662 = vmatpush1.bf16.msra.mxu0 %v697
    %1663 = vmatprep.subr.bf16.mxu0 %v694
    %1664 = vmatpush1.bf16.msra.mxu0 %v693
    %1665 = vmatprep.subr.bf16.mxu0 %v690
    %1666 = vmatpush1.bf16.msra.mxu0 %v689
    %1667 = vmatprep.subr.bf16.mxu0 %v686
    %1668 = vmatpush1.bf16.msra.mxu0 %v685
    %1669 = vmatprep.subr.bf16.mxu0 %v682
    %1670 = vmatpush1.bf16.msra.mxu0 %v681
    %1671 = vmatprep.subr.bf16.mxu0 %v678
    %1672 = vmatpush1.bf16.msra.mxu0 %v677
    %1673 = vmatprep.subr.bf16.mxu0 %v738
    %1674 = vmatpush2.bf16.msra.mxu0 %v737
    %1675 = vmatprep.subr.bf16.mxu0 %v734
    %1676 = vmatpush2.bf16.msra.mxu0 %v733
    %1677 = vmatprep.subr.bf16.mxu0 %v730
    %1678 = vmatpush2.bf16.msra.mxu0 %v729
    %1679 = vmatprep.subr.bf16.mxu0 %v726
    %1680 = vmatpush2.bf16.msra.mxu0 %v725
    %1681 = vmatprep.subr.bf16.mxu0 %v722
    %1682 = vmatpush2.bf16.msra.mxu0 %v721
    %1683 = vmatprep.subr.bf16.mxu0 %v718
    %1684 = vmatpush2.bf16.msra.mxu0 %v717
    %1685 = vmatprep.subr.bf16.mxu0 %v714
    %1686 = vmatpush2.bf16.msra.mxu0 %v713
    %1687 = vmatprep.subr.bf16.mxu0 %v710
    %1688 = vmatpush2.bf16.msra.mxu0 %v709
    %1689 = vmatprep.mubr.bf16.mxu0 %v1656
    %1690 = vmatmul.mubr.bf16.gmra.mxu0 %v1655
    %v1691 = vpop.f32.mrf.mxu0
    %v1692 = vadd.f32 %v468, %v1691
    %v1693 = vpop.f32.mrf.mxu0
    %v1694 = vadd.f32 %v472, %v1693
    %v1695 = vpop.f32.mrf.mxu0
    %v1696 = vpop.f32.mrf.mxu0
    %1697 = vdwg.mxu0
    %1698 = vmatprep.subr.bf16.mxu0 %v708
    %1699 = vmatpush1.bf16.msra.mxu0 %v707
    %1700 = vmatprep.subr.bf16.mxu0 %v704
    %1701 = vmatpush1.bf16.msra.mxu0 %v703
    %1702 = vmatprep.subr.bf16.mxu0 %v700
    %1703 = vmatpush1.bf16.msra.mxu0 %v699
    %1704 = vmatprep.subr.bf16.mxu0 %v696
    %1705 = vmatpush1.bf16.msra.mxu0 %v695
    %1706 = vmatprep.subr.bf16.mxu0 %v692
    %1707 = vmatpush1.bf16.msra.mxu0 %v691
    %1708 = vmatprep.subr.bf16.mxu0 %v688
    %1709 = vmatpush1.bf16.msra.mxu0 %v687
    %1710 = vmatprep.subr.bf16.mxu0 %v684
    %1711 = vmatpush1.bf16.msra.mxu0 %v683
    %1712 = vmatprep.subr.bf16.mxu0 %v680
    %1713 = vmatpush1.bf16.msra.mxu0 %v679
    %1714 = vmatprep.subr.bf16.mxu0 %v740
    %1715 = vmatpush2.bf16.msra.mxu0 %v739
    %1716 = vmatprep.subr.bf16.mxu0 %v736
    %1717 = vmatpush2.bf16.msra.mxu0 %v735
    %1718 = vmatprep.subr.bf16.mxu0 %v732
    %1719 = vmatpush2.bf16.msra.mxu0 %v731
    %1720 = vmatprep.subr.bf16.mxu0 %v728
    %1721 = vmatpush2.bf16.msra.mxu0 %v727
    %1722 = vmatprep.subr.bf16.mxu0 %v724
    %1723 = vmatpush2.bf16.msra.mxu0 %v723
    %1724 = vmatprep.subr.bf16.mxu0 %v720
    %1725 = vmatpush2.bf16.msra.mxu0 %v719
    %1726 = vmatprep.subr.bf16.mxu0 %v716
    %1727 = vmatpush2.bf16.msra.mxu0 %v715
    %1728 = vmatprep.subr.bf16.mxu0 %v712
    %1729 = vmatpush2.bf16.msra.mxu0 %v711
    %1730 = vmatprep.mubr.bf16.mxu0 %v1656
    %1731 = vmatmul.mubr.bf16.gmra.mxu0 %v1655
    %v1732 = vpop.f32.mrf.mxu0
    %v1733 = vadd.f32 %v476, %v1732
    %v1734 = vpop.f32.mrf.mxu0
    %v1735 = vadd.f32 %v480, %v1734
    %v1736 = vpop.f32.mrf.mxu0
    %v1737 = vpop.f32.mrf.mxu0
    %1738 = vdwg.mxu0
    %v1739 = vmul.f32 %v1692, 0.5
    %v1740 = vtanh.pop %v1739
    %v1741 = vmul.f32 %v1740, 0.5
    %v1742 = vadd.f32 %v1741, 0.5
    %v1743 = vmul.f32 %v1694, 0.5
    %v1744 = vtanh.pop %v1743
    %v1745 = vmul.f32 %v1744, 0.5
    %v1746 = vadd.f32 %v1745, 0.5
    %v1747 = vtanh.pop %v1733
    %v1748 = vmul.f32 %v1735, 0.5
    %v1749 = vtanh.pop %v1748
    %v1750 = vmul.f32 %v1749, 0.5
    %v1751 = vadd.f32 %v1750, 0.5
    %v1752 = vmul.f32 %v1746, %v1541
    %v1753 = vmul.f32 %v1742, %v1747
    %v1754 = vadd.f32 %v1752, %v1753
    %v1755 = vtanh.pop %v1754
    %v1756 = vmul.f32 %v1751, %v1755
    %s1757 = scalar_lea.vmem [#allocation4], 80
    %v1758 = vld [vmem:[%s1757] sm:$0xff]
    %v1759 = vld [vmem:[%s1757 + $0x8] sm:$0xff]
    %v1760 = vunpack.c.l.bf16 %v1758
    %v1761 = vunpack.c.h.bf16 %v1758
    %v1762 = vunpack.c.l.bf16 %v1759
    %v1763 = vunpack.c.h.bf16 %v1759
    %1764 = vmatprep.subr.bf16.mxu0 %v258
    %1765 = vmatpush1.bf16.msra.mxu0 %v257
    %1766 = vmatprep.subr.bf16.mxu0 %v254
    %1767 = vmatpush1.bf16.msra.mxu0 %v253
    %1768 = vmatprep.subr.bf16.mxu0 %v250
    %1769 = vmatpush1.bf16.msra.mxu0 %v249
    %1770 = vmatprep.subr.bf16.mxu0 %v246
    %1771 = vmatpush1.bf16.msra.mxu0 %v245
    %1772 = vmatprep.subr.bf16.mxu0 %v242
    %1773 = vmatpush1.bf16.msra.mxu0 %v241
    %1774 = vmatprep.subr.bf16.mxu0 %v238
    %1775 = vmatpush1.bf16.msra.mxu0 %v237
    %1776 = vmatprep.subr.bf16.mxu0 %v234
    %1777 = vmatpush1.bf16.msra.mxu0 %v233
    %1778 = vmatprep.subr.bf16.mxu0 %v230
    %1779 = vmatpush1.bf16.msra.mxu0 %v229
    %1780 = vmatprep.subr.bf16.mxu0 0
    %1781 = vmatpush2.bf16.msra.mxu0 0
    %1782 = vmatprep.subr.bf16.mxu0 0
    %1783 = vmatpush2.bf16.msra.mxu0 0
    %1784 = vmatprep.subr.bf16.mxu0 0
    %1785 = vmatpush2.bf16.msra.mxu0 0
    %1786 = vmatprep.subr.bf16.mxu0 0
    %1787 = vmatpush2.bf16.msra.mxu0 0
    %1788 = vmatprep.subr.bf16.mxu0 0
    %1789 = vmatpush2.bf16.msra.mxu0 0
    %1790 = vmatprep.subr.bf16.mxu0 0
    %1791 = vmatpush2.bf16.msra.mxu0 0
    %1792 = vmatprep.subr.bf16.mxu0 0
    %1793 = vmatpush2.bf16.msra.mxu0 0
    %1794 = vmatprep.subr.bf16.mxu0 0
    %1795 = vmatpush2.bf16.msra.mxu0 0
    %1796 = vmatprep.mubr.bf16.mxu0 0
    %1797 = vmatmul.mubr.bf16.gmra.mxu0 %v1655
    %v1798 = vpop.f32.mrf.mxu0
    %v1799 = vadd.f32 0.0, %v1798
    %v1800 = vpop.f32.mrf.mxu0
    %v1801 = vadd.f32 0.0, %v1800
    %v1802 = vpop.f32.mrf.mxu0
    %v1803 = vpop.f32.mrf.mxu0
    %1804 = vdwg.mxu0
    %1805 = vmatprep.subr.bf16.mxu0 %v260
    %1806 = vmatpush1.bf16.msra.mxu0 %v259
    %1807 = vmatprep.subr.bf16.mxu0 %v256
    %1808 = vmatpush1.bf16.msra.mxu0 %v255
    %1809 = vmatprep.subr.bf16.mxu0 %v252
    %1810 = vmatpush1.bf16.msra.mxu0 %v251
    %1811 = vmatprep.subr.bf16.mxu0 %v248
    %1812 = vmatpush1.bf16.msra.mxu0 %v247
    %1813 = vmatprep.subr.bf16.mxu0 %v244
    %1814 = vmatpush1.bf16.msra.mxu0 %v243
    %1815 = vmatprep.subr.bf16.mxu0 %v240
    %1816 = vmatpush1.bf16.msra.mxu0 %v239
    %1817 = vmatprep.subr.bf16.mxu0 %v236
    %1818 = vmatpush1.bf16.msra.mxu0 %v235
    %1819 = vmatprep.subr.bf16.mxu0 %v232
    %1820 = vmatpush1.bf16.msra.mxu0 %v231
    %1821 = vmatprep.subr.bf16.mxu0 0
    %1822 = vmatpush2.bf16.msra.mxu0 0
    %1823 = vmatprep.subr.bf16.mxu0 0
    %1824 = vmatpush2.bf16.msra.mxu0 0
    %1825 = vmatprep.subr.bf16.mxu0 0
    %1826 = vmatpush2.bf16.msra.mxu0 0
    %1827 = vmatprep.subr.bf16.mxu0 0
    %1828 = vmatpush2.bf16.msra.mxu0 0
    %1829 = vmatprep.subr.bf16.mxu0 0
    %1830 = vmatpush2.bf16.msra.mxu0 0
    %1831 = vmatprep.subr.bf16.mxu0 0
    %1832 = vmatpush2.bf16.msra.mxu0 0
    %1833 = vmatprep.subr.bf16.mxu0 0
    %1834 = vmatpush2.bf16.msra.mxu0 0
    %1835 = vmatprep.subr.bf16.mxu0 0
    %1836 = vmatpush2.bf16.msra.mxu0 0
    %1837 = vmatprep.mubr.bf16.mxu0 0
    %1838 = vmatmul.mubr.bf16.gmra.mxu0 %v1655
    %v1839 = vpop.f32.mrf.mxu0
    %v1840 = vadd.f32 0.0, %v1839
    %v1841 = vpop.f32.mrf.mxu0
    %v1842 = vadd.f32 0.0, %v1841
    %v1843 = vpop.f32.mrf.mxu0
    %v1844 = vpop.f32.mrf.mxu0
    %1845 = vdwg.mxu0
    %v1846 = vadd.f32 %v1760, %v1799
    %v1847 = vadd.f32 %v1761, %v1801
    %v1848 = vadd.f32 %v1762, %v1840
    %v1849 = vadd.f32 %v1763, %v1842
    %v1850 = vmul.f32 %v1846, 0.5
    %v1851 = vtanh.pop %v1850
    %v1852 = vmul.f32 %v1851, 0.5
    %v1853 = vadd.f32 %v1852, 0.5
    %v1854 = vmul.f32 %v1847, 0.5
    %v1855 = vtanh.pop %v1854
    %v1856 = vmul.f32 %v1855, 0.5
    %v1857 = vadd.f32 %v1856, 0.5
    %v1858 = vtanh.pop %v1848
    %v1859 = vmul.f32 %v1849, 0.5
    %v1860 = vtanh.pop %v1859
    %v1861 = vmul.f32 %v1860, 0.5
    %v1862 = vadd.f32 %v1861, 0.5
    %v1863 = vmul.f32 %v1857, %v1652
    %v1864 = vmul.f32 %v1853, %v1858
    %v1865 = vadd.f32 %v1863, %v1864
    %v1866 = vtanh.pop %v1865
    %v1867 = vmul.f32 %v1862, %v1866
    %v1868 = vpack.c.bf16 %v1867, %v1867
    %v1869 = vpack.c.bf16 %v1756, %v1756
    %1870 = vmatprep.subr.bf16.mxu0 %v706
    %1871 = vmatpush1.bf16.msra.mxu0 %v705
    %1872 = vmatprep.subr.bf16.mxu0 %v702
    %1873 = vmatpush1.bf16.msra.mxu0 %v701
    %1874 = vmatprep.subr.bf16.mxu0 %v698
    %1875 = vmatpush1.bf16.msra.mxu0 %v697
    %1876 = vmatprep.subr.bf16.mxu0 %v694
    %1877 = vmatpush1.bf16.msra.mxu0 %v693
    %1878 = vmatprep.subr.bf16.mxu0 %v690
    %1879 = vmatpush1.bf16.msra.mxu0 %v689
    %1880 = vmatprep.subr.bf16.mxu0 %v686
    %1881 = vmatpush1.bf16.msra.mxu0 %v685
    %1882 = vmatprep.subr.bf16.mxu0 %v682
    %1883 = vmatpush1.bf16.msra.mxu0 %v681
    %1884 = vmatprep.subr.bf16.mxu0 %v678
    %1885 = vmatpush1.bf16.msra.mxu0 %v677
    %1886 = vmatprep.subr.bf16.mxu0 %v738
    %1887 = vmatpush2.bf16.msra.mxu0 %v737
    %1888 = vmatprep.subr.bf16.mxu0 %v734
    %1889 = vmatpush2.bf16.msra.mxu0 %v733
    %1890 = vmatprep.subr.bf16.mxu0 %v730
    %1891 = vmatpush2.bf16.msra.mxu0 %v729
    %1892 = vmatprep.subr.bf16.mxu0 %v726
    %1893 = vmatpush2.bf16.msra.mxu0 %v725
    %1894 = vmatprep.subr.bf16.mxu0 %v722
    %1895 = vmatpush2.bf16.msra.mxu0 %v721
    %1896 = vmatprep.subr.bf16.mxu0 %v718
    %1897 = vmatpush2.bf16.msra.mxu0 %v717
    %1898 = vmatprep.subr.bf16.mxu0 %v714
    %1899 = vmatpush2.bf16.msra.mxu0 %v713
    %1900 = vmatprep.subr.bf16.mxu0 %v710
    %1901 = vmatpush2.bf16.msra.mxu0 %v709
    %1902 = vmatprep.mubr.bf16.mxu0 %v1869
    %1903 = vmatmul.mubr.bf16.gmra.mxu0 %v1868
    %v1904 = vpop.f32.mrf.mxu0
    %v1905 = vadd.f32 %v468, %v1904
    %v1906 = vpop.f32.mrf.mxu0
    %v1907 = vadd.f32 %v472, %v1906
    %v1908 = vpop.f32.mrf.mxu0
    %v1909 = vpop.f32.mrf.mxu0
    %1910 = vdwg.mxu0
    %1911 = vmatprep.subr.bf16.mxu0 %v708
    %1912 = vmatpush1.bf16.msra.mxu0 %v707
    %1913 = vmatprep.subr.bf16.mxu0 %v704
    %1914 = vmatpush1.bf16.msra.mxu0 %v703
    %1915 = vmatprep.subr.bf16.mxu0 %v700
    %1916 = vmatpush1.bf16.msra.mxu0 %v699
    %1917 = vmatprep.subr.bf16.mxu0 %v696
    %1918 = vmatpush1.bf16.msra.mxu0 %v695
    %1919 = vmatprep.subr.bf16.mxu0 %v692
    %1920 = vmatpush1.bf16.msra.mxu0 %v691
    %1921 = vmatprep.subr.bf16.mxu0 %v688
    %1922 = vmatpush1.bf16.msra.mxu0 %v687
    %1923 = vmatprep.subr.bf16.mxu0 %v684
    %1924 = vmatpush1.bf16.msra.mxu0 %v683
    %1925 = vmatprep.subr.bf16.mxu0 %v680
    %1926 = vmatpush1.bf16.msra.mxu0 %v679
    %1927 = vmatprep.subr.bf16.mxu0 %v740
    %1928 = vmatpush2.bf16.msra.mxu0 %v739
    %1929 = vmatprep.subr.bf16.mxu0 %v736
    %1930 = vmatpush2.bf16.msra.mxu0 %v735
    %1931 = vmatprep.subr.bf16.mxu0 %v732
    %1932 = vmatpush2.bf16.msra.mxu0 %v731
    %1933 = vmatprep.subr.bf16.mxu0 %v728
    %1934 = vmatpush2.bf16.msra.mxu0 %v727
    %1935 = vmatprep.subr.bf16.mxu0 %v724
    %1936 = vmatpush2.bf16.msra.mxu0 %v723
    %1937 = vmatprep.subr.bf16.mxu0 %v720
    %1938 = vmatpush2.bf16.msra.mxu0 %v719
    %1939 = vmatprep.subr.bf16.mxu0 %v716
    %1940 = vmatpush2.bf16.msra.mxu0 %v715
    %1941 = vmatprep.subr.bf16.mxu0 %v712
    %1942 = vmatpush2.bf16.msra.mxu0 %v711
    %1943 = vmatprep.mubr.bf16.mxu0 %v1869
    %1944 = vmatmul.mubr.bf16.gmra.mxu0 %v1868
    %v1945 = vpop.f32.mrf.mxu0
    %v1946 = vadd.f32 %v476, %v1945
    %v1947 = vpop.f32.mrf.mxu0
    %v1948 = vadd.f32 %v480, %v1947
    %v1949 = vpop.f32.mrf.mxu0
    %v1950 = vpop.f32.mrf.mxu0
    %1951 = vdwg.mxu0
    %v1952 = vmul.f32 %v1905, 0.5
    %v1953 = vtanh.pop %v1952
    %v1954 = vmul.f32 %v1953, 0.5
    %v1955 = vadd.f32 %v1954, 0.5
    %v1956 = vmul.f32 %v1907, 0.5
    %v1957 = vtanh.pop %v1956
    %v1958 = vmul.f32 %v1957, 0.5
    %v1959 = vadd.f32 %v1958, 0.5
    %v1960 = vtanh.pop %v1946
    %v1961 = vmul.f32 %v1948, 0.5
    %v1962 = vtanh.pop %v1961
    %v1963 = vmul.f32 %v1962, 0.5
    %v1964 = vadd.f32 %v1963, 0.5
    %v1965 = vmul.f32 %v1959, %v1754
    %v1966 = vmul.f32 %v1955, %v1960
    %v1967 = vadd.f32 %v1965, %v1966
    %v1968 = vtanh.pop %v1967
    %v1969 = vmul.f32 %v1964, %v1968
    %s1970 = scalar_lea.vmem [#allocation4], 96
    %v1971 = vld [vmem:[%s1970] sm:$0xff]
    %v1972 = vld [vmem:[%s1970 + $0x8] sm:$0xff]
    %v1973 = vunpack.c.l.bf16 %v1971
    %v1974 = vunpack.c.h.bf16 %v1971
    %v1975 = vunpack.c.l.bf16 %v1972
    %v1976 = vunpack.c.h.bf16 %v1972
    %1977 = vmatprep.subr.bf16.mxu0 %v258
    %1978 = vmatpush1.bf16.msra.mxu0 %v257
    %1979 = vmatprep.subr.bf16.mxu0 %v254
    %1980 = vmatpush1.bf16.msra.mxu0 %v253
    %1981 = vmatprep.subr.bf16.mxu0 %v250
    %1982 = vmatpush1.bf16.msra.mxu0 %v249
    %1983 = vmatprep.subr.bf16.mxu0 %v246
    %1984 = vmatpush1.bf16.msra.mxu0 %v245
    %1985 = vmatprep.subr.bf16.mxu0 %v242
    %1986 = vmatpush1.bf16.msra.mxu0 %v241
    %1987 = vmatprep.subr.bf16.mxu0 %v238
    %1988 = vmatpush1.bf16.msra.mxu0 %v237
    %1989 = vmatprep.subr.bf16.mxu0 %v234
    %1990 = vmatpush1.bf16.msra.mxu0 %v233
    %1991 = vmatprep.subr.bf16.mxu0 %v230
    %1992 = vmatpush1.bf16.msra.mxu0 %v229
    %1993 = vmatprep.subr.bf16.mxu0 0
    %1994 = vmatpush2.bf16.msra.mxu0 0
    %1995 = vmatprep.subr.bf16.mxu0 0
    %1996 = vmatpush2.bf16.msra.mxu0 0
    %1997 = vmatprep.subr.bf16.mxu0 0
    %1998 = vmatpush2.bf16.msra.mxu0 0
    %1999 = vmatprep.subr.bf16.mxu0 0
    %2000 = vmatpush2.bf16.msra.mxu0 0
    %2001 = vmatprep.subr.bf16.mxu0 0
    %2002 = vmatpush2.bf16.msra.mxu0 0
    %2003 = vmatprep.subr.bf16.mxu0 0
    %2004 = vmatpush2.bf16.msra.mxu0 0
    %2005 = vmatprep.subr.bf16.mxu0 0
    %2006 = vmatpush2.bf16.msra.mxu0 0
    %2007 = vmatprep.subr.bf16.mxu0 0
    %2008 = vmatpush2.bf16.msra.mxu0 0
    %2009 = vmatprep.mubr.bf16.mxu0 0
    %2010 = vmatmul.mubr.bf16.gmra.mxu0 %v1868
    %v2011 = vpop.f32.mrf.mxu0
    %v2012 = vadd.f32 0.0, %v2011
    %v2013 = vpop.f32.mrf.mxu0
    %v2014 = vadd.f32 0.0, %v2013
    %v2015 = vpop.f32.mrf.mxu0
    %v2016 = vpop.f32.mrf.mxu0
    %2017 = vdwg.mxu0
    %2018 = vmatprep.subr.bf16.mxu0 %v260
    %2019 = vmatpush1.bf16.msra.mxu0 %v259
    %2020 = vmatprep.subr.bf16.mxu0 %v256
    %2021 = vmatpush1.bf16.msra.mxu0 %v255
    %2022 = vmatprep.subr.bf16.mxu0 %v252
    %2023 = vmatpush1.bf16.msra.mxu0 %v251
    %2024 = vmatprep.subr.bf16.mxu0 %v248
    %2025 = vmatpush1.bf16.msra.mxu0 %v247
    %2026 = vmatprep.subr.bf16.mxu0 %v244
    %2027 = vmatpush1.bf16.msra.mxu0 %v243
    %2028 = vmatprep.subr.bf16.mxu0 %v240
    %2029 = vmatpush1.bf16.msra.mxu0 %v239
    %2030 = vmatprep.subr.bf16.mxu0 %v236
    %2031 = vmatpush1.bf16.msra.mxu0 %v235
    %2032 = vmatprep.subr.bf16.mxu0 %v232
    %2033 = vmatpush1.bf16.msra.mxu0 %v231
    %2034 = vmatprep.subr.bf16.mxu0 0
    %2035 = vmatpush2.bf16.msra.mxu0 0
    %2036 = vmatprep.subr.bf16.mxu0 0
    %2037 = vmatpush2.bf16.msra.mxu0 0
    %2038 = vmatprep.subr.bf16.mxu0 0
    %2039 = vmatpush2.bf16.msra.mxu0 0
    %2040 = vmatprep.subr.bf16.mxu0 0
    %2041 = vmatpush2.bf16.msra.mxu0 0
    %2042 = vmatprep.subr.bf16.mxu0 0
    %2043 = vmatpush2.bf16.msra.mxu0 0
    %2044 = vmatprep.subr.bf16.mxu0 0
    %2045 = vmatpush2.bf16.msra.mxu0 0
    %2046 = vmatprep.subr.bf16.mxu0 0
    %2047 = vmatpush2.bf16.msra.mxu0 0
    %2048 = vmatprep.subr.bf16.mxu0 0
    %2049 = vmatpush2.bf16.msra.mxu0 0
    %2050 = vmatprep.mubr.bf16.mxu0 0
    %2051 = vmatmul.mubr.bf16.gmra.mxu0 %v1868
    %v2052 = vpop.f32.mrf.mxu0
    %v2053 = vadd.f32 0.0, %v2052
    %v2054 = vpop.f32.mrf.mxu0
    %v2055 = vadd.f32 0.0, %v2054
    %v2056 = vpop.f32.mrf.mxu0
    %v2057 = vpop.f32.mrf.mxu0
    %2058 = vdwg.mxu0
    %v2059 = vadd.f32 %v1973, %v2012
    %v2060 = vadd.f32 %v1974, %v2014
    %v2061 = vadd.f32 %v1975, %v2053
    %v2062 = vadd.f32 %v1976, %v2055
    %v2063 = vmul.f32 %v2059, 0.5
    %v2064 = vtanh.pop %v2063
    %v2065 = vmul.f32 %v2064, 0.5
    %v2066 = vadd.f32 %v2065, 0.5
    %v2067 = vmul.f32 %v2060, 0.5
    %v2068 = vtanh.pop %v2067
    %v2069 = vmul.f32 %v2068, 0.5
    %v2070 = vadd.f32 %v2069, 0.5
    %v2071 = vtanh.pop %v2061
    %v2072 = vmul.f32 %v2062, 0.5
    %v2073 = vtanh.pop %v2072
    %v2074 = vmul.f32 %v2073, 0.5
    %v2075 = vadd.f32 %v2074, 0.5
    %v2076 = vmul.f32 %v2070, %v1865
    %v2077 = vmul.f32 %v2066, %v2071
    %v2078 = vadd.f32 %v2076, %v2077
    %v2079 = vtanh.pop %v2078
    %v2080 = vmul.f32 %v2075, %v2079
    %v2081 = vpack.c.bf16 %v2080, %v2080
    %v2082 = vpack.c.bf16 %v1969, %v1969
    %2083 = vmatprep.subr.bf16.mxu0 %v706
    %2084 = vmatpush1.bf16.msra.mxu0 %v705
    %2085 = vmatprep.subr.bf16.mxu0 %v702
    %2086 = vmatpush1.bf16.msra.mxu0 %v701
    %2087 = vmatprep.subr.bf16.mxu0 %v698
    %2088 = vmatpush1.bf16.msra.mxu0 %v697
    %2089 = vmatprep.subr.bf16.mxu0 %v694
    %2090 = vmatpush1.bf16.msra.mxu0 %v693
    %2091 = vmatprep.subr.bf16.mxu0 %v690
    %2092 = vmatpush1.bf16.msra.mxu0 %v689
    %2093 = vmatprep.subr.bf16.mxu0 %v686
    %2094 = vmatpush1.bf16.msra.mxu0 %v685
    %2095 = vmatprep.subr.bf16.mxu0 %v682
    %2096 = vmatpush1.bf16.msra.mxu0 %v681
    %2097 = vmatprep.subr.bf16.mxu0 %v678
    %2098 = vmatpush1.bf16.msra.mxu0 %v677
    %2099 = vmatprep.subr.bf16.mxu0 %v738
    %2100 = vmatpush2.bf16.msra.mxu0 %v737
    %2101 = vmatprep.subr.bf16.mxu0 %v734
    %2102 = vmatpush2.bf16.msra.mxu0 %v733
    %2103 = vmatprep.subr.bf16.mxu0 %v730
    %2104 = vmatpush2.bf16.msra.mxu0 %v729
    %2105 = vmatprep.subr.bf16.mxu0 %v726
    %2106 = vmatpush2.bf16.msra.mxu0 %v725
    %2107 = vmatprep.subr.bf16.mxu0 %v722
    %2108 = vmatpush2.bf16.msra.mxu0 %v721
    %2109 = vmatprep.subr.bf16.mxu0 %v718
    %2110 = vmatpush2.bf16.msra.mxu0 %v717
    %2111 = vmatprep.subr.bf16.mxu0 %v714
    %2112 = vmatpush2.bf16.msra.mxu0 %v713
    %2113 = vmatprep.subr.bf16.mxu0 %v710
    %2114 = vmatpush2.bf16.msra.mxu0 %v709
    %2115 = vmatprep.mubr.bf16.mxu0 %v2082
    %2116 = vmatmul.mubr.bf16.gmra.mxu0 %v2081
    %v2117 = vpop.f32.mrf.mxu0
    %v2118 = vadd.f32 %v468, %v2117
    %v2119 = vpop.f32.mrf.mxu0
    %v2120 = vadd.f32 %v472, %v2119
    %v2121 = vpop.f32.mrf.mxu0
    %v2122 = vpop.f32.mrf.mxu0
    %2123 = vdwg.mxu0
    %2124 = vmatprep.subr.bf16.mxu0 %v708
    %2125 = vmatpush1.bf16.msra.mxu0 %v707
    %2126 = vmatprep.subr.bf16.mxu0 %v704
    %2127 = vmatpush1.bf16.msra.mxu0 %v703
    %2128 = vmatprep.subr.bf16.mxu0 %v700
    %2129 = vmatpush1.bf16.msra.mxu0 %v699
    %2130 = vmatprep.subr.bf16.mxu0 %v696
    %2131 = vmatpush1.bf16.msra.mxu0 %v695
    %2132 = vmatprep.subr.bf16.mxu0 %v692
    %2133 = vmatpush1.bf16.msra.mxu0 %v691
    %2134 = vmatprep.subr.bf16.mxu0 %v688
    %2135 = vmatpush1.bf16.msra.mxu0 %v687
    %2136 = vmatprep.subr.bf16.mxu0 %v684
    %2137 = vmatpush1.bf16.msra.mxu0 %v683
    %2138 = vmatprep.subr.bf16.mxu0 %v680
    %2139 = vmatpush1.bf16.msra.mxu0 %v679
    %2140 = vmatprep.subr.bf16.mxu0 %v740
    %2141 = vmatpush2.bf16.msra.mxu0 %v739
    %2142 = vmatprep.subr.bf16.mxu0 %v736
    %2143 = vmatpush2.bf16.msra.mxu0 %v735
    %2144 = vmatprep.subr.bf16.mxu0 %v732
    %2145 = vmatpush2.bf16.msra.mxu0 %v731
    %2146 = vmatprep.subr.bf16.mxu0 %v728
    %2147 = vmatpush2.bf16.msra.mxu0 %v727
    %2148 = vmatprep.subr.bf16.mxu0 %v724
    %2149 = vmatpush2.bf16.msra.mxu0 %v723
    %2150 = vmatprep.subr.bf16.mxu0 %v720
    %2151 = vmatpush2.bf16.msra.mxu0 %v719
    %2152 = vmatprep.subr.bf16.mxu0 %v716
    %2153 = vmatpush2.bf16.msra.mxu0 %v715
    %2154 = vmatprep.subr.bf16.mxu0 %v712
    %2155 = vmatpush2.bf16.msra.mxu0 %v711
    %2156 = vmatprep.mubr.bf16.mxu0 %v2082
    %2157 = vmatmul.mubr.bf16.gmra.mxu0 %v2081
    %v2158 = vpop.f32.mrf.mxu0
    %v2159 = vadd.f32 %v476, %v2158
    %v2160 = vpop.f32.mrf.mxu0
    %v2161 = vadd.f32 %v480, %v2160
    %v2162 = vpop.f32.mrf.mxu0
    %v2163 = vpop.f32.mrf.mxu0
    %2164 = vdwg.mxu0
    %v2165 = vmul.f32 %v2118, 0.5
    %v2166 = vtanh.pop %v2165
    %v2167 = vmul.f32 %v2166, 0.5
    %v2168 = vadd.f32 %v2167, 0.5
    %v2169 = vmul.f32 %v2120, 0.5
    %v2170 = vtanh.pop %v2169
    %v2171 = vmul.f32 %v2170, 0.5
    %v2172 = vadd.f32 %v2171, 0.5
    %v2173 = vtanh.pop %v2159
    %v2174 = vmul.f32 %v2161, 0.5
    %v2175 = vtanh.pop %v2174
    %v2176 = vmul.f32 %v2175, 0.5
    %v2177 = vadd.f32 %v2176, 0.5
    %v2178 = vmul.f32 %v2172, %v1967
    %v2179 = vmul.f32 %v2168, %v2173
    %v2180 = vadd.f32 %v2178, %v2179
    %v2181 = vtanh.pop %v2180
    %v2182 = vmul.f32 %v2177, %v2181
    %s2183 = scalar_lea.vmem [#allocation4], 112
    %v2184 = vld [vmem:[%s2183] sm:$0xff]
    %v2185 = vld [vmem:[%s2183 + $0x8] sm:$0xff]
    %v2186 = vunpack.c.l.bf16 %v2184
    %v2187 = vunpack.c.h.bf16 %v2184
    %v2188 = vunpack.c.l.bf16 %v2185
    %v2189 = vunpack.c.h.bf16 %v2185
    %2190 = vmatprep.subr.bf16.mxu0 %v258
    %2191 = vmatpush1.bf16.msra.mxu0 %v257
    %2192 = vmatprep.subr.bf16.mxu0 %v254
    %2193 = vmatpush1.bf16.msra.mxu0 %v253
    %2194 = vmatprep.subr.bf16.mxu0 %v250
    %2195 = vmatpush1.bf16.msra.mxu0 %v249
    %2196 = vmatprep.subr.bf16.mxu0 %v246
    %2197 = vmatpush1.bf16.msra.mxu0 %v245
    %2198 = vmatprep.subr.bf16.mxu0 %v242
    %2199 = vmatpush1.bf16.msra.mxu0 %v241
    %2200 = vmatprep.subr.bf16.mxu0 %v238
    %2201 = vmatpush1.bf16.msra.mxu0 %v237
    %2202 = vmatprep.subr.bf16.mxu0 %v234
    %2203 = vmatpush1.bf16.msra.mxu0 %v233
    %2204 = vmatprep.subr.bf16.mxu0 %v230
    %2205 = vmatpush1.bf16.msra.mxu0 %v229
    %2206 = vmatprep.subr.bf16.mxu0 0
    %2207 = vmatpush2.bf16.msra.mxu0 0
    %2208 = vmatprep.subr.bf16.mxu0 0
    %2209 = vmatpush2.bf16.msra.mxu0 0
    %2210 = vmatprep.subr.bf16.mxu0 0
    %2211 = vmatpush2.bf16.msra.mxu0 0
    %2212 = vmatprep.subr.bf16.mxu0 0
    %2213 = vmatpush2.bf16.msra.mxu0 0
    %2214 = vmatprep.subr.bf16.mxu0 0
    %2215 = vmatpush2.bf16.msra.mxu0 0
    %2216 = vmatprep.subr.bf16.mxu0 0
    %2217 = vmatpush2.bf16.msra.mxu0 0
    %2218 = vmatprep.subr.bf16.mxu0 0
    %2219 = vmatpush2.bf16.msra.mxu0 0
    %2220 = vmatprep.subr.bf16.mxu0 0
    %2221 = vmatpush2.bf16.msra.mxu0 0
    %2222 = vmatprep.mubr.bf16.mxu0 0
    %2223 = vmatmul.mubr.bf16.gmra.mxu0 %v2081
    %v2224 = vpop.f32.mrf.mxu0
    %v2225 = vadd.f32 0.0, %v2224
    %v2226 = vpop.f32.mrf.mxu0
    %v2227 = vadd.f32 0.0, %v2226
    %v2228 = vpop.f32.mrf.mxu0
    %v2229 = vpop.f32.mrf.mxu0
    %2230 = vdwg.mxu0
    %2231 = vmatprep.subr.bf16.mxu0 %v260
    %2232 = vmatpush1.bf16.msra.mxu0 %v259
    %2233 = vmatprep.subr.bf16.mxu0 %v256
    %2234 = vmatpush1.bf16.msra.mxu0 %v255
    %2235 = vmatprep.subr.bf16.mxu0 %v252
    %2236 = vmatpush1.bf16.msra.mxu0 %v251
    %2237 = vmatprep.subr.bf16.mxu0 %v248
    %2238 = vmatpush1.bf16.msra.mxu0 %v247
    %2239 = vmatprep.subr.bf16.mxu0 %v244
    %2240 = vmatpush1.bf16.msra.mxu0 %v243
    %2241 = vmatprep.subr.bf16.mxu0 %v240
    %2242 = vmatpush1.bf16.msra.mxu0 %v239
    %2243 = vmatprep.subr.bf16.mxu0 %v236
    %2244 = vmatpush1.bf16.msra.mxu0 %v235
    %2245 = vmatprep.subr.bf16.mxu0 %v232
    %2246 = vmatpush1.bf16.msra.mxu0 %v231
    %2247 = vmatprep.subr.bf16.mxu0 0
    %2248 = vmatpush2.bf16.msra.mxu0 0
    %2249 = vmatprep.subr.bf16.mxu0 0
    %2250 = vmatpush2.bf16.msra.mxu0 0
    %2251 = vmatprep.subr.bf16.mxu0 0
    %2252 = vmatpush2.bf16.msra.mxu0 0
    %2253 = vmatprep.subr.bf16.mxu0 0
    %2254 = vmatpush2.bf16.msra.mxu0 0
    %2255 = vmatprep.subr.bf16.mxu0 0
    %2256 = vmatpush2.bf16.msra.mxu0 0
    %2257 = vmatprep.subr.bf16.mxu0 0
    %2258 = vmatpush2.bf16.msra.mxu0 0
    %2259 = vmatprep.subr.bf16.mxu0 0
    %2260 = vmatpush2.bf16.msra.mxu0 0
    %2261 = vmatprep.subr.bf16.mxu0 0
    %2262 = vmatpush2.bf16.msra.mxu0 0
    %2263 = vmatprep.mubr.bf16.mxu0 0
    %2264 = vmatmul.mubr.bf16.gmra.mxu0 %v2081
    %v2265 = vpop.f32.mrf.mxu0
    %v2266 = vadd.f32 0.0, %v2265
    %v2267 = vpop.f32.mrf.mxu0
    %v2268 = vadd.f32 0.0, %v2267
    %v2269 = vpop.f32.mrf.mxu0
    %v2270 = vpop.f32.mrf.mxu0
    %2271 = vdwg.mxu0
    %v2272 = vadd.f32 %v2186, %v2225
    %v2273 = vadd.f32 %v2187, %v2227
    %v2274 = vadd.f32 %v2188, %v2266
    %v2275 = vadd.f32 %v2189, %v2268
    %v2276 = vmul.f32 %v2272, 0.5
    %v2277 = vtanh.pop %v2276
    %v2278 = vmul.f32 %v2277, 0.5
    %v2279 = vadd.f32 %v2278, 0.5
    %v2280 = vmul.f32 %v2273, 0.5
    %v2281 = vtanh.pop %v2280
    %v2282 = vmul.f32 %v2281, 0.5
    %v2283 = vadd.f32 %v2282, 0.5
    %v2284 = vtanh.pop %v2274
    %v2285 = vmul.f32 %v2275, 0.5
    %v2286 = vtanh.pop %v2285
    %v2287 = vmul.f32 %v2286, 0.5
    %v2288 = vadd.f32 %v2287, 0.5
    %v2289 = vmul.f32 %v2283, %v2078
    %v2290 = vmul.f32 %v2279, %v2284
    %v2291 = vadd.f32 %v2289, %v2290
    %v2292 = vtanh.pop %v2291
    %v2293 = vmul.f32 %v2288, %v2292
    %v2294 = vpack.c.bf16 %v2293, %v2293
    %v2295 = vpack.c.bf16 %v2182, %v2182
    %2296 = vmatprep.subr.bf16.mxu0 %v706
    %2297 = vmatpush1.bf16.msra.mxu0 %v705
    %2298 = vmatprep.subr.bf16.mxu0 %v702
    %2299 = vmatpush1.bf16.msra.mxu0 %v701
    %2300 = vmatprep.subr.bf16.mxu0 %v698
    %2301 = vmatpush1.bf16.msra.mxu0 %v697
    %2302 = vmatprep.subr.bf16.mxu0 %v694
    %2303 = vmatpush1.bf16.msra.mxu0 %v693
    %2304 = vmatprep.subr.bf16.mxu0 %v690
    %2305 = vmatpush1.bf16.msra.mxu0 %v689
    %2306 = vmatprep.subr.bf16.mxu0 %v686
    %2307 = vmatpush1.bf16.msra.mxu0 %v685
    %2308 = vmatprep.subr.bf16.mxu0 %v682
    %2309 = vmatpush1.bf16.msra.mxu0 %v681
    %2310 = vmatprep.subr.bf16.mxu0 %v678
    %2311 = vmatpush1.bf16.msra.mxu0 %v677
    %2312 = vmatprep.subr.bf16.mxu0 %v738
    %2313 = vmatpush2.bf16.msra.mxu0 %v737
    %2314 = vmatprep.subr.bf16.mxu0 %v734
    %2315 = vmatpush2.bf16.msra.mxu0 %v733
    %2316 = vmatprep.subr.bf16.mxu0 %v730
    %2317 = vmatpush2.bf16.msra.mxu0 %v729
    %2318 = vmatprep.subr.bf16.mxu0 %v726
    %2319 = vmatpush2.bf16.msra.mxu0 %v725
    %2320 = vmatprep.subr.bf16.mxu0 %v722
    %2321 = vmatpush2.bf16.msra.mxu0 %v721
    %2322 = vmatprep.subr.bf16.mxu0 %v718
    %2323 = vmatpush2.bf16.msra.mxu0 %v717
    %2324 = vmatprep.subr.bf16.mxu0 %v714
    %2325 = vmatpush2.bf16.msra.mxu0 %v713
    %2326 = vmatprep.subr.bf16.mxu0 %v710
    %2327 = vmatpush2.bf16.msra.mxu0 %v709
    %2328 = vmatprep.mubr.bf16.mxu0 %v2295
    %2329 = vmatmul.mubr.bf16.gmra.mxu0 %v2294
    %v2330 = vpop.f32.mrf.mxu0
    %v2331 = vadd.f32 %v468, %v2330
    %v2332 = vpop.f32.mrf.mxu0
    %v2333 = vadd.f32 %v472, %v2332
    %v2334 = vpop.f32.mrf.mxu0
    %v2335 = vpop.f32.mrf.mxu0
    %2336 = vdwg.mxu0
    %2337 = vmatprep.subr.bf16.mxu0 %v708
    %2338 = vmatpush1.bf16.msra.mxu0 %v707
    %2339 = vmatprep.subr.bf16.mxu0 %v704
    %2340 = vmatpush1.bf16.msra.mxu0 %v703
    %2341 = vmatprep.subr.bf16.mxu0 %v700
    %2342 = vmatpush1.bf16.msra.mxu0 %v699
    %2343 = vmatprep.subr.bf16.mxu0 %v696
    %2344 = vmatpush1.bf16.msra.mxu0 %v695
    %2345 = vmatprep.subr.bf16.mxu0 %v692
    %2346 = vmatpush1.bf16.msra.mxu0 %v691
    %2347 = vmatprep.subr.bf16.mxu0 %v688
    %2348 = vmatpush1.bf16.msra.mxu0 %v687
    %2349 = vmatprep.subr.bf16.mxu0 %v684
    %2350 = vmatpush1.bf16.msra.mxu0 %v683
    %2351 = vmatprep.subr.bf16.mxu0 %v680
    %2352 = vmatpush1.bf16.msra.mxu0 %v679
    %2353 = vmatprep.subr.bf16.mxu0 %v740
    %2354 = vmatpush2.bf16.msra.mxu0 %v739
    %2355 = vmatprep.subr.bf16.mxu0 %v736
    %2356 = vmatpush2.bf16.msra.mxu0 %v735
    %2357 = vmatprep.subr.bf16.mxu0 %v732
    %2358 = vmatpush2.bf16.msra.mxu0 %v731
    %2359 = vmatprep.subr.bf16.mxu0 %v728
    %2360 = vmatpush2.bf16.msra.mxu0 %v727
    %2361 = vmatprep.subr.bf16.mxu0 %v724
    %2362 = vmatpush2.bf16.msra.mxu0 %v723
    %2363 = vmatprep.subr.bf16.mxu0 %v720
    %2364 = vmatpush2.bf16.msra.mxu0 %v719
    %2365 = vmatprep.subr.bf16.mxu0 %v716
    %2366 = vmatpush2.bf16.msra.mxu0 %v715
    %2367 = vmatprep.subr.bf16.mxu0 %v712
    %2368 = vmatpush2.bf16.msra.mxu0 %v711
    %2369 = vmatprep.mubr.bf16.mxu0 %v2295
    %2370 = vmatmul.mubr.bf16.gmra.mxu0 %v2294
    %v2371 = vpop.f32.mrf.mxu0
    %v2372 = vadd.f32 %v476, %v2371
    %v2373 = vpop.f32.mrf.mxu0
    %v2374 = vadd.f32 %v480, %v2373
    %v2375 = vpop.f32.mrf.mxu0
    %v2376 = vpop.f32.mrf.mxu0
    %2377 = vdwg.mxu0
    %v2378 = vmul.f32 %v2331, 0.5
    %v2379 = vtanh.pop %v2378
    %v2380 = vmul.f32 %v2379, 0.5
    %v2381 = vadd.f32 %v2380, 0.5
    %v2382 = vmul.f32 %v2333, 0.5
    %v2383 = vtanh.pop %v2382
    %v2384 = vmul.f32 %v2383, 0.5
    %v2385 = vadd.f32 %v2384, 0.5
    %v2386 = vtanh.pop %v2372
    %v2387 = vmul.f32 %v2374, 0.5
    %v2388 = vtanh.pop %v2387
    %v2389 = vmul.f32 %v2388, 0.5
    %v2390 = vadd.f32 %v2389, 0.5
    %v2391 = vmul.f32 %v2385, %v2180
    %v2392 = vmul.f32 %v2381, %v2386
    %v2393 = vadd.f32 %v2391, %v2392
    %v2394 = vtanh.pop %v2393
    %v2395 = vmul.f32 %v2390, %v2394
    %2396 = vst [vmem:[#allocation2] sm:$0xff] %v2293
    %2397 = vst [vmem:[#allocation3] sm:$0xff] %v2291
    %2398 = vst [vmem:[%s90] sm:$0xff] %v2395
    %2399 = vst [vmem:[%s92] sm:$0xff] %v2393
    // Predicated region
    $region46: #{tpu_custom_call.1} parent=1 // pred_check
      %p2400 = pneg %p80
    $region47: #{tpu_custom_call.1} parent=1 // pred_check_branch
      %2402 = sbr.rel (%p2400) target = $region49
    $region48: #{tpu_custom_call.1} parent=1 // pred_region
      %v2403 = vpack.c.bf16 %v2395, %v2395
      %v2404 = vld [vmem:[#allocation10] sm:$0xf]
      %v2405 = vld [vmem:[#allocation10 + $0x4] sm:$0xf]
      %v2406 = vld [vmem:[#allocation10 + $0x8] sm:$0xf]
      %v2407 = vld [vmem:[#allocation10 + $0xc] sm:$0xf]
      %v2408 = vld [vmem:[#allocation10 + $0x10] sm:$0xf]
      %v2409 = vld [vmem:[#allocation10 + $0x14] sm:$0xf]
      %v2410 = vld [vmem:[#allocation10 + $0x18] sm:$0xf]
      %v2411 = vld [vmem:[#allocation10 + $0x1c] sm:$0xf]
      %v2412 = vld [vmem:[#allocation10 + $0x20] sm:$0xf]
      %v2413 = vld [vmem:[#allocation10 + $0x24] sm:$0xf]
      %v2414 = vld [vmem:[#allocation10 + $0x28] sm:$0xf]
      %v2415 = vld [vmem:[#allocation10 + $0x2c] sm:$0xf]
      %v2416 = vld [vmem:[#allocation10 + $0x30] sm:$0xf]
      %v2417 = vld [vmem:[#allocation10 + $0x34] sm:$0xf]
      %v2418 = vld [vmem:[#allocation10 + $0x38] sm:$0xf]
      %v2419 = vld [vmem:[#allocation10 + $0x3c] sm:$0xf]
      %v2420 = vld [vmem:[%s5] sm:$0x1]
      %v2422 = vlaneseq
      %v2423 = vshrl.u32 %v2422, 7
      %v2424 = vsub.s32 0, %v2423
      %v2425 = vrot.slane %v2420, %v2424
      %v2443 = vunpack.c.l.b16 %v2404
      %v2444 = vunpack.c.l.b16 %v2405
      %v2445 = vunpack.c.l.b16 %v2406
      %v2446 = vunpack.c.l.b16 %v2407
      %v2447 = vunpack.c.l.b16 %v2408
      %v2448 = vunpack.c.l.b16 %v2409
      %v2449 = vunpack.c.l.b16 %v2410
      %v2450 = vunpack.c.l.b16 %v2411
      %v2451 = vunpack.c.l.b16 %v2412
      %v2452 = vunpack.c.l.b16 %v2413
      %v2453 = vunpack.c.l.b16 %v2414
      %v2454 = vunpack.c.l.b16 %v2415
      %v2455 = vunpack.c.l.b16 %v2416
      %v2456 = vunpack.c.l.b16 %v2417
      %v2457 = vunpack.c.l.b16 %v2418
      %v2458 = vunpack.c.l.b16 %v2419
      %v2459 = vpack.c.b16 %v2444, %v2443
      %v2460 = vpack.c.b16 %v2446, %v2445
      %v2461 = vpack.c.b16 %v2448, %v2447
      %v2462 = vpack.c.b16 %v2450, %v2449
      %v2463 = vpack.c.b16 %v2452, %v2451
      %v2464 = vpack.c.b16 %v2454, %v2453
      %v2465 = vpack.c.b16 %v2456, %v2455
      %v2466 = vpack.c.b16 %v2458, %v2457
      %2475 = vmatprep.subr.bf16.mxu0 0
      %2476 = vmatpush1.bf16.msra.mxu0 %v2466
      %2477 = vmatprep.subr.bf16.mxu0 0
      %2478 = vmatpush1.bf16.msra.mxu0 %v2465
      %2479 = vmatprep.subr.bf16.mxu0 0
      %2480 = vmatpush1.bf16.msra.mxu0 %v2464
      %2481 = vmatprep.subr.bf16.mxu0 0
      %2482 = vmatpush1.bf16.msra.mxu0 %v2463
      %2483 = vmatprep.subr.bf16.mxu0 0
      %2484 = vmatpush1.bf16.msra.mxu0 %v2462
      %2485 = vmatprep.subr.bf16.mxu0 0
      %2486 = vmatpush1.bf16.msra.mxu0 %v2461
      %2487 = vmatprep.subr.bf16.mxu0 0
      %2488 = vmatpush1.bf16.msra.mxu0 %v2460
      %2489 = vmatprep.subr.bf16.mxu0 0
      %2490 = vmatpush1.bf16.msra.mxu0 %v2459
      %2491 = vmatprep.subr.bf16.mxu0 0
      %2492 = vmatpush2.bf16.msra.mxu0 0
      %2493 = vmatprep.subr.bf16.mxu0 0
      %2494 = vmatpush2.bf16.msra.mxu0 0
      %2495 = vmatprep.subr.bf16.mxu0 0
      %2496 = vmatpush2.bf16.msra.mxu0 0
      %2497 = vmatprep.subr.bf16.mxu0 0
      %2498 = vmatpush2.bf16.msra.mxu0 0
      %2499 = vmatprep.subr.bf16.mxu0 0
      %2500 = vmatpush2.bf16.msra.mxu0 0
      %2501 = vmatprep.subr.bf16.mxu0 0
      %2502 = vmatpush2.bf16.msra.mxu0 0
      %2503 = vmatprep.subr.bf16.mxu0 0
      %2504 = vmatpush2.bf16.msra.mxu0 0
      %2505 = vmatprep.subr.bf16.mxu0 0
      %2506 = vmatpush2.bf16.msra.mxu0 0
      %2507 = vmatprep.mubr.bf16.mxu0 0
      %2508 = vmatmul.mubr.bf16.gmra.mxu0 %v2403
      %v2509 = vpop.f32.mrf.mxu0
      %v2510 = vadd.f32 %v2425, %v2509
      %v2511 = vpop.f32.mrf.mxu0
      %v2512 = vpop.f32.mrf.mxu0
      %v2513 = vpop.f32.mrf.mxu0
      %2514 = vdwg.mxu0
      %2515 = vst [vmem:[#allocation12] sm:$0xff] %v2510
    $region49: #{tpu_custom_call.1} parent=1 // pred_fallthru
      _
    // Predicated region
    $region50: #{tpu_custom_call.1} parent=1 // pred_check
      _
    $region51: #{tpu_custom_call.1} parent=1 // pred_check_branch
      %2517 = sbr.rel (0) target = $region53
    $region52: #{tpu_custom_call.1} parent=1 // pred_region
      %s2519 = ssub.s32 128, 128
      %2520 = vsyncadd [#allocation6], %s2519
      %s2522 = sshll.u32 [#allocation12], 4
      %s2523 = int_to_ptr.vmem [resolvable:$true] %s2522
      %2525 = dma.vmem_to_hbm [thread:$0]  %s2523, 128, %s6, [#allocation6]
    $region53: #{tpu_custom_call.1} parent=1 // pred_fallthru
      _
    // Predicated region
    $region54: #{tpu_custom_call.1} parent=1 // pred_check
      _
    $region55: #{tpu_custom_call.1} parent=1 // pred_check_branch
      %2527 = sbr.rel (0) target = $region57
    $region56: #{tpu_custom_call.1} parent=1 // pred_region
      %2528 = dma.done [#allocation6], 128
    $region57: #{tpu_custom_call.1} parent=1 // pred_fallthru
      _
    %2529 = vsyncpa [#allocation5], 1
    %2530 = vsyncpa [#allocation8], 1
    %2531 = vsyncpa [#allocation11], 1
    %2532 = vsyncpa [#allocation6], 1

</llo_original>
